<compile_context>
chip_gen: v7x
topology: tpu7x:2x2x1
jax: 0.10.0
libtpu: 0.0.40
codegen_flags: <defaults>
</compile_context>

<pallas_src>
import functools

import jax
import jax.numpy as jnp
from jax.experimental import pallas as pl
from jax.experimental.pallas import tpu as pltpu

NUM_CORES = 2   # vocab sweep split across this many TensorCores (v7x has 2;
                # on single-TC v5e/v6e the extra grid slice simply runs serially).


# ----------------------------------------------------------------------------- helpers
def _round_up(x, m):
    return (x + m - 1) // m * m


def _pad2(a, rows, cols):
    return jnp.pad(a, ((0, rows - a.shape[0]), (0, cols - a.shape[1])))


# ----------------------------------------------------------------------------- kernel
def decoder_step_kernel(
    x_ref, h_ref, enc_ref, enc_t_ref,
    w_ih_ref, w_hh_ref, b_ih_ref, b_hh_ref,
    w_c1_ref, w_c2_ref, b_c_ref,
    w_o_ref, b_o_ref,
    logits_ref, lse_ref, hid_ref,
    cc_sc, m_sc, l_sc,
    *, L, O, TILE_O,
):
    """Grid: (NUM_CORES, vocab_tiles_per_core).

    The GRU cell + Luong dot attention + concat prologue runs once per core (j == 0; tiny,
    redundant across cores).  Every (c, j) step computes one TILE_O-wide slab of the output
    projection and updates a per-core online log-sum-exp.  Raw logits + the per-core LSE are
    returned; the exact softmax is finished on the unpadded slice in the wrapper."""
    c = pl.program_id(0)
    j = pl.program_id(1)
    n_j = pl.num_programs(1)
    Hp = h_ref.shape[-1]

    # ------------- step-invariant prologue: GRU cell + attention + concat --------------
    @pl.when(j == 0)
    def _():
        x = x_ref[...]                                   # (Bp, Hp) embedded input
        h = h_ref[...]                                   # (Bp, Hp) previous hidden
        wdt = w_ih_ref.dtype

        # Fused GRU gate matmuls: one (Bp,Hp)x(Hp,3Hp) per operand, PyTorch gate order r|z|n.
        gi = jnp.dot(x.astype(wdt), w_ih_ref[...],
                     preferred_element_type=jnp.float32) + b_ih_ref[...]
        gh = jnp.dot(h.astype(wdt), w_hh_ref[...],
                     preferred_element_type=jnp.float32) + b_hh_ref[...]
        r = jax.nn.sigmoid(gi[:, :Hp] + gh[:, :Hp])
        z = jax.nn.sigmoid(gi[:, Hp:2 * Hp] + gh[:, Hp:2 * Hp])
        n = jnp.tanh(gi[:, 2 * Hp:] + r * gh[:, 2 * Hp:])
        h_new = (1.0 - z) * n + z * h                    # (Bp, Hp)
        hid_ref[...] = h_new[None].astype(hid_ref.dtype)

        # Luong 'dot' attention.  Scores use the pre-transposed encoder copy so the
        # contraction (over H) is on the sublane dim -> plain batched MXU matmul, no XLU.
        edt = enc_t_ref.dtype
        scores = jnp.einsum('bqh,bhl->bql',
                            h_new[:, None, :].astype(edt), enc_t_ref[...],
                            preferred_element_type=jnp.float32)[:, 0, :]   # (Bp, Lp)
        lidx = jax.lax.broadcasted_iota(jnp.int32, scores.shape, 1)
        scores = jnp.where(lidx < L, scores, -1e30)      # mask padded encoder positions
        smax = jnp.max(scores, axis=1, keepdims=True)
        e = jnp.exp(scores - smax)
        attn = e / jnp.sum(e, axis=1, keepdims=True)     # exact division (once per step)
        context = jnp.einsum('bql,blh->bqh',
                             attn[:, None, :].astype(edt), enc_ref[...],
                             preferred_element_type=jnp.float32)[:, 0, :]  # (Bp, Hp)

        # concat Linear(2H -> H) split into two matmuls + tanh.
        cdt = w_c1_ref.dtype
        cc = jnp.tanh(
            jnp.dot(h_new.astype(cdt), w_c1_ref[...], preferred_element_type=jnp.float32)
            + jnp.dot(context.astype(cdt), w_c2_ref[...], preferred_element_type=jnp.float32)
            + b_c_ref[...])
        cc_sc[...] = cc
        m_sc[...] = jnp.full_like(m_sc, -1e30)
        l_sc[...] = jnp.zeros_like(l_sc)

    # ------------- per-vocab-tile output projection with online log-sum-exp ------------
    cc = cc_sc[...]                                      # (Bp, Hp)
    logits = (jnp.dot(cc.astype(w_o_ref.dtype), w_o_ref[...],
                      preferred_element_type=jnp.float32) + b_o_ref[...])  # (Bp, TILE_O)
    col = (c * n_j + j) * TILE_O + jax.lax.broadcasted_iota(jnp.int32, logits.shape, 1)
    logits = jnp.where(col < O, logits, -1e30)           # mask padded vocab lanes (f32 only)

    m_prev = m_sc[...]
    m_new = jnp.maximum(m_prev, jnp.max(logits, axis=1, keepdims=True))
    l_sc[...] = (l_sc[...] * jnp.exp(m_prev - m_new)
                 + jnp.sum(jnp.exp(logits - m_new), axis=1, keepdims=True))
    m_sc[...] = m_new

    off = pl.multiple_of(j * TILE_O, TILE_O)
    logits_ref[:, pl.ds(off, TILE_O)] = logits           # raw logits, resident per-core half

    @pl.when(j == n_j - 1)
    def _():
        lse_ref[...] = (m_sc[...] + jnp.log(l_sc[...]))[None]   # per-core log-sum-exp


# ----------------------------------------------------------------------------- params
def init_params(key, hidden_size, output_size):
    """Deterministic synthetic parameters mirroring the torch module's shapes."""
    H, O = hidden_size, output_size
    ks = jax.random.split(key, 8)
    s = 0.1
    return {
        "embedding": jax.random.normal(ks[0], (O, H), jnp.float32) * s,   # nn.Embedding(O, H)
        "w_ih": jax.random.normal(ks[1], (3 * H, H), jnp.float32) * s,    # GRU weight_ih_l0
        "w_hh": jax.random.normal(ks[2], (3 * H, H), jnp.float32) * s,    # GRU weight_hh_l0
        "b_ih": jax.random.normal(ks[3], (3 * H,), jnp.float32) * s,
        "b_hh": jax.random.normal(ks[4], (3 * H,), jnp.float32) * s,
        "w_concat": jax.random.normal(ks[5], (H, 2 * H), jnp.float32) * s,  # Linear(2H -> H)
        "b_concat": jnp.zeros((H,), jnp.float32),
        "w_out": jax.random.normal(ks[6], (O, H), jnp.float32) * s,         # Linear(H -> O)
        "b_out": jnp.zeros((O,), jnp.float32),
    }


def prepare_params(params, max_tile_o=4096, weights_dtype=jnp.bfloat16):
    """ONE-TIME weight preprocessing (hoisted out of the per-step decode path):
    transpose to x@W layout, fuse + pad GRU gates, pad to TPU tiles, store weights in bf16
    (f32 MXU accumulation in-kernel -> bandwidth-bound decode gets ~2x from halved HBM traffic).
    # TODO(synk): optional per-generation 8-bit w_out (int8 on v5e/v6e, fp8-e4m3 on v7x whose
    # MXU has no integer path) for another ~2x on the bandwidth-bound vocab projection.
    """
    H = params["w_ih"].shape[1]
    O = params["w_out"].shape[0]
    Hp = _round_up(H, 128)
    TILE_O = min(_round_up(max_tile_o, 128), _round_up(O, 128))
    n_j = pl.cdiv(O, NUM_CORES * TILE_O)          # vocab tiles per core
    Op = NUM_CORES * n_j * TILE_O

    def pad_gate_w(w):   # torch (3H, H) -> (Hp, 3Hp): transposed, per-gate padded (r|z|n)
        w_t = w.T        # (H, 3H)
        return jnp.concatenate(
            [_pad2(w_t[:, g * H:(g + 1) * H], Hp, Hp) for g in range(3)], axis=1)

    def pad_gate_b(b):   # (3H,) -> (1, 3Hp)
        return jnp.concatenate(
            [jnp.pad(b[g * H:(g + 1) * H], (0, Hp - H)) for g in range(3)])[None, :]

    w_c_t = params["w_concat"].T          # (2H, H): rows [0:H]=rnn_output, [H:2H]=context
    return {
        "H": H, "O": O, "Hp": Hp, "Op": Op, "TILE_O": TILE_O, "n_j": n_j,
        "embedding": _pad2(params["embedding"], O, Hp),             # (O, Hp) f32 gather table
        "w_ih": pad_gate_w(params["w_ih"]).astype(weights_dtype),   # (Hp, 3Hp)
        "w_hh": pad_gate_w(params["w_hh"]).astype(weights_dtype),
        "b_ih": pad_gate_b(params["b_ih"]),                         # biases stay f32
        "b_hh": pad_gate_b(params["b_hh"]),
        "w_c1": _pad2(w_c_t[:H], Hp, Hp).astype(weights_dtype),
        "w_c2": _pad2(w_c_t[H:], Hp, Hp).astype(weights_dtype),
        "b_c": jnp.pad(params["b_concat"], (0, Hp - H))[None, :],
        "w_o": _pad2(params["w_out"].T, Hp, Op).astype(weights_dtype),  # (Hp, Op)
        "b_o": jnp.pad(params["b_out"], (0, Op - O))[None, :],
    }


def prepare_encoder(encoder_outputs, prep, enc_dtype=jnp.bfloat16):
    """ONE-TIME per source sequence: (L, B, H) time-major -> padded batch-major bf16 copies.
    enc   (Bp, Lp, Hp): context contraction (contracts L = sublane dim).
    enc_t (Bp, Hp, Lp): score contraction  (contracts H = sublane dim) -> no XLU relayout.
    # TODO(synk): for very large L*H (v7x: 64 MiB VMEM) stream enc in L-chunks via manual DMA
    # (memory_space=pl.ANY + pltpu.make_async_copy) instead of keeping it resident.
    """
    L, B, H = encoder_outputs.shape
    Hp = prep["Hp"]
    Bp = _round_up(B, 8)
    Lp = _round_up(L, 128)
    enc = jnp.transpose(encoder_outputs, (1, 0, 2))                       # (B, L, H)
    enc = jnp.pad(enc, ((0, Bp - B), (0, Lp - L), (0, Hp - H))).astype(enc_dtype)
    enc_t = jnp.transpose(enc, (0, 2, 1))                                 # (Bp, Hp, Lp)
    return {"enc": enc, "enc_t": enc_t, "L": L}


# ----------------------------------------------------------------------------- per-step call
def decoder_rnn_forward(prep, input_step, last_hidden, enc_prep):
    """
    prep:        output of prepare_params (once per model)
    input_step:  (1, B) int32 token ids
    last_hidden: (1, B, H) float32  (n_layers == 1)
    enc_prep:    output of prepare_encoder (once per source sequence)
    returns: (output probs (B, O), new hidden (1, B, H))

    NOTE: throughput scales ~linearly with B up to ~128-256 (the weight stream is shared),
    so stack concurrent sequences / beams in the caller when possible.
    """
    H, O = prep["H"], prep["O"]
    Hp, Op, TILE_O, n_j = prep["Hp"], prep["Op"], prep["TILE_O"], prep["n_j"]
    enc, enc_t = enc_prep["enc"], enc_prep["enc_t"]
    L = enc_prep["L"]
    Lp = enc.shape[1]
    B = input_step.shape[1]
    Bp = _round_up(B, 8)
    Op_half = Op // NUM_CORES

    # Per-step glue: embedding gather (+ pad).  TODO(synk): embedding_dropout (p=0.1) is
    # stochastic training-mode dropout; identity here (eval semantics).
    emb = prep["embedding"][input_step[0]]                       # (B, Hp)
    x = jnp.pad(emb, ((0, Bp - B), (0, 0))).astype(jnp.float32)
    h = jnp.pad(last_hidden[0], ((0, Bp - B), (0, Hp - H)))

    args = (x, h, enc, enc_t,
            prep["w_ih"], prep["w_hh"], prep["b_ih"], prep["b_hh"],
            prep["w_c1"], prep["w_c2"], prep["b_c"],
            prep["w_o"], prep["b_o"])

    kernel = functools.partial(decoder_step_kernel, L=L, O=O, TILE_O=TILE_O)
    grid = (NUM_CORES, n_j)

    # Step-invariant operands: single-buffered (their block never changes across the grid).
    def const_spec(shape):
        zeros = (0,) * len(shape)
        return pl.BlockSpec(shape, lambda c, j: zeros, pipeline_mode=pl.Buffered(1))

    # Streamed w_out tiles: deeper pipeline when there are enough tiles to hide the DMA.
    wo_buffers = min(3, max(2, n_j))

    in_specs = [
        const_spec((Bp, Hp)),                                 # x
        const_spec((Bp, Hp)),                                 # h_prev
        const_spec((Bp, Lp, Hp)),                             # enc   (context contraction)
        const_spec((Bp, Hp, Lp)),                             # enc_t (score contraction)
        const_spec((Hp, 3 * Hp)),                             # w_ih (fused gates r|z|n)
        const_spec((Hp, 3 * Hp)),                             # w_hh
        const_spec((1, 3 * Hp)),                              # b_ih
        const_spec((1, 3 * Hp)),                              # b_hh
        const_spec((Hp, Hp)),                                 # w_c1
        const_spec((Hp, Hp)),                                 # w_c2
        const_spec((1, Hp)),                                  # b_c
        pl.BlockSpec((Hp, TILE_O), lambda c, j: (0, c * n_j + j),
                     pipeline_mode=pl.Buffered(wo_buffers)),  # w_out tile (streamed)
        pl.BlockSpec((1, TILE_O), lambda c, j: (0, c * n_j + j),
                     pipeline_mode=pl.Buffered(wo_buffers)),  # b_out tile
    ]
    out_specs = (
        pl.BlockSpec((Bp, Op_half), lambda c, j: (0, c)),     # raw logits, per-core half
        pl.BlockSpec((1, Bp, 1), lambda c, j: (c, 0, 0)),     # per-core LSE
        pl.BlockSpec((1, Bp, Hp), lambda c, j: (c, 0, 0)),    # new hidden (per-core copy)
    )
    out_shape = (
        jax.ShapeDtypeStruct((Bp, Op), jnp.float32),
        jax.ShapeDtypeStruct((NUM_CORES, Bp, 1), jnp.float32),
        jax.ShapeDtypeStruct((NUM_CORES, Bp, Hp), jnp.float32),
    )

    # VMEM budget from the actual footprint (invariants x1 buffer, w_out tiles x wo_buffers,
    # outputs x2), capped at 75% of physical VMEM (generation-aware: ~48 MiB on v7x).
    def nbytes(a):
        return a.size * a.dtype.itemsize

    invariant_bytes = sum(nbytes(a) for a in args[:11])
    wo_tile_bytes = (Hp * TILE_O * prep["w_o"].dtype.itemsize + TILE_O * 4) * wo_buffers
    out_bytes = 2 * (Bp * Op_half * 4 + Bp * 4 + Bp * Hp * 4)
    scratch_bytes = Bp * Hp * 4 + 2 * 8 * 128 * 4
    est = invariant_bytes + wo_tile_bytes + out_bytes + scratch_bytes
    try:
        vmem_phys = pltpu.get_tpu_info().vmem_capacity_bytes
    except Exception:
        vmem_phys = 128 * 1024 * 1024
    vmem_limit = int(max(min(1.5 * est + (2 << 20), 0.75 * vmem_phys), 16 << 20))

    cost = pl.CostEstimate(
        flops=int(NUM_CORES * Bp * (12 * Hp * Hp + 4 * Hp * Lp + 4 * Hp * Hp)
                  + 2 * Bp * Hp * Op),
        transcendentals=int(Bp * (NUM_CORES * (3 * Hp + Lp) + Op)),
        bytes_accessed=int(sum(nbytes(a) for a in args) + Bp * (Op + Hp + 1) * 4),
    )

    logits_p, lse_p, hid_p = pl.pallas_call(
        kernel,
        out_shape=out_shape,
        grid_spec=pltpu.PrefetchScalarGridSpec(
            num_scalar_prefetch=0,
            grid=grid,
            in_specs=in_specs,
            out_specs=out_specs,
            scratch_shapes=[
                pltpu.VMEM((Bp, Hp), jnp.float32),   # cc (concat output), reused across tiles
                pltpu.VMEM((Bp, 1), jnp.float32),    # online-LSE running max
                pltpu.VMEM((Bp, 1), jnp.float32),    # online-LSE running sum
            ],
        ),
        compiler_params=pltpu.CompilerParams(
            # core axis: independent vocab halves -> "parallel" (megacore split on v7x);
            # vocab-tile axis carries the LSE accumulator -> "arbitrary".
            dimension_semantics=("parallel", "arbitrary"),
            vmem_limit_bytes=vmem_limit,
        ),
        cost_estimate=cost,
    )(*args)

    # Finish the exact softmax on the unpadded slice (cheap wrapper exp; no serial in-kernel
    # whole-vocab epilogue).  Merge the two per-core half-LSEs.
    lse = jax.scipy.special.logsumexp(lse_p[:, :B, 0], axis=0)        # (B,)
    probs = jnp.exp(logits_p[:B, :O] - lse[:, None])                  # exact softmax
    hidden = hid_p[0, :B, :H][None]                                   # (1, B, H)
    return probs, hidden


# ----------------------------------------------------------------------------- reference
def reference_forward(params, input_step, last_hidden, encoder_outputs):
    """Pure-JAX f32 reference mirroring the PyTorch forward (sanity check)."""
    H = last_hidden.shape[-1]
    emb = params["embedding"][input_step[0]]
    h = last_hidden[0]
    gi = emb @ params["w_ih"].T + params["b_ih"]
    gh = h @ params["w_hh"].T + params["b_hh"]
    r = jax.nn.sigmoid(gi[:, :H] + gh[:, :H])
    z = jax.nn.sigmoid(gi[:, H:2 * H] + gh[:, H:2 * H])
    n = jnp.tanh(gi[:, 2 * H:] + r * gh[:, 2 * H:])
    h_new = (1.0 - z) * n + z * h                                    # (B, H) == rnn_output
    scores = jnp.sum(h_new[None, :, :] * encoder_outputs, axis=2)    # (L, B)
    attn = jax.nn.softmax(scores.T, axis=1)                          # (B, L)
    context = jnp.einsum("bl,lbh->bh", attn, encoder_outputs)        # (B, H)
    cc = jnp.tanh(jnp.concatenate([h_new, context], axis=1)
                  @ params["w_concat"].T + params["b_concat"])
    out = jax.nn.softmax(cc @ params["w_out"].T + params["b_out"], axis=1)
    return out, h_new[None]


if __name__ == "__main__":
    B, H, O, L = 2, 32, 48, 8   # batch, hidden, vocab/output, encoder seq len
    key = jax.random.PRNGKey(0)
    kp, k1, k2, k3 = jax.random.split(key, 4)

    params = init_params(kp, H, O)
    input_step = jax.random.randint(k1, (1, B), 0, O, dtype=jnp.int32)        # (1, B)
    last_hidden = jax.random.normal(k2, (1, B, H), jnp.float32)               # (1, B, H)
    encoder_outputs = jax.random.normal(k3, (L, B, H), jnp.float32)           # (L, B, H)

    prep = prepare_params(params)                       # once per model (bf16 weights)
    enc_prep = prepare_encoder(encoder_outputs, prep)   # once per source sequence

    out, hidden = decoder_rnn_forward(prep, input_step, last_hidden, enc_prep)
    out = jax.block_until_ready(out)
    hidden = jax.block_until_ready(hidden)

    ref_out, ref_hidden = reference_forward(params, input_step, last_hidden, encoder_outputs)
    assert out.shape == (B, O) and hidden.shape == (1, B, H)
    # bf16 weight storage (f32 MXU accumulation) -> relaxed-but-tight tolerances vs f32 ref.
    assert jnp.allclose(hidden, ref_hidden, atol=1e-2, rtol=1e-2)
    assert jnp.allclose(out, ref_out, atol=5e-3, rtol=5e-3)
    assert jnp.allclose(jnp.sum(out, axis=1), 1.0, atol=1e-5)

    print("KERNEL_OK")
</pallas_src>

<mosaic_0001>
module attributes {stable_mosaic.version = 11 : i64} {
  func.func @decoder_step_kernel(%arg0: i32, %arg1: i32, %arg2: memref<8x128xf32, #tpu.memory_space<vmem>>, %arg3: memref<8x128xf32, #tpu.memory_space<vmem>>, %arg4: memref<8x128x128xbf16, #tpu.memory_space<vmem>>, %arg5: memref<8x128x128xbf16, #tpu.memory_space<vmem>>, %arg6: memref<128x384xbf16, #tpu.memory_space<vmem>>, %arg7: memref<128x384xbf16, #tpu.memory_space<vmem>>, %arg8: memref<1x384xf32, #tpu.memory_space<vmem>>, %arg9: memref<1x384xf32, #tpu.memory_space<vmem>>, %arg10: memref<128x128xbf16, #tpu.memory_space<vmem>>, %arg11: memref<128x128xbf16, #tpu.memory_space<vmem>>, %arg12: memref<1x128xf32, #tpu.memory_space<vmem>>, %arg13: memref<128x128xbf16, #tpu.memory_space<vmem>>, %arg14: memref<1x128xf32, #tpu.memory_space<vmem>>, %arg15: memref<8x128xf32, #tpu.memory_space<vmem>>, %arg16: memref<1x8x1xf32, #tpu.memory_space<vmem>>, %arg17: memref<1x8x128xf32, #tpu.memory_space<vmem>>, %arg18: memref<8x128xf32, #tpu.memory_space<vmem>>, %arg19: memref<8x1xf32, #tpu.memory_space<vmem>>, %arg20: memref<8x1xf32, #tpu.memory_space<vmem>>) attributes {dimension_semantics = [#tpu.dimension_semantics<parallel>, #tpu.dimension_semantics<arbitrary>], iteration_bounds = array<i64: 2, 1>, scalar_prefetch = 0 : i64, scratch_operands = 3 : i64, tpu.core_type = #tpu.core_type<tc>, window_params = [{pipeline_mode = #tpu.pipeline_mode<synchronous>, transform_indices = @transform_0, window_bounds = array<i64: 8, 128>}, {pipeline_mode = #tpu.pipeline_mode<synchronous>, transform_indices = @transform_1, window_bounds = array<i64: 8, 128>}, {pipeline_mode = #tpu.pipeline_mode<synchronous>, transform_indices = @transform_2, window_bounds = array<i64: 8, 128, 128>}, {pipeline_mode = #tpu.pipeline_mode<synchronous>, transform_indices = @transform_3, window_bounds = array<i64: 8, 128, 128>}, {pipeline_mode = #tpu.pipeline_mode<synchronous>, transform_indices = @transform_4, window_bounds = array<i64: 128, 384>}, {pipeline_mode = #tpu.pipeline_mode<synchronous>, transform_indices = @transform_5, window_bounds = array<i64: 128, 384>}, {pipeline_mode = #tpu.pipeline_mode<synchronous>, transform_indices = @transform_6, window_bounds = array<i64: 1, 384>}, {pipeline_mode = #tpu.pipeline_mode<synchronous>, transform_indices = @transform_7, window_bounds = array<i64: 1, 384>}, {pipeline_mode = #tpu.pipeline_mode<synchronous>, transform_indices = @transform_8, window_bounds = array<i64: 128, 128>}, {pipeline_mode = #tpu.pipeline_mode<synchronous>, transform_indices = @transform_9, window_bounds = array<i64: 128, 128>}, {pipeline_mode = #tpu.pipeline_mode<synchronous>, transform_indices = @transform_10, window_bounds = array<i64: 1, 128>}, {pipeline_mode = #tpu.pipeline_mode<double_buffered>, transform_indices = @transform_11, window_bounds = array<i64: 128, 128>}, {pipeline_mode = #tpu.pipeline_mode<double_buffered>, transform_indices = @transform_12, window_bounds = array<i64: 1, 128>}, {transform_indices = @transform_13, window_bounds = array<i64: 8, 128>}, {transform_indices = @transform_14, window_bounds = array<i64: 1, 8, 1>}, {transform_indices = @transform_15, window_bounds = array<i64: 1, 8, 128>}]} {
    %c0_i32 = arith.constant 0 : i32
    %0 = arith.cmpi eq, %arg1, %c0_i32 : i32
    %1 = arith.extui %0 : i1 to i32
    %c0_i32_0 = arith.constant 0 : i32
    %2 = arith.cmpi ne, %1, %c0_i32_0 : i32
    scf.if %2 {
      %c0_21 = arith.constant 0 : index
      %c0_22 = arith.constant 0 : index
      %43 = vector.load %arg2[%c0_21, %c0_22] : memref<8x128xf32, #tpu.memory_space<vmem>>, vector<8x128xf32>
      %c0_23 = arith.constant 0 : index
      %c0_24 = arith.constant 0 : index
      %44 = vector.load %arg3[%c0_23, %c0_24] : memref<8x128xf32, #tpu.memory_space<vmem>>, vector<8x128xf32>
      %45 = arith.truncf %43 : vector<8x128xf32> to vector<8x128xbf16>
      %c0_25 = arith.constant 0 : index
      %c0_26 = arith.constant 0 : index
      %46 = vector.load %arg6[%c0_25, %c0_26] : memref<128x384xbf16, #tpu.memory_space<vmem>>, vector<128x384xbf16>
      %cst_27 = arith.constant dense<0.000000e+00> : vector<8x384xf32>
      %47 = tpu.matmul %45, %46, %cst_27 {dimension_numbers = #tpu.dot_dimension_numbers<[1], [0], [0], [1], [0, 0, 1, 1], [], []>} : vector<8x128xbf16>, vector<128x384xbf16>, vector<8x384xf32> -> vector<8x384xf32>
      %c0_28 = arith.constant 0 : index
      %c0_29 = arith.constant 0 : index
      %48 = vector.load %arg8[%c0_28, %c0_29] : memref<1x384xf32, #tpu.memory_space<vmem>>, vector<1x384xf32>
      %49 = vector.broadcast %48 : vector<1x384xf32> to vector<8x384xf32>
      %50 = arith.addf %47, %49 : vector<8x384xf32>
      %51 = arith.truncf %44 : vector<8x128xf32> to vector<8x128xbf16>
      %c0_30 = arith.constant 0 : index
      %c0_31 = arith.constant 0 : index
      %52 = vector.load %arg7[%c0_30, %c0_31] : memref<128x384xbf16, #tpu.memory_space<vmem>>, vector<128x384xbf16>
      %cst_32 = arith.constant dense<0.000000e+00> : vector<8x384xf32>
      %53 = tpu.matmul %51, %52, %cst_32 {dimension_numbers = #tpu.dot_dimension_numbers<[1], [0], [0], [1], [0, 0, 1, 1], [], []>} : vector<8x128xbf16>, vector<128x384xbf16>, vector<8x384xf32> -> vector<8x384xf32>
      %c0_33 = arith.constant 0 : index
      %c0_34 = arith.constant 0 : index
      %54 = vector.load %arg9[%c0_33, %c0_34] : memref<1x384xf32, #tpu.memory_space<vmem>>, vector<1x384xf32>
      %55 = vector.broadcast %54 : vector<1x384xf32> to vector<8x384xf32>
      %56 = arith.addf %53, %55 : vector<8x384xf32>
      %57 = vector.extract_strided_slice %50 {offsets = [0, 0], sizes = [8, 128], strides = [1, 1]} : vector<8x384xf32> to vector<8x128xf32>
      %58 = vector.extract_strided_slice %56 {offsets = [0, 0], sizes = [8, 128], strides = [1, 1]} : vector<8x384xf32> to vector<8x128xf32>
      %59 = arith.addf %57, %58 : vector<8x128xf32>
      %60 = arith.negf %59 : vector<8x128xf32>
      %61 = math.exp %60 : vector<8x128xf32>
      %cst_35 = arith.constant 1.000000e+00 : f32
      %62 = vector.broadcast %cst_35 : f32 to vector<8x128xf32>
      %63 = arith.addf %62, %61 : vector<8x128xf32>
      %64 = arith.divf %62, %63 : vector<8x128xf32>
      %65 = vector.extract_strided_slice %50 {offsets = [0, 128], sizes = [8, 128], strides = [1, 1]} : vector<8x384xf32> to vector<8x128xf32>
      %66 = vector.extract_strided_slice %56 {offsets = [0, 128], sizes = [8, 128], strides = [1, 1]} : vector<8x384xf32> to vector<8x128xf32>
      %67 = arith.addf %65, %66 : vector<8x128xf32>
      %68 = arith.negf %67 : vector<8x128xf32>
      %69 = math.exp %68 : vector<8x128xf32>
      %cst_36 = arith.constant 1.000000e+00 : f32
      %70 = vector.broadcast %cst_36 : f32 to vector<8x128xf32>
      %71 = arith.addf %70, %69 : vector<8x128xf32>
      %72 = arith.divf %70, %71 : vector<8x128xf32>
      %73 = vector.extract_strided_slice %50 {offsets = [0, 256], sizes = [8, 128], strides = [1, 1]} : vector<8x384xf32> to vector<8x128xf32>
      %74 = vector.extract_strided_slice %56 {offsets = [0, 256], sizes = [8, 128], strides = [1, 1]} : vector<8x384xf32> to vector<8x128xf32>
      %75 = arith.mulf %64, %74 : vector<8x128xf32>
      %76 = arith.addf %73, %75 : vector<8x128xf32>
      %77 = math.tanh %76 : vector<8x128xf32>
      %cst_37 = arith.constant 1.000000e+00 : f32
      %78 = vector.broadcast %cst_37 : f32 to vector<8x128xf32>
      %79 = arith.subf %78, %72 : vector<8x128xf32>
      %80 = arith.mulf %79, %77 : vector<8x128xf32>
      %81 = arith.mulf %72, %44 : vector<8x128xf32>
      %82 = arith.addf %80, %81 : vector<8x128xf32>
      %83 = vector.shape_cast %82 : vector<8x128xf32> to vector<1x8x128xf32>
      %c0_38 = arith.constant 0 : index
      %c0_39 = arith.constant 0 : index
      %c0_40 = arith.constant 0 : index
      %84 = vector.load %arg17[%c0_38, %c0_39, %c0_40] : memref<1x8x128xf32, #tpu.memory_space<vmem>>, vector<1x8x128xf32>
      tpu.vector_store %arg17[%c0_38, %c0_39, %c0_40], %83 {strides = array<i32>} : memref<1x8x128xf32, #tpu.memory_space<vmem>>, vector<1x8x128xf32>,
      %85 = vector.shape_cast %82 : vector<8x128xf32> to vector<8x1x128xf32>
      %86 = arith.truncf %85 : vector<8x1x128xf32> to vector<8x1x128xbf16>
      %c0_41 = arith.constant 0 : index
      %c0_42 = arith.constant 0 : index
      %c0_43 = arith.constant 0 : index
      %87 = vector.load %arg5[%c0_41, %c0_42, %c0_43] : memref<8x128x128xbf16, #tpu.memory_space<vmem>>, vector<8x128x128xbf16>
      "tpu.trace_start"() <{level = 10 : i32, message = "bqh,bhl->bql"}> : () -> ()
      %cst_44 = arith.constant dense<0.000000e+00> : vector<8x1x128xf32>
      %88 = tpu.matmul %86, %87, %cst_44 {dimension_numbers = #tpu.dot_dimension_numbers<[2], [1], [1], [2], [0, 0, 0, 1, 1, 2], [0], [0]>} : vector<8x1x128xbf16>, vector<8x128x128xbf16>, vector<8x1x128xf32> -> vector<8x1x128xf32>
      "tpu.trace_stop"() : () -> ()
      %89 = vector.shape_cast %88 : vector<8x1x128xf32> to vector<8x128xf32>
      %90 = tpu.iota {dimensions = array<i32: 1>} : vector<8x128xi32>
      %c8_i32 = arith.constant 8 : i32
      %91 = vector.broadcast %c8_i32 : i32 to vector<8x128xi32>
      %92 = arith.cmpi slt, %90, %91 : vector<8x128xi32>
      %cst_45 = arith.constant -1.000000e+30 : f32
      %93 = vector.broadcast %cst_45 : f32 to vector<8x128xf32>
      %94 = arith.select %92, %89, %93 : vector<8x128xi1>, vector<8x128xf32>
      %cst_46 = arith.constant dense<0xFF800000> : vector<8xf32>
      %95 = vector.multi_reduction <maximumf>, %94, %cst_46 [1] : vector<8x128xf32> to vector<8xf32>
      %96 = vector.shape_cast %95 : vector<8xf32> to vector<8x1xf32>
      %97 = vector.broadcast %96 : vector<8x1xf32> to vector<8x128xf32>
      %98 = arith.subf %94, %97 : vector<8x128xf32>
      %99 = math.exp %98 : vector<8x128xf32>
      %cst_47 = arith.constant dense<0.000000e+00> : vector<8xf32>
      %100 = vector.multi_reduction <add>, %99, %cst_47 [1] : vector<8x128xf32> to vector<8xf32>
      %101 = vector.shape_cast %100 : vector<8xf32> to vector<8x1xf32>
      %102 = vector.broadcast %101 : vector<8x1xf32> to vector<8x128xf32>
      %103 = arith.divf %99, %102 : vector<8x128xf32>
      %104 = vector.shape_cast %103 : vector<8x128xf32> to vector<8x1x128xf32>
      %105 = arith.truncf %104 : vector<8x1x128xf32> to vector<8x1x128xbf16>
      %c0_48 = arith.constant 0 : index
      %c0_49 = arith.constant 0 : index
      %c0_50 = arith.constant 0 : index
      %106 = vector.load %arg4[%c0_48, %c0_49, %c0_50] : memref<8x128x128xbf16, #tpu.memory_space<vmem>>, vector<8x128x128xbf16>
      "tpu.trace_start"() <{level = 10 : i32, message = "bql,blh->bqh"}> : () -> ()
      %cst_51 = arith.constant dense<0.000000e+00> : vector<8x1x128xf32>
      %107 = tpu.matmul %105, %106, %cst_51 {dimension_numbers = #tpu.dot_dimension_numbers<[2], [1], [1], [2], [0, 0, 0, 1, 1, 2], [0], [0]>} : vector<8x1x128xbf16>, vector<8x128x128xbf16>, vector<8x1x128xf32> -> vector<8x1x128xf32>
      "tpu.trace_stop"() : () -> ()
      %108 = vector.shape_cast %107 : vector<8x1x128xf32> to vector<8x128xf32>
      %109 = arith.truncf %82 : vector<8x128xf32> to vector<8x128xbf16>
      %c0_52 = arith.constant 0 : index
      %c0_53 = arith.constant 0 : index
      %110 = vector.load %arg10[%c0_52, %c0_53] : memref<128x128xbf16, #tpu.memory_space<vmem>>, vector<128x128xbf16>
      %cst_54 = arith.constant dense<0.000000e+00> : vector<8x128xf32>
      %111 = tpu.matmul %109, %110, %cst_54 {dimension_numbers = #tpu.dot_dimension_numbers<[1], [0], [0], [1], [0, 0, 1, 1], [], []>} : vector<8x128xbf16>, vector<128x128xbf16>, vector<8x128xf32> -> vector<8x128xf32>
      %112 = arith.truncf %108 : vector<8x128xf32> to vector<8x128xbf16>
      %c0_55 = arith.constant 0 : index
      %c0_56 = arith.constant 0 : index
      %113 = vector.load %arg11[%c0_55, %c0_56] : memref<128x128xbf16, #tpu.memory_space<vmem>>, vector<128x128xbf16>
      %cst_57 = arith.constant dense<0.000000e+00> : vector<8x128xf32>
      %114 = tpu.matmul %112, %113, %cst_57 {dimension_numbers = #tpu.dot_dimension_numbers<[1], [0], [0], [1], [0, 0, 1, 1], [], []>} : vector<8x128xbf16>, vector<128x128xbf16>, vector<8x128xf32> -> vector<8x128xf32>
      %115 = arith.addf %111, %114 : vector<8x128xf32>
      %c0_58 = arith.constant 0 : index
      %c0_59 = arith.constant 0 : index
      %116 = vector.load %arg12[%c0_58, %c0_59] : memref<1x128xf32, #tpu.memory_space<vmem>>, vector<1x128xf32>
      %117 = vector.broadcast %116 : vector<1x128xf32> to vector<8x128xf32>
      %118 = arith.addf %115, %117 : vector<8x128xf32>
      %119 = math.tanh %118 : vector<8x128xf32>
      %c0_60 = arith.constant 0 : index
      %c0_61 = arith.constant 0 : index
      %120 = vector.load %arg18[%c0_60, %c0_61] : memref<8x128xf32, #tpu.memory_space<vmem>>, vector<8x128xf32>
      tpu.vector_store %arg18[%c0_60, %c0_61], %119 {strides = array<i32>} : memref<8x128xf32, #tpu.memory_space<vmem>>, vector<8x128xf32>,
      %cst_62 = arith.constant -1.000000e+30 : f32
      %121 = vector.broadcast %cst_62 : f32 to vector<8x1xf32>
      %c0_63 = arith.constant 0 : index
      %c0_64 = arith.constant 0 : index
      %122 = vector.load %arg19[%c0_63, %c0_64] : memref<8x1xf32, #tpu.memory_space<vmem>>, vector<8x1xf32>
      tpu.vector_store %arg19[%c0_63, %c0_64], %121 {strides = array<i32>} : memref<8x1xf32, #tpu.memory_space<vmem>>, vector<8x1xf32>,
      %cst_65 = arith.constant 0.000000e+00 : f32
      %123 = vector.broadcast %cst_65 : f32 to vector<8x1xf32>
      %c0_66 = arith.constant 0 : index
      %c0_67 = arith.constant 0 : index
      %124 = vector.load %arg20[%c0_66, %c0_67] : memref<8x1xf32, #tpu.memory_space<vmem>>, vector<8x1xf32>
      tpu.vector_store %arg20[%c0_66, %c0_67], %123 {strides = array<i32>} : memref<8x1xf32, #tpu.memory_space<vmem>>, vector<8x1xf32>,
    } else {
    }
    %c0 = arith.constant 0 : index
    %c0_1 = arith.constant 0 : index
    %3 = vector.load %arg18[%c0, %c0_1] : memref<8x128xf32, #tpu.memory_space<vmem>>, vector<8x128xf32>
    %4 = arith.truncf %3 : vector<8x128xf32> to vector<8x128xbf16>
    %c0_2 = arith.constant 0 : index
    %c0_3 = arith.constant 0 : index
    %5 = vector.load %arg13[%c0_2, %c0_3] : memref<128x128xbf16, #tpu.memory_space<vmem>>, vector<128x128xbf16>
    %cst = arith.constant dense<0.000000e+00> : vector<8x128xf32>
    %6 = tpu.matmul %4, %5, %cst {dimension_numbers = #tpu.dot_dimension_numbers<[1], [0], [0], [1], [0, 0, 1, 1], [], []>} : vector<8x128xbf16>, vector<128x128xbf16>, vector<8x128xf32> -> vector<8x128xf32>
    %c0_4 = arith.constant 0 : index
    %c0_5 = arith.constant 0 : index
    %7 = vector.load %arg14[%c0_4, %c0_5] : memref<1x128xf32, #tpu.memory_space<vmem>>, vector<1x128xf32>
    %8 = vector.broadcast %7 : vector<1x128xf32> to vector<8x128xf32>
    %9 = arith.addf %6, %8 : vector<8x128xf32>
    %c1_i32 = arith.constant 1 : i32
    %10 = arith.muli %arg0, %c1_i32 : i32
    %11 = arith.addi %10, %arg1 : i32
    %c128_i32 = arith.constant 128 : i32
    %12 = arith.muli %11, %c128_i32 : i32
    %13 = tpu.iota {dimensions = array<i32: 1>} : vector<8x128xi32>
    %14 = vector.broadcast %12 : i32 to vector<8x128xi32>
    %15 = arith.addi %14, %13 : vector<8x128xi32>
    %c48_i32 = arith.constant 48 : i32
    %16 = vector.broadcast %c48_i32 : i32 to vector<8x128xi32>
    %17 = arith.cmpi slt, %15, %16 : vector<8x128xi32>
    %cst_6 = arith.constant -1.000000e+30 : f32
    %18 = vector.broadcast %cst_6 : f32 to vector<8x128xf32>
    %19 = arith.select %17, %9, %18 : vector<8x128xi1>, vector<8x128xf32>
    %c0_7 = arith.constant 0 : index
    %c0_8 = arith.constant 0 : index
    %20 = vector.load %arg19[%c0_7, %c0_8] : memref<8x1xf32, #tpu.memory_space<vmem>>, vector<8x1xf32>
    %cst_9 = arith.constant dense<0xFF800000> : vector<8xf32>
    %21 = vector.multi_reduction <maximumf>, %19, %cst_9 [1] : vector<8x128xf32> to vector<8xf32>
    %22 = vector.shape_cast %21 : vector<8xf32> to vector<8x1xf32>
    %23 = arith.maximumf %20, %22 : vector<8x1xf32>
    %c0_10 = arith.constant 0 : index
    %c0_11 = arith.constant 0 : index
    %24 = vector.load %arg20[%c0_10, %c0_11] : memref<8x1xf32, #tpu.memory_space<vmem>>, vector<8x1xf32>
    %25 = arith.subf %20, %23 : vector<8x1xf32>
    %26 = math.exp %25 : vector<8x1xf32>
    %27 = arith.mulf %24, %26 : vector<8x1xf32>
    %28 = vector.broadcast %23 : vector<8x1xf32> to vector<8x128xf32>
    %29 = arith.subf %19, %28 : vector<8x128xf32>
    %30 = math.exp %29 : vector<8x128xf32>
    %cst_12 = arith.constant dense<0.000000e+00> : vector<8xf32>
    %31 = vector.multi_reduction <add>, %30, %cst_12 [1] : vector<8x128xf32> to vector<8xf32>
    %32 = vector.shape_cast %31 : vector<8xf32> to vector<8x1xf32>
    %33 = arith.addf %27, %32 : vector<8x1xf32>
    %c0_13 = arith.constant 0 : index
    %c0_14 = arith.constant 0 : index
    %34 = vector.load %arg20[%c0_13, %c0_14] : memref<8x1xf32, #tpu.memory_space<vmem>>, vector<8x1xf32>
    tpu.vector_store %arg20[%c0_13, %c0_14], %33 {strides = array<i32>} : memref<8x1xf32, #tpu.memory_space<vmem>>, vector<8x1xf32>,
    %c0_15 = arith.constant 0 : index
    %c0_16 = arith.constant 0 : index
    %35 = vector.load %arg19[%c0_15, %c0_16] : memref<8x1xf32, #tpu.memory_space<vmem>>, vector<8x1xf32>
    tpu.vector_store %arg19[%c0_15, %c0_16], %23 {strides = array<i32>} : memref<8x1xf32, #tpu.memory_space<vmem>>, vector<8x1xf32>,
    %c128_i32_17 = arith.constant 128 : i32
    %36 = arith.muli %arg1, %c128_i32_17 : i32
    %37 = tpu.assume_multiple %36, 128 : i32
    %c0_18 = arith.constant 0 : index
    %38 = arith.index_cast %37 : i32 to index
    %39 = vector.load %arg15[%c0_18, %38] : memref<8x128xf32, #tpu.memory_space<vmem>>, vector<8x128xf32>
    tpu.vector_store %arg15[%c0_18, %38], %19 {strides = array<i32>} : memref<8x128xf32, #tpu.memory_space<vmem>>, vector<8x128xf32>,
    %c0_i32_19 = arith.constant 0 : i32
    %40 = arith.cmpi eq, %arg1, %c0_i32_19 : i32
    %41 = arith.extui %40 : i1 to i32
    %c0_i32_20 = arith.constant 0 : i32
    %42 = arith.cmpi ne, %41, %c0_i32_20 : i32
    scf.if %42 {
      %c0_21 = arith.constant 0 : index
      %c0_22 = arith.constant 0 : index
      %43 = vector.load %arg19[%c0_21, %c0_22] : memref<8x1xf32, #tpu.memory_space<vmem>>, vector<8x1xf32>
      %c0_23 = arith.constant 0 : index
      %c0_24 = arith.constant 0 : index
      %44 = vector.load %arg20[%c0_23, %c0_24] : memref<8x1xf32, #tpu.memory_space<vmem>>, vector<8x1xf32>
      %45 = math.log %44 : vector<8x1xf32>
      %46 = arith.addf %43, %45 : vector<8x1xf32>
      %47 = vector.shape_cast %46 : vector<8x1xf32> to vector<1x8x1xf32>
      %c0_25 = arith.constant 0 : index
      %c0_26 = arith.constant 0 : index
      %c0_27 = arith.constant 0 : index
      %48 = vector.load %arg16[%c0_25, %c0_26, %c0_27] : memref<1x8x1xf32, #tpu.memory_space<vmem>>, vector<1x8x1xf32>
      tpu.vector_store %arg16[%c0_25, %c0_26, %c0_27], %47 {strides = array<i32>} : memref<1x8x1xf32, #tpu.memory_space<vmem>>, vector<1x8x1xf32>,
    } else {
    }
    return
  }
  func.func @transform_0(%arg0: i32, %arg1: i32) -> (i32, i32) {
    %c0_i32 = arith.constant 0 : i32
    %c0_i32_0 = arith.constant 0 : i32
    %c0_i32_1 = arith.constant 0 : i32
    return %c0_i32, %c0_i32_0 : i32, i32
  }
  func.func @transform_1(%arg0: i32, %arg1: i32) -> (i32, i32) {
    %c0_i32 = arith.constant 0 : i32
    %c0_i32_0 = arith.constant 0 : i32
    %c0_i32_1 = arith.constant 0 : i32
    return %c0_i32, %c0_i32_0 : i32, i32
  }
  func.func @transform_2(%arg0: i32, %arg1: i32) -> (i32, i32, i32) {
    %c0_i32 = arith.constant 0 : i32
    %c0_i32_0 = arith.constant 0 : i32
    %c0_i32_1 = arith.constant 0 : i32
    %c0_i32_2 = arith.constant 0 : i32
    return %c0_i32, %c0_i32_0, %c0_i32_1 : i32, i32, i32
  }
  func.func @transform_3(%arg0: i32, %arg1: i32) -> (i32, i32, i32) {
    %c0_i32 = arith.constant 0 : i32
    %c0_i32_0 = arith.constant 0 : i32
    %c0_i32_1 = arith.constant 0 : i32
    %c0_i32_2 = arith.constant 0 : i32
    return %c0_i32, %c0_i32_0, %c0_i32_1 : i32, i32, i32
  }
  func.func @transform_4(%arg0: i32, %arg1: i32) -> (i32, i32) {
    %c0_i32 = arith.constant 0 : i32
    %c0_i32_0 = arith.constant 0 : i32
    %c0_i32_1 = arith.constant 0 : i32
    return %c0_i32, %c0_i32_0 : i32, i32
  }
  func.func @transform_5(%arg0: i32, %arg1: i32) -> (i32, i32) {
    %c0_i32 = arith.constant 0 : i32
    %c0_i32_0 = arith.constant 0 : i32
    %c0_i32_1 = arith.constant 0 : i32
    return %c0_i32, %c0_i32_0 : i32, i32
  }
  func.func @transform_6(%arg0: i32, %arg1: i32) -> (i32, i32) {
    %c0_i32 = arith.constant 0 : i32
    %c0_i32_0 = arith.constant 0 : i32
    %c0_i32_1 = arith.constant 0 : i32
    return %c0_i32, %c0_i32_0 : i32, i32
  }
  func.func @transform_7(%arg0: i32, %arg1: i32) -> (i32, i32) {
    %c0_i32 = arith.constant 0 : i32
    %c0_i32_0 = arith.constant 0 : i32
    %c0_i32_1 = arith.constant 0 : i32
    return %c0_i32, %c0_i32_0 : i32, i32
  }
  func.func @transform_8(%arg0: i32, %arg1: i32) -> (i32, i32) {
    %c0_i32 = arith.constant 0 : i32
    %c0_i32_0 = arith.constant 0 : i32
    %c0_i32_1 = arith.constant 0 : i32
    return %c0_i32, %c0_i32_0 : i32, i32
  }
  func.func @transform_9(%arg0: i32, %arg1: i32) -> (i32, i32) {
    %c0_i32 = arith.constant 0 : i32
    %c0_i32_0 = arith.constant 0 : i32
    %c0_i32_1 = arith.constant 0 : i32
    return %c0_i32, %c0_i32_0 : i32, i32
  }
  func.func @transform_10(%arg0: i32, %arg1: i32) -> (i32, i32) {
    %c0_i32 = arith.constant 0 : i32
    %c0_i32_0 = arith.constant 0 : i32
    %c0_i32_1 = arith.constant 0 : i32
    return %c0_i32, %c0_i32_0 : i32, i32
  }
  func.func @transform_11(%arg0: i32, %arg1: i32) -> (i32, i32) {
    %c1_i32 = arith.constant 1 : i32
    %0 = arith.muli %arg0, %c1_i32 : i32
    %1 = arith.addi %0, %arg1 : i32
    %c0_i32 = arith.constant 0 : i32
    %c0_i32_0 = arith.constant 0 : i32
    return %c0_i32, %1 : i32, i32
  }
  func.func @transform_12(%arg0: i32, %arg1: i32) -> (i32, i32) {
    %c1_i32 = arith.constant 1 : i32
    %0 = arith.muli %arg0, %c1_i32 : i32
    %1 = arith.addi %0, %arg1 : i32
    %c0_i32 = arith.constant 0 : i32
    %c0_i32_0 = arith.constant 0 : i32
    return %c0_i32, %1 : i32, i32
  }
  func.func @transform_13(%arg0: i32, %arg1: i32) -> (i32, i32) {
    %c0_i32 = arith.constant 0 : i32
    %c0_i32_0 = arith.constant 0 : i32
    return %c0_i32, %arg0 : i32, i32
  }
  func.func @transform_14(%arg0: i32, %arg1: i32) -> (i32, i32, i32) {
    %c0_i32 = arith.constant 0 : i32
    %c0_i32_0 = arith.constant 0 : i32
    %c0_i32_1 = arith.constant 0 : i32
    return %arg0, %c0_i32, %c0_i32_0 : i32, i32, i32
  }
  func.func @transform_15(%arg0: i32, %arg1: i32) -> (i32, i32, i32) {
    %c0_i32 = arith.constant 0 : i32
    %c0_i32_0 = arith.constant 0 : i32
    %c0_i32_1 = arith.constant 0 : i32
    return %arg0, %c0_i32, %c0_i32_0 : i32, i32, i32
  }
}

</mosaic_0001>

<llo_original>
// kernel: tpu_custom_call.1
$region0: #{tpu_custom_call.1}
  #allocation0 [shape = 'u32[]', space=smem, size = 0x4, offset = 0x4, fixed_abs, tag = 'smem constant byte address 0x4 - core index']
  #allocation1 [shape = 'u32[144,128]{1,0:T(1,128)}', space=vmem, size = 0x12000, scoped, tag = 'internal scratch']
  #allocation2 [shape = 'f32[8,128]{1,0:T(8,128)}', space=vmem, size = 0x1000, scoped, tag = 'scratch operand']
  #allocation3 [shape = 'f32[8,1]{1,0:T(8,128)}', space=vmem, size = 0x1000, scoped, tag = 'scratch operand']
  #allocation4 [shape = 'f32[8,1]{1,0:T(8,128)}', space=vmem, size = 0x1000, scoped, tag = 'scratch operand']
  %s0 = inlined_call_operand.hbm [shape: f32[8,128], index: 0, kind: input, shape index: {}]
  %s1 = inlined_call_operand.hbm [shape: f32[8,128], index: 1, kind: input, shape index: {}]
  %s2 = inlined_call_operand.hbm [shape: bf16[8,128,128], index: 2, kind: input, shape index: {}]
  %s3 = inlined_call_operand.hbm [shape: bf16[8,128,128], index: 3, kind: input, shape index: {}]
  %s4 = inlined_call_operand.hbm [shape: bf16[128,384], index: 4, kind: input, shape index: {}]
  %s5 = inlined_call_operand.hbm [shape: bf16[128,384], index: 5, kind: input, shape index: {}]
  %s6 = inlined_call_operand.vmem [shape: f32[1,384], index: 6, kind: input, shape index: {}]
  %s7 = inlined_call_operand.vmem [shape: f32[1,384], index: 7, kind: input, shape index: {}]
  %s8 = inlined_call_operand.hbm [shape: bf16[128,128], index: 8, kind: input, shape index: {}]
  %s9 = inlined_call_operand.hbm [shape: bf16[128,128], index: 9, kind: input, shape index: {}]
  %s10 = inlined_call_operand.vmem [shape: f32[1,128], index: 10, kind: input, shape index: {}]
  %s11 = inlined_call_operand.hbm [shape: bf16[128,256], index: 11, kind: input, shape index: {}]
  %s12 = inlined_call_operand.vmem [shape: f32[1,256], index: 12, kind: input, shape index: {}]
  %s13 = inlined_call_operand.hbm [shape: f32[8,256], index: 13, kind: output, shape index: {0}]
  %s14 = inlined_call_operand.vmem [shape: f32[2,8,1], index: 14, kind: output, shape index: {1}]
  %s15 = inlined_call_operand.hbm [shape: f32[2,8,128], index: 15, kind: output, shape index: {2}]
  %16 = xla_tuple %s13, %s14, %s15
  %s17 = sld [smem:[#allocation0]]
  $region145: #{tpu_custom_call.1} parent=0
    _
  %s19 = ssub.s32 1, %s17
  %s20 = scalar_select 0, %s19, %s17
  $region1: #{tpu_custom_call.1} parent=0
    #allocation5 [shape = 'u8[4096]{0}', space=vmem, size = 0x1000, scoped, tag = 'input window, operand 0, single buffered']
    #allocation6 [shape = 's32[2]{0}', space=sflag, size = 0x8, scoped, tag = 'scoped memory for tpu_custom_call.1']
    #allocation7 [shape = 's32[2]{0}', space=sflag, size = 0x8, scoped, tag = 'scoped memory for tpu_custom_call.1']
    #allocation8 [shape = 'u8[4096]{0}', space=vmem, size = 0x1000, scoped, tag = 'input window, operand 1, single buffered']
    #allocation9 [shape = 's32[1]{0}', space=sflag, size = 0x4, scoped, tag = 'scoped memory for tpu_custom_call.1']
    #allocation10 [shape = 'u8[262144]{0}', space=vmem, size = 0x40000, scoped, tag = 'input window, operand 2, single buffered']
    #allocation11 [shape = 'u8[262144]{0}', space=vmem, size = 0x40000, scoped, tag = 'input window, operand 3, single buffered']
    #allocation12 [shape = 's32[1]{0}', space=sflag, size = 0x4, scoped, tag = 'scoped memory for tpu_custom_call.1']
    #allocation13 [shape = 'u8[98304]{0}', space=vmem, size = 0x18000, scoped, tag = 'input window, operand 4, single buffered']
    #allocation14 [shape = 'u8[98304]{0}', space=vmem, size = 0x18000, scoped, tag = 'input window, operand 5, single buffered']
    #allocation15 [shape = 's32[1]{0}', space=sflag, size = 0x4, scoped, tag = 'scoped memory for tpu_custom_call.1']
    #allocation16 [shape = 'u8[32768]{0}', space=vmem, size = 0x8000, scoped, tag = 'input window, operand 8, single buffered']
    #allocation17 [shape = 'u8[32768]{0}', space=vmem, size = 0x8000, scoped, tag = 'input window, operand 9, single buffered']
    #allocation18 [shape = 's32[1]{0}', space=sflag, size = 0x4, scoped, tag = 'scoped memory for tpu_custom_call.1']
    #allocation19 [shape = 'u8[65536]{0}', space=vmem, size = 0x10000, scoped, tag = 'input window, operand 11']
    #allocation20 [shape = 'u8[8192]{0}', space=vmem, size = 0x2000, scoped, tag = 'output window, operand 0']
    #allocation21 [shape = 'u8[8192]{0}', space=vmem, size = 0x2000, scoped, tag = 'output window, operand 2']
    #allocation22 [shape = 's32[2]{0}', space=sflag, size = 0x8, scoped, tag = 'scoped memory for tpu_custom_call.1']
    %21 = vsyncpa [#allocation6], 0
    %22 = vsyncpa [#allocation9], 0
    %23 = vsyncpa [#allocation12], 0
    %24 = vsyncpa [#allocation15], 0
    %25 = vsyncpa [#allocation18], 0
    %26 = vsyncpa [#allocation7], 0
    %s27 = scalar_lea.sflag [#allocation7], 1
    %28 = vsyncpa %s27, 0
    %29 = vsyncpa [#allocation22], 0
    %s30 = scalar_lea.sflag [#allocation22], 1
    %31 = vsyncpa %s30, 0
    loop: start=0, step=1, limit=4
    $region2: #{tpu_custom_call.1} parent=1 // loop_pre_header
      _
    $region3: #{tpu_custom_call.1} parent=1 // loop_header
      %s33 = sphi 0, %s37
      %p34 = scmp.ge.s32.totalorder %s33, 4
      %s40 = sphi 0, %s52
      %s41 = sphi 0, %s48
      %s42 = sphi 0, %s40
      %s43 = sphi 0, %s41
      %s44 = sphi 0, %s42
      %s45 = sphi 0, %s43
      %s53 = sphi 0, %s53
      %s55 = sphi 0, %s53
      %s56 = sphi 0, %s55
      %s70 = sphi 0, %s56
      %s74 = sphi 0, %s74
      %s76 = sphi 0, %s74
      %s77 = sphi 0, %s76
      %s91 = sphi 0, %s77
      %s95 = sphi 0, %s95
      %s97 = sphi 0, %s95
      %s98 = sphi 0, %s97
      %s112 = sphi 0, %s98
      %s116 = sphi 0, %s116
      %s118 = sphi 0, %s116
      %s119 = sphi 0, %s118
      %s133 = sphi 0, %s119
      %s137 = sphi 0, %s137
      %s139 = sphi 0, %s137
      %s140 = sphi 0, %s139
      %s154 = sphi 0, %s140
      %s158 = sphi 0, %s158
      %s160 = sphi 0, %s158
      %s161 = sphi 0, %s160
      %s175 = sphi 0, %s161
      %s179 = sphi 0, %s179
      %s181 = sphi 0, %s179
      %s182 = sphi 0, %s181
      %s196 = sphi 0, %s182
      %s200 = sphi 0, %s200
      %s202 = sphi 0, %s200
      %s203 = sphi 0, %s202
      %s217 = sphi 0, %s203
      %s221 = sphi 0, %s221
      %s223 = sphi 0, %s221
      %s224 = sphi 0, %s223
      %s238 = sphi 0, %s224
      %s242 = sphi 0, %s242
      %s244 = sphi 0, %s242
      %s245 = sphi 0, %s244
      %s259 = sphi 0, %s245
      %s263 = sphi 0, %s263
      %s265 = sphi 0, %s263
      %s266 = sphi 0, %s265
      %s280 = sphi 0, %s266
      %s288 = sphi 0, %s290
      %s291 = sphi 0, %s288
      %s292 = sphi 0, %s291
      %s308 = sphi 0, %s292
      %s316 = sphi 0, %s318
      %s319 = sphi 0, %s316
      %s320 = sphi 0, %s319
      %s336 = sphi 0, %s320
      %s342 = sphi 0, %s344
      %s345 = sphi 0, %s342
      %s346 = sphi 0, %s345
      %s362 = sphi 0, %s346
      %s368 = sphi 0, %s370
      %s371 = sphi 0, %s368
      %s372 = sphi 0, %s371
      %s388 = sphi 0, %s372
      %s394 = sphi 0, %s396
      %s397 = sphi 0, %s394
      %s398 = sphi 0, %s397
      %s414 = sphi 0, %s398
    $region4: #{tpu_custom_call.1} parent=1 // loop_header_branch
      %36 = sbr.rel (%p34) target = $region8
    $region5: #{tpu_custom_call.1} parent=1 // loop_body
      %s38 = ssub.s32 %s33, 1
      %s39 = ssub.s32 %s33, 2
      %s46 = sadd.s32 1, %s41
      %p47 = scmp.ge.s32.totalorder %s46, 1
      %s48 = scalar_select %p47, 0, %s46
      %s49 = sadd.s32 1, %s40
      %s50 = scalar_select %p47, %s49, %s40
      %p51 = scmp.ge.s32.totalorder %s50, 2
      %s52 = scalar_select %p51, 0, %s50
      %s54 = sadd.s32 %s53, 1
      %p57 = scmp.eq.s32.totalorder %s33, 1
      %p58 = scmp.ne.s32.totalorder %s53, %s55
      %p59 = scmp.eq.s32.totalorder %s33, 0
      %p60 = por %p58, %p59
      %p61 = scmp.ne.s32.totalorder %s53, %s55
      %p62 = scmp.eq.s32.totalorder %s38, 1
      %p63 = por %p61, %p62
      %p64 = scmp.ne.s32.totalorder %s55, %s56
      %p65 = scmp.eq.s32.totalorder %s38, 0
      %p66 = por %p64, %p65
      %p67 = scmp.ne.s32.totalorder %s55, %s56
      %p68 = scmp.eq.s32.totalorder %s39, 1
      %p69 = por %p67, %p68
      %p71 = scmp.ne.s32.totalorder %s56, %s70
      %p72 = scmp.eq.s32.totalorder %s39, 0
      %p73 = por %p71, %p72
      %s75 = sadd.s32 %s74, 1
      %p78 = scmp.eq.s32.totalorder %s33, 1
      %p79 = scmp.ne.s32.totalorder %s74, %s76
      %p80 = scmp.eq.s32.totalorder %s33, 0
      %p81 = por %p79, %p80
      %p82 = scmp.ne.s32.totalorder %s74, %s76
      %p83 = scmp.eq.s32.totalorder %s38, 1
      %p84 = por %p82, %p83
      %p85 = scmp.ne.s32.totalorder %s76, %s77
      %p86 = scmp.eq.s32.totalorder %s38, 0
      %p87 = por %p85, %p86
      %p88 = scmp.ne.s32.totalorder %s76, %s77
      %p89 = scmp.eq.s32.totalorder %s39, 1
      %p90 = por %p88, %p89
      %p92 = scmp.ne.s32.totalorder %s77, %s91
      %p93 = scmp.eq.s32.totalorder %s39, 0
      %p94 = por %p92, %p93
      %s96 = sadd.s32 %s95, 1
      %p99 = scmp.eq.s32.totalorder %s33, 1
      %p100 = scmp.ne.s32.totalorder %s95, %s97
      %p101 = scmp.eq.s32.totalorder %s33, 0
      %p102 = por %p100, %p101
      %p103 = scmp.ne.s32.totalorder %s95, %s97
      %p104 = scmp.eq.s32.totalorder %s38, 1
      %p105 = por %p103, %p104
      %p106 = scmp.ne.s32.totalorder %s97, %s98
      %p107 = scmp.eq.s32.totalorder %s38, 0
      %p108 = por %p106, %p107
      %p109 = scmp.ne.s32.totalorder %s97, %s98
      %p110 = scmp.eq.s32.totalorder %s39, 1
      %p111 = por %p109, %p110
      %p113 = scmp.ne.s32.totalorder %s98, %s112
      %p114 = scmp.eq.s32.totalorder %s39, 0
      %p115 = por %p113, %p114
      %s117 = sadd.s32 %s116, 1
      %p120 = scmp.eq.s32.totalorder %s33, 1
      %p121 = scmp.ne.s32.totalorder %s116, %s118
      %p122 = scmp.eq.s32.totalorder %s33, 0
      %p123 = por %p121, %p122
      %p124 = scmp.ne.s32.totalorder %s116, %s118
      %p125 = scmp.eq.s32.totalorder %s38, 1
      %p126 = por %p124, %p125
      %p127 = scmp.ne.s32.totalorder %s118, %s119
      %p128 = scmp.eq.s32.totalorder %s38, 0
      %p129 = por %p127, %p128
      %p130 = scmp.ne.s32.totalorder %s118, %s119
      %p131 = scmp.eq.s32.totalorder %s39, 1
      %p132 = por %p130, %p131
      %p134 = scmp.ne.s32.totalorder %s119, %s133
      %p135 = scmp.eq.s32.totalorder %s39, 0
      %p136 = por %p134, %p135
      %s138 = sadd.s32 %s137, 1
      %p141 = scmp.eq.s32.totalorder %s33, 1
      %p142 = scmp.ne.s32.totalorder %s137, %s139
      %p143 = scmp.eq.s32.totalorder %s33, 0
      %p144 = por %p142, %p143
      %p145 = scmp.ne.s32.totalorder %s137, %s139
      %p146 = scmp.eq.s32.totalorder %s38, 1
      %p147 = por %p145, %p146
      %p148 = scmp.ne.s32.totalorder %s139, %s140
      %p149 = scmp.eq.s32.totalorder %s38, 0
      %p150 = por %p148, %p149
      %p151 = scmp.ne.s32.totalorder %s139, %s140
      %p152 = scmp.eq.s32.totalorder %s39, 1
      %p153 = por %p151, %p152
      %p155 = scmp.ne.s32.totalorder %s140, %s154
      %p156 = scmp.eq.s32.totalorder %s39, 0
      %p157 = por %p155, %p156
      %s159 = sadd.s32 %s158, 1
      %p162 = scmp.eq.s32.totalorder %s33, 1
      %p163 = scmp.ne.s32.totalorder %s158, %s160
      %p164 = scmp.eq.s32.totalorder %s33, 0
      %p165 = por %p163, %p164
      %p166 = scmp.ne.s32.totalorder %s158, %s160
      %p167 = scmp.eq.s32.totalorder %s38, 1
      %p168 = por %p166, %p167
      %p169 = scmp.ne.s32.totalorder %s160, %s161
      %p170 = scmp.eq.s32.totalorder %s38, 0
      %p171 = por %p169, %p170
      %p172 = scmp.ne.s32.totalorder %s160, %s161
      %p173 = scmp.eq.s32.totalorder %s39, 1
      %p174 = por %p172, %p173
      %p176 = scmp.ne.s32.totalorder %s161, %s175
      %p177 = scmp.eq.s32.totalorder %s39, 0
      %p178 = por %p176, %p177
      %s180 = sadd.s32 %s179, 1
      %p183 = scmp.eq.s32.totalorder %s33, 1
      %p184 = scmp.ne.s32.totalorder %s179, %s181
      %p185 = scmp.eq.s32.totalorder %s33, 0
      %p186 = por %p184, %p185
      %p187 = scmp.ne.s32.totalorder %s179, %s181
      %p188 = scmp.eq.s32.totalorder %s38, 1
      %p189 = por %p187, %p188
      %p190 = scmp.ne.s32.totalorder %s181, %s182
      %p191 = scmp.eq.s32.totalorder %s38, 0
      %p192 = por %p190, %p191
      %p193 = scmp.ne.s32.totalorder %s181, %s182
      %p194 = scmp.eq.s32.totalorder %s39, 1
      %p195 = por %p193, %p194
      %p197 = scmp.ne.s32.totalorder %s182, %s196
      %p198 = scmp.eq.s32.totalorder %s39, 0
      %p199 = por %p197, %p198
      %s201 = sadd.s32 %s200, 1
      %p204 = scmp.eq.s32.totalorder %s33, 1
      %p205 = scmp.ne.s32.totalorder %s200, %s202
      %p206 = scmp.eq.s32.totalorder %s33, 0
      %p207 = por %p205, %p206
      %p208 = scmp.ne.s32.totalorder %s200, %s202
      %p209 = scmp.eq.s32.totalorder %s38, 1
      %p210 = por %p208, %p209
      %p211 = scmp.ne.s32.totalorder %s202, %s203
      %p212 = scmp.eq.s32.totalorder %s38, 0
      %p213 = por %p211, %p212
      %p214 = scmp.ne.s32.totalorder %s202, %s203
      %p215 = scmp.eq.s32.totalorder %s39, 1
      %p216 = por %p214, %p215
      %p218 = scmp.ne.s32.totalorder %s203, %s217
      %p219 = scmp.eq.s32.totalorder %s39, 0
      %p220 = por %p218, %p219
      %s222 = sadd.s32 %s221, 1
      %p225 = scmp.eq.s32.totalorder %s33, 1
      %p226 = scmp.ne.s32.totalorder %s221, %s223
      %p227 = scmp.eq.s32.totalorder %s33, 0
      %p228 = por %p226, %p227
      %p229 = scmp.ne.s32.totalorder %s221, %s223
      %p230 = scmp.eq.s32.totalorder %s38, 1
      %p231 = por %p229, %p230
      %p232 = scmp.ne.s32.totalorder %s223, %s224
      %p233 = scmp.eq.s32.totalorder %s38, 0
      %p234 = por %p232, %p233
      %p235 = scmp.ne.s32.totalorder %s223, %s224
      %p236 = scmp.eq.s32.totalorder %s39, 1
      %p237 = por %p235, %p236
      %p239 = scmp.ne.s32.totalorder %s224, %s238
      %p240 = scmp.eq.s32.totalorder %s39, 0
      %p241 = por %p239, %p240
      %s243 = sadd.s32 %s242, 1
      %p246 = scmp.eq.s32.totalorder %s33, 1
      %p247 = scmp.ne.s32.totalorder %s242, %s244
      %p248 = scmp.eq.s32.totalorder %s33, 0
      %p249 = por %p247, %p248
      %p250 = scmp.ne.s32.totalorder %s242, %s244
      %p251 = scmp.eq.s32.totalorder %s38, 1
      %p252 = por %p250, %p251
      %p253 = scmp.ne.s32.totalorder %s244, %s245
      %p254 = scmp.eq.s32.totalorder %s38, 0
      %p255 = por %p253, %p254
      %p256 = scmp.ne.s32.totalorder %s244, %s245
      %p257 = scmp.eq.s32.totalorder %s39, 1
      %p258 = por %p256, %p257
      %p260 = scmp.ne.s32.totalorder %s245, %s259
      %p261 = scmp.eq.s32.totalorder %s39, 0
      %p262 = por %p260, %p261
      %s264 = sadd.s32 %s263, 1
      %p267 = scmp.eq.s32.totalorder %s33, 1
      %p268 = scmp.ne.s32.totalorder %s263, %s265
      %p269 = scmp.eq.s32.totalorder %s33, 0
      %p270 = por %p268, %p269
      %p271 = scmp.ne.s32.totalorder %s263, %s265
      %p272 = scmp.eq.s32.totalorder %s38, 1
      %p273 = por %p271, %p272
      %p274 = scmp.ne.s32.totalorder %s265, %s266
      %p275 = scmp.eq.s32.totalorder %s38, 0
      %p276 = por %p274, %p275
      %p277 = scmp.ne.s32.totalorder %s265, %s266
      %p278 = scmp.eq.s32.totalorder %s39, 1
      %p279 = por %p277, %p278
      %p281 = scmp.ne.s32.totalorder %s266, %s280
      %p282 = scmp.eq.s32.totalorder %s39, 0
      %p283 = por %p281, %p282
      %s284 = sadd.s32 %s40, %s41
      %s285 = sadd.s32 %s52, %s48
      %s286 = ssub.s32 %s284, %s285
      %p287 = scmp.eq.s32.totalorder %s286, 0
      %s289 = sadd.s32 %s288, 1
      %s290 = scalar_select %p287, %s288, %s289
      %p293 = pneg %p287
      %p294 = scmp.eq.s32.totalorder %s33, 1
      %p295 = por %p293, %p294
      %p296 = scmp.ne.s32.totalorder %s288, %s291
      %p297 = scmp.eq.s32.totalorder %s33, 0
      %p298 = por %p296, %p297
      %p299 = scmp.ne.s32.totalorder %s288, %s291
      %p300 = scmp.eq.s32.totalorder %s38, 1
      %p301 = por %p299, %p300
      %p302 = scmp.ne.s32.totalorder %s291, %s292
      %p303 = scmp.eq.s32.totalorder %s38, 0
      %p304 = por %p302, %p303
      %p305 = scmp.ne.s32.totalorder %s291, %s292
      %p306 = scmp.eq.s32.totalorder %s39, 1
      %p307 = por %p305, %p306
      %p309 = scmp.ne.s32.totalorder %s292, %s308
      %p310 = scmp.eq.s32.totalorder %s39, 0
      %p311 = por %p309, %p310
      %s312 = sadd.s32 %s40, %s41
      %s313 = sadd.s32 %s52, %s48
      %s314 = ssub.s32 %s312, %s313
      %p315 = scmp.eq.s32.totalorder %s314, 0
      %s317 = sadd.s32 %s316, 1
      %s318 = scalar_select %p315, %s316, %s317
      %p321 = pneg %p315
      %p322 = scmp.eq.s32.totalorder %s33, 1
      %p323 = por %p321, %p322
      %p324 = scmp.ne.s32.totalorder %s316, %s319
      %p325 = scmp.eq.s32.totalorder %s33, 0
      %p326 = por %p324, %p325
      %p327 = scmp.ne.s32.totalorder %s316, %s319
      %p328 = scmp.eq.s32.totalorder %s38, 1
      %p329 = por %p327, %p328
      %p330 = scmp.ne.s32.totalorder %s319, %s320
      %p331 = scmp.eq.s32.totalorder %s38, 0
      %p332 = por %p330, %p331
      %p333 = scmp.ne.s32.totalorder %s319, %s320
      %p334 = scmp.eq.s32.totalorder %s39, 1
      %p335 = por %p333, %p334
      %p337 = scmp.ne.s32.totalorder %s320, %s336
      %p338 = scmp.eq.s32.totalorder %s39, 0
      %p339 = por %p337, %p338
      %s340 = ssub.s32 %s40, %s52
      %p341 = scmp.eq.s32.totalorder %s340, 0
      %s343 = sadd.s32 %s342, 1
      %s344 = scalar_select %p341, %s342, %s343
      %p347 = pneg %p341
      %p348 = scmp.eq.s32.totalorder %s33, 1
      %p349 = por %p347, %p348
      %p350 = scmp.ne.s32.totalorder %s342, %s345
      %p351 = scmp.eq.s32.totalorder %s33, 0
      %p352 = por %p350, %p351
      %p353 = scmp.ne.s32.totalorder %s342, %s345
      %p354 = scmp.eq.s32.totalorder %s38, 1
      %p355 = por %p353, %p354
      %p356 = scmp.ne.s32.totalorder %s345, %s346
      %p357 = scmp.eq.s32.totalorder %s38, 0
      %p358 = por %p356, %p357
      %p359 = scmp.ne.s32.totalorder %s345, %s346
      %p360 = scmp.eq.s32.totalorder %s39, 1
      %p361 = por %p359, %p360
      %p363 = scmp.ne.s32.totalorder %s346, %s362
      %p364 = scmp.eq.s32.totalorder %s39, 0
      %p365 = por %p363, %p364
      %s366 = ssub.s32 %s40, %s52
      %p367 = scmp.eq.s32.totalorder %s366, 0
      %s369 = sadd.s32 %s368, 1
      %s370 = scalar_select %p367, %s368, %s369
      %p373 = pneg %p367
      %p374 = scmp.eq.s32.totalorder %s33, 1
      %p375 = por %p373, %p374
      %p376 = scmp.ne.s32.totalorder %s368, %s371
      %p377 = scmp.eq.s32.totalorder %s33, 0
      %p378 = por %p376, %p377
      %p379 = scmp.ne.s32.totalorder %s368, %s371
      %p380 = scmp.eq.s32.totalorder %s38, 1
      %p381 = por %p379, %p380
      %p382 = scmp.ne.s32.totalorder %s371, %s372
      %p383 = scmp.eq.s32.totalorder %s38, 0
      %p384 = por %p382, %p383
      %p385 = scmp.ne.s32.totalorder %s371, %s372
      %p386 = scmp.eq.s32.totalorder %s39, 1
      %p387 = por %p385, %p386
      %p389 = scmp.ne.s32.totalorder %s372, %s388
      %p390 = scmp.eq.s32.totalorder %s39, 0
      %p391 = por %p389, %p390
      %s392 = ssub.s32 %s40, %s52
      %p393 = scmp.eq.s32.totalorder %s392, 0
      %s395 = sadd.s32 %s394, 1
      %s396 = scalar_select %p393, %s394, %s395
      %p399 = pneg %p393
      %p400 = scmp.eq.s32.totalorder %s33, 1
      %p401 = por %p399, %p400
      %p402 = scmp.ne.s32.totalorder %s394, %s397
      %p403 = scmp.eq.s32.totalorder %s33, 0
      %p404 = por %p402, %p403
      %p405 = scmp.ne.s32.totalorder %s394, %s397
      %p406 = scmp.eq.s32.totalorder %s38, 1
      %p407 = por %p405, %p406
      %p408 = scmp.ne.s32.totalorder %s397, %s398
      %p409 = scmp.eq.s32.totalorder %s38, 0
      %p410 = por %p408, %p409
      %p411 = scmp.ne.s32.totalorder %s397, %s398
      %p412 = scmp.eq.s32.totalorder %s39, 1
      %p413 = por %p411, %p412
      %p415 = scmp.ne.s32.totalorder %s398, %s414
      %p416 = scmp.eq.s32.totalorder %s39, 0
      %p417 = por %p415, %p416
      %p418 = scmp.le.s32.totalorder 1, %s33
      %p419 = scmp.lt.s32.totalorder %s33, 3
      %p420 = pnand %p418, %p419
      %p421 = pneg %p420
      // Predicated region
      $region9: #{tpu_custom_call.1} parent=5 // pred_check
        _
      $region10: #{tpu_custom_call.1} parent=5 // pred_check_branch
        %423 = sbr.rel (%p420) target = $region12
      $region11: #{tpu_custom_call.1} parent=5 // pred_region
        %s424 = ssub.s32 %s33, 1
        // Predicated region
        $region13: #{tpu_custom_call.1} parent=11 // pred_check
          %p425 = pneg %p66
        $region14: #{tpu_custom_call.1} parent=11 // pred_check_branch
          %427 = sbr.rel (%p425) target = $region16
        $region15: #{tpu_custom_call.1} parent=11 // pred_region
          %s429 = ssub.s32 128, 128
          %430 = vsyncadd [#allocation6], %s429
          %s432 = sshll.u32 [#allocation5], 4
          %s433 = int_to_ptr.vmem [resolvable:$true] %s432
          %435 = dma.hbm_to_vmem [thread:$0]  %s0, 128, %s433, [#allocation6]
        $region16: #{tpu_custom_call.1} parent=11 // pred_fallthru
          _
        // Predicated region
        $region17: #{tpu_custom_call.1} parent=11 // pred_check
          %p436 = pneg %p87
        $region18: #{tpu_custom_call.1} parent=11 // pred_check_branch
          %438 = sbr.rel (%p436) target = $region20
        $region19: #{tpu_custom_call.1} parent=11 // pred_region
          %s440 = ssub.s32 128, 128
          %441 = vsyncadd [#allocation9], %s440
          %s443 = sshll.u32 [#allocation8], 4
          %s444 = int_to_ptr.vmem [resolvable:$true] %s443
          %446 = dma.hbm_to_vmem [thread:$0]  %s1, 128, %s444, [#allocation9]
        $region20: #{tpu_custom_call.1} parent=11 // pred_fallthru
          _
        // Predicated region
        $region21: #{tpu_custom_call.1} parent=11 // pred_check
          %p447 = pneg %p108
        $region22: #{tpu_custom_call.1} parent=11 // pred_check_branch
          %449 = sbr.rel (%p447) target = $region24
        $region23: #{tpu_custom_call.1} parent=11 // pred_region
          %s451 = ssub.s32 8192, 8192
          %452 = vsyncadd [#allocation9], %s451
          %s453 = sshll.u32 [#allocation10], 4
          %s454 = int_to_ptr.vmem [resolvable:$true] %s453
          %459 = dma.hbm_to_vmem [thread:$0]  %s2, 8192, %s454, [#allocation9], 64, 64, 4
        $region24: #{tpu_custom_call.1} parent=11 // pred_fallthru
          _
        // Predicated region
        $region25: #{tpu_custom_call.1} parent=11 // pred_check
          %p460 = pneg %p129
        $region26: #{tpu_custom_call.1} parent=11 // pred_check_branch
          %462 = sbr.rel (%p460) target = $region28
        $region27: #{tpu_custom_call.1} parent=11 // pred_region
          %s464 = ssub.s32 8192, 8192
          %465 = vsyncadd [#allocation12], %s464
          %s466 = sshll.u32 [#allocation11], 4
          %s467 = int_to_ptr.vmem [resolvable:$true] %s466
          %472 = dma.hbm_to_vmem [thread:$0]  %s3, 8192, %s467, [#allocation12], 64, 64, 4
        $region28: #{tpu_custom_call.1} parent=11 // pred_fallthru
          _
        // Predicated region
        $region29: #{tpu_custom_call.1} parent=11 // pred_check
          %p473 = pneg %p150
        $region30: #{tpu_custom_call.1} parent=11 // pred_check_branch
          %475 = sbr.rel (%p473) target = $region32
        $region31: #{tpu_custom_call.1} parent=11 // pred_region
          %s477 = ssub.s32 3072, 3072
          %478 = vsyncadd [#allocation12], %s477
          %s479 = sshll.u32 [#allocation13], 4
          %s480 = int_to_ptr.vmem [resolvable:$true] %s479
          %485 = dma.hbm_to_vmem [thread:$0]  %s4, 3072, %s480, [#allocation12], 192, 192, 12
        $region32: #{tpu_custom_call.1} parent=11 // pred_fallthru
          _
        // Predicated region
        $region33: #{tpu_custom_call.1} parent=11 // pred_check
          %p486 = pneg %p171
        $region34: #{tpu_custom_call.1} parent=11 // pred_check_branch
          %488 = sbr.rel (%p486) target = $region36
        $region35: #{tpu_custom_call.1} parent=11 // pred_region
          %s490 = ssub.s32 3072, 3072
          %491 = vsyncadd [#allocation15], %s490
          %s492 = sshll.u32 [#allocation14], 4
          %s493 = int_to_ptr.vmem [resolvable:$true] %s492
          %498 = dma.hbm_to_vmem [thread:$0]  %s5, 3072, %s493, [#allocation15], 192, 192, 12
        $region36: #{tpu_custom_call.1} parent=11 // pred_fallthru
          _
        // Predicated region
        $region37: #{tpu_custom_call.1} parent=11 // pred_check
          %p499 = pneg %p192
        $region38: #{tpu_custom_call.1} parent=11 // pred_check_branch
          %501 = sbr.rel (%p499) target = $region40
        $region39: #{tpu_custom_call.1} parent=11 // pred_region
          _
        $region40: #{tpu_custom_call.1} parent=11 // pred_fallthru
          _
        // Predicated region
        $region41: #{tpu_custom_call.1} parent=11 // pred_check
          %p502 = pneg %p213
        $region42: #{tpu_custom_call.1} parent=11 // pred_check_branch
          %504 = sbr.rel (%p502) target = $region44
        $region43: #{tpu_custom_call.1} parent=11 // pred_region
          _
        $region44: #{tpu_custom_call.1} parent=11 // pred_fallthru
          _
        // Predicated region
        $region45: #{tpu_custom_call.1} parent=11 // pred_check
          %p505 = pneg %p234
        $region46: #{tpu_custom_call.1} parent=11 // pred_check_branch
          %507 = sbr.rel (%p505) target = $region48
        $region47: #{tpu_custom_call.1} parent=11 // pred_region
          %s509 = ssub.s32 1024, 1024
          %510 = vsyncadd [#allocation15], %s509
          %s511 = sshll.u32 [#allocation16], 4
          %s512 = int_to_ptr.vmem [resolvable:$true] %s511
          %517 = dma.hbm_to_vmem [thread:$0]  %s8, 1024, %s512, [#allocation15], 64, 64, 4
        $region48: #{tpu_custom_call.1} parent=11 // pred_fallthru
          _
        // Predicated region
        $region49: #{tpu_custom_call.1} parent=11 // pred_check
          %p518 = pneg %p255
        $region50: #{tpu_custom_call.1} parent=11 // pred_check_branch
          %520 = sbr.rel (%p518) target = $region52
        $region51: #{tpu_custom_call.1} parent=11 // pred_region
          %s522 = ssub.s32 1024, 1024
          %523 = vsyncadd [#allocation18], %s522
          %s524 = sshll.u32 [#allocation17], 4
          %s525 = int_to_ptr.vmem [resolvable:$true] %s524
          %530 = dma.hbm_to_vmem [thread:$0]  %s9, 1024, %s525, [#allocation18], 64, 64, 4
        $region52: #{tpu_custom_call.1} parent=11 // pred_fallthru
          _
        // Predicated region
        $region53: #{tpu_custom_call.1} parent=11 // pred_check
          %p531 = pneg %p276
        $region54: #{tpu_custom_call.1} parent=11 // pred_check_branch
          %533 = sbr.rel (%p531) target = $region56
        $region55: #{tpu_custom_call.1} parent=11 // pred_region
          _
        $region56: #{tpu_custom_call.1} parent=11 // pred_fallthru
          _
      $region12: #{tpu_custom_call.1} parent=5 // pred_fallthru
        _
      %p534 = scmp.lt.s32.totalorder %s33, 2
      // Predicated region
      $region57: #{tpu_custom_call.1} parent=5 // pred_check
        %p535 = pneg %p534
      $region58: #{tpu_custom_call.1} parent=5 // pred_check_branch
        %537 = sbr.rel (%p535) target = $region60
      $region59: #{tpu_custom_call.1} parent=5 // pred_region
        // Predicated region
        $region61: #{tpu_custom_call.1} parent=59 // pred_check
          %p538 = pneg %p298
        $region62: #{tpu_custom_call.1} parent=59 // pred_check_branch
          %540 = sbr.rel (%p538) target = $region64
        $region63: #{tpu_custom_call.1} parent=59 // pred_region
          %s541 = sand.u32 %s33, 1
          %s542 = scalar_lea.sflag [#allocation6], %s541
          %s543 = sand.u32 %s288, 1
          %s544 = smul.addr %s543, 64
          %s545 = scalar_lea.vmem [#allocation19], %s544
          %s546 = sadd.s32 %s40, %s41
          %s548 = ssub.s32 1024, 1024
          %549 = vsyncadd %s542, %s548
          %s550 = smul.addr %s546, 64
          %s551 = scalar_lea.hbm %s11, %s550
          %s552 = sshll.u32 %s545, 4
          %s553 = int_to_ptr.vmem [resolvable:$true] %s552
          %558 = dma.hbm_to_vmem [thread:$0]  %s551, 1024, %s553, %s542, 128, 64, 4
        $region64: #{tpu_custom_call.1} parent=59 // pred_fallthru
          _
        // Predicated region
        $region65: #{tpu_custom_call.1} parent=59 // pred_check
          %p559 = pneg %p326
        $region66: #{tpu_custom_call.1} parent=59 // pred_check_branch
          %561 = sbr.rel (%p559) target = $region68
        $region67: #{tpu_custom_call.1} parent=59 // pred_region
          %s562 = sadd.s32 %s40, %s41
          %p563 = scmp.lt.s32.totalorder %s562, 1
          %s564 = scalar_select %p563, %s562, 1
          %s565 = scalar_lea.vmem %s12, %s564
          %s566 = sadd.s32 %s40, %s41
        $region68: #{tpu_custom_call.1} parent=59 // pred_fallthru
          _
      $region60: #{tpu_custom_call.1} parent=5 // pred_fallthru
        _
      %p567 = scmp.le.s32.totalorder 1, %s33
      %p568 = scmp.lt.s32.totalorder %s33, 3
      %p569 = pnand %p567, %p568
      %p570 = pneg %p569
      // Predicated region
      $region69: #{tpu_custom_call.1} parent=5 // pred_check
        _
      $region70: #{tpu_custom_call.1} parent=5 // pred_check_branch
        %572 = sbr.rel (%p569) target = $region72
      $region71: #{tpu_custom_call.1} parent=5 // pred_region
        %s573 = ssub.s32 %s33, 1
        // Predicated region
        $region73: #{tpu_custom_call.1} parent=71 // pred_check
          %p574 = pneg %p66
        $region74: #{tpu_custom_call.1} parent=71 // pred_check_branch
          %576 = sbr.rel (%p574) target = $region76
        $region75: #{tpu_custom_call.1} parent=71 // pred_region
          %577 = dma.done [#allocation6], 128
        $region76: #{tpu_custom_call.1} parent=71 // pred_fallthru
          _
        // Predicated region
        $region77: #{tpu_custom_call.1} parent=71 // pred_check
          %p578 = pneg %p87
        $region78: #{tpu_custom_call.1} parent=71 // pred_check_branch
          %580 = sbr.rel (%p578) target = $region80
        $region79: #{tpu_custom_call.1} parent=71 // pred_region
          %581 = dma.done [#allocation9], 128
        $region80: #{tpu_custom_call.1} parent=71 // pred_fallthru
          _
        // Predicated region
        $region81: #{tpu_custom_call.1} parent=71 // pred_check
          %p582 = pneg %p108
        $region82: #{tpu_custom_call.1} parent=71 // pred_check_branch
          %584 = sbr.rel (%p582) target = $region84
        $region83: #{tpu_custom_call.1} parent=71 // pred_region
          %585 = dma.done [#allocation9], 8192
        $region84: #{tpu_custom_call.1} parent=71 // pred_fallthru
          _
        // Predicated region
        $region85: #{tpu_custom_call.1} parent=71 // pred_check
          %p586 = pneg %p129
        $region86: #{tpu_custom_call.1} parent=71 // pred_check_branch
          %588 = sbr.rel (%p586) target = $region88
        $region87: #{tpu_custom_call.1} parent=71 // pred_region
          %589 = dma.done [#allocation12], 8192
        $region88: #{tpu_custom_call.1} parent=71 // pred_fallthru
          _
        // Predicated region
        $region89: #{tpu_custom_call.1} parent=71 // pred_check
          %p590 = pneg %p150
        $region90: #{tpu_custom_call.1} parent=71 // pred_check_branch
          %592 = sbr.rel (%p590) target = $region92
        $region91: #{tpu_custom_call.1} parent=71 // pred_region
          %593 = dma.done [#allocation12], 3072
        $region92: #{tpu_custom_call.1} parent=71 // pred_fallthru
          _
        // Predicated region
        $region93: #{tpu_custom_call.1} parent=71 // pred_check
          %p594 = pneg %p171
        $region94: #{tpu_custom_call.1} parent=71 // pred_check_branch
          %596 = sbr.rel (%p594) target = $region96
        $region95: #{tpu_custom_call.1} parent=71 // pred_region
          %597 = dma.done [#allocation15], 3072
        $region96: #{tpu_custom_call.1} parent=71 // pred_fallthru
          _
        // Predicated region
        $region97: #{tpu_custom_call.1} parent=71 // pred_check
          %p598 = pneg %p234
        $region98: #{tpu_custom_call.1} parent=71 // pred_check_branch
          %600 = sbr.rel (%p598) target = $region100
        $region99: #{tpu_custom_call.1} parent=71 // pred_region
          %601 = dma.done [#allocation15], 1024
        $region100: #{tpu_custom_call.1} parent=71 // pred_fallthru
          _
        // Predicated region
        $region101: #{tpu_custom_call.1} parent=71 // pred_check
          %p602 = pneg %p255
        $region102: #{tpu_custom_call.1} parent=71 // pred_check_branch
          %604 = sbr.rel (%p602) target = $region104
        $region103: #{tpu_custom_call.1} parent=71 // pred_region
          %605 = dma.done [#allocation18], 1024
        $region104: #{tpu_custom_call.1} parent=71 // pred_fallthru
          _
        %s606 = sand.u32 %s38, 1
        %s607 = scalar_lea.sflag [#allocation6], %s606
        %s608 = sand.u32 %s291, 1
        %s609 = smul.addr %s608, 64
        %s610 = scalar_lea.vmem [#allocation19], %s609
        // Predicated region
        $region105: #{tpu_custom_call.1} parent=71 // pred_check
          %p611 = pneg %p304
        $region106: #{tpu_custom_call.1} parent=71 // pred_check_branch
          %613 = sbr.rel (%p611) target = $region108
        $region107: #{tpu_custom_call.1} parent=71 // pred_region
          %614 = dma.done %s607, 1024
        $region108: #{tpu_custom_call.1} parent=71 // pred_fallthru
          _
        %p615 = pneg %p66
        %p616 = pneg %p63
        %p617 = pneg %p87
        %p618 = pneg %p84
        %p619 = pneg %p108
        %p620 = pneg %p105
        %p621 = pneg %p129
        %p622 = pneg %p126
        %p623 = pneg %p150
        %p624 = pneg %p147
        %p625 = pneg %p171
        %p626 = pneg %p168
        %p627 = pneg %p192
        %p628 = pneg %p189
        %p629 = pneg %p213
        %p630 = pneg %p210
        %p631 = pneg %p234
        %p632 = pneg %p231
        %p633 = pneg %p255
        %p634 = pneg %p252
        %p635 = pneg %p276
        %p636 = pneg %p273
        %s637 = sand.u32 %s38, 1
        %s638 = scalar_lea.sflag [#allocation6], %s637
        %s639 = sand.u32 %s291, 1
        %s640 = smul.addr %s639, 64
        %s641 = scalar_lea.vmem [#allocation19], %s640
        %p642 = pneg %p304
        %p643 = pneg %p301
        %s644 = sadd.s32 %s42, %s43
        %p645 = scmp.lt.s32.totalorder %s644, 1
        %s646 = scalar_select %p645, %s644, 1
        %s647 = scalar_lea.vmem %s12, %s646
        %p648 = pneg %p332
        %p649 = pneg %p329
        %p650 = pneg %p358
        %p651 = pneg %p355
        %s652 = sand.u32 %s345, 1
        %s653 = scalar_lea.sflag [#allocation7], %s652
        %s654 = sand.u32 %s345, 1
        %s655 = smul.addr %s654, 8
        %s656 = scalar_lea.vmem [#allocation20], %s655
        %p657 = pneg %p384
        %p658 = pneg %p381
        %p659 = scmp.lt.s32.totalorder %s42, 1
        %s660 = scalar_select %p659, %s42, 1
        %s661 = smul.addr %s660, 8
        %s662 = scalar_lea.vmem %s14, %s661
        %p663 = pneg %p410
        %p664 = pneg %p407
        %s665 = sand.u32 %s397, 1
        %s666 = scalar_lea.sflag [#allocation22], %s665
        %s667 = sand.u32 %s397, 1
        %s668 = smul.addr %s667, 8
        %s669 = scalar_lea.vmem [#allocation21], %s668
        %s670 = sadd.s32 %s42, %s43
        %s671 = sadd.s32 %s42, %s43
        %p672 = scmp.lt.s32.totalorder %s671, 1
        %s673 = scalar_select %p672, %s671, 1
        %s674 = scalar_lea.vmem %s12, %s673
        %s675 = sadd.s32 %s42, %s43
        %p676 = scmp.lt.s32.totalorder %s42, 1
        %s677 = scalar_select %p676, %s42, 1
        %s678 = smul.addr %s677, 8
        %s679 = scalar_lea.vmem %s14, %s678
        %p681 = scmp.eq.s32.totalorder %s43, 0
        // Predicated region
        $region109: #{tpu_custom_call.1} parent=71 // pred_check
          %p682 = pneg %p681
        $region110: #{tpu_custom_call.1} parent=71 // pred_check_branch
          %684 = sbr.rel (%p682) target = $region112
        $region111: #{tpu_custom_call.1} parent=71 // pred_region
          %v685 = vld [vmem:[#allocation5] sm:$0xff]
          %v686 = vld [vmem:[#allocation8] sm:$0xff]
          %v687 = vpack.c.bf16 %v685, %v685
          %v688 = vld [vmem:[#allocation13] sm:$0xff]
          %v689 = vld [vmem:[#allocation13 + $0x8] sm:$0xf]
          %v690 = vld [vmem:[#allocation13 + $0xc] sm:$0xff]
          %v691 = vld [vmem:[#allocation13 + $0x14] sm:$0xf]
          %v692 = vld [vmem:[#allocation13 + $0x18] sm:$0xff]
          %v693 = vld [vmem:[#allocation13 + $0x20] sm:$0xf]
          %v694 = vld [vmem:[#allocation13 + $0x24] sm:$0xff]
          %v695 = vld [vmem:[#allocation13 + $0x2c] sm:$0xf]
          %v696 = vld [vmem:[#allocation13 + $0x30] sm:$0xff]
          %v697 = vld [vmem:[#allocation13 + $0x38] sm:$0xf]
          %v698 = vld [vmem:[#allocation13 + $0x3c] sm:$0xff]
          %v699 = vld [vmem:[#allocation13 + $0x44] sm:$0xf]
          %v700 = vld [vmem:[#allocation13 + $0x48] sm:$0xff]
          %v701 = vld [vmem:[#allocation13 + $0x50] sm:$0xf]
          %v702 = vld [vmem:[#allocation13 + $0x54] sm:$0xff]
          %v703 = vld [vmem:[#allocation13 + $0x5c] sm:$0xf]
          %v704 = vld [vmem:[#allocation13 + $0x60] sm:$0xff]
          %v705 = vld [vmem:[#allocation13 + $0x68] sm:$0xf]
          %v706 = vld [vmem:[#allocation13 + $0x6c] sm:$0xff]
          %v707 = vld [vmem:[#allocation13 + $0x74] sm:$0xf]
          %v708 = vld [vmem:[#allocation13 + $0x78] sm:$0xff]
          %v709 = vld [vmem:[#allocation13 + $0x80] sm:$0xf]
          %v710 = vld [vmem:[#allocation13 + $0x84] sm:$0xff]
          %v711 = vld [vmem:[#allocation13 + $0x8c] sm:$0xf]
          %v712 = vld [vmem:[#allocation13 + $0x90] sm:$0xff]
          %v713 = vld [vmem:[#allocation13 + $0x98] sm:$0xf]
          %v714 = vld [vmem:[#allocation13 + $0x9c] sm:$0xff]
          %v715 = vld [vmem:[#allocation13 + $0xa4] sm:$0xf]
          %v716 = vld [vmem:[#allocation13 + $0xa8] sm:$0xff]
          %v717 = vld [vmem:[#allocation13 + $0xb0] sm:$0xf]
          %v718 = vld [vmem:[#allocation13 + $0xb4] sm:$0xff]
          %v719 = vld [vmem:[#allocation13 + $0xbc] sm:$0xf]
          %v720 = vld [vmem:[%s6] sm:$0x7]
          %v722 = vlaneseq
          %v723 = vshrl.u32 %v722, 7
          %v724 = vsub.s32 0, %v723
          %v725 = vrot.slane %v720, %v724
          %v726 = vlaneseq
          %v727 = vshrl.u32 %v726, 7
          %v728 = vsub.s32 1, %v727
          %v729 = vrot.slane %v720, %v728
          %v730 = vlaneseq
          %v731 = vshrl.u32 %v730, 7
          %v732 = vsub.s32 2, %v731
          %v733 = vrot.slane %v720, %v732
          %v769 = vunpack.c.l.b16 %v688
          %v770 = vunpack.c.h.b16 %v688
          %v771 = vunpack.c.l.b16 %v689
          %v772 = vunpack.c.l.b16 %v690
          %v773 = vunpack.c.h.b16 %v690
          %v774 = vunpack.c.l.b16 %v691
          %v775 = vunpack.c.l.b16 %v692
          %v776 = vunpack.c.h.b16 %v692
          %v777 = vunpack.c.l.b16 %v693
          %v778 = vunpack.c.l.b16 %v694
          %v779 = vunpack.c.h.b16 %v694
          %v780 = vunpack.c.l.b16 %v695
          %v781 = vunpack.c.l.b16 %v696
          %v782 = vunpack.c.h.b16 %v696
          %v783 = vunpack.c.l.b16 %v697
          %v784 = vunpack.c.l.b16 %v698
          %v785 = vunpack.c.h.b16 %v698
          %v786 = vunpack.c.l.b16 %v699
          %v787 = vunpack.c.l.b16 %v700
          %v788 = vunpack.c.h.b16 %v700
          %v789 = vunpack.c.l.b16 %v701
          %v790 = vunpack.c.l.b16 %v702
          %v791 = vunpack.c.h.b16 %v702
          %v792 = vunpack.c.l.b16 %v703
          %v793 = vunpack.c.l.b16 %v704
          %v794 = vunpack.c.h.b16 %v704
          %v795 = vunpack.c.l.b16 %v705
          %v796 = vunpack.c.l.b16 %v706
          %v797 = vunpack.c.h.b16 %v706
          %v798 = vunpack.c.l.b16 %v707
          %v799 = vunpack.c.l.b16 %v708
          %v800 = vunpack.c.h.b16 %v708
          %v801 = vunpack.c.l.b16 %v709
          %v802 = vunpack.c.l.b16 %v710
          %v803 = vunpack.c.h.b16 %v710
          %v804 = vunpack.c.l.b16 %v711
          %v805 = vunpack.c.l.b16 %v712
          %v806 = vunpack.c.h.b16 %v712
          %v807 = vunpack.c.l.b16 %v713
          %v808 = vunpack.c.l.b16 %v714
          %v809 = vunpack.c.h.b16 %v714
          %v810 = vunpack.c.l.b16 %v715
          %v811 = vunpack.c.l.b16 %v716
          %v812 = vunpack.c.h.b16 %v716
          %v813 = vunpack.c.l.b16 %v717
          %v814 = vunpack.c.l.b16 %v718
          %v815 = vunpack.c.h.b16 %v718
          %v816 = vunpack.c.l.b16 %v719
          %v817 = vpack.c.b16 %v772, %v769
          %v818 = vpack.c.b16 %v773, %v770
          %v819 = vpack.c.b16 %v774, %v771
          %v820 = vpack.c.b16 %v778, %v775
          %v821 = vpack.c.b16 %v779, %v776
          %v822 = vpack.c.b16 %v780, %v777
          %v823 = vpack.c.b16 %v784, %v781
          %v824 = vpack.c.b16 %v785, %v782
          %v825 = vpack.c.b16 %v786, %v783
          %v826 = vpack.c.b16 %v790, %v787
          %v827 = vpack.c.b16 %v791, %v788
          %v828 = vpack.c.b16 %v792, %v789
          %v829 = vpack.c.b16 %v796, %v793
          %v830 = vpack.c.b16 %v797, %v794
          %v831 = vpack.c.b16 %v798, %v795
          %v832 = vpack.c.b16 %v802, %v799
          %v833 = vpack.c.b16 %v803, %v800
          %v834 = vpack.c.b16 %v804, %v801
          %v835 = vpack.c.b16 %v808, %v805
          %v836 = vpack.c.b16 %v809, %v806
          %v837 = vpack.c.b16 %v810, %v807
          %v838 = vpack.c.b16 %v814, %v811
          %v839 = vpack.c.b16 %v815, %v812
          %v840 = vpack.c.b16 %v816, %v813
          %865 = vmatprep.subr.bf16.mxu0 %v818
          %866 = vmatpush1.bf16.msra.mxu0 %v817
          %867 = vmatprep.subr.bf16.mxu0 %v821
          %868 = vmatpush1.bf16.msra.mxu0 %v820
          %869 = vmatprep.subr.bf16.mxu0 %v824
          %870 = vmatpush1.bf16.msra.mxu0 %v823
          %871 = vmatprep.subr.bf16.mxu0 %v827
          %872 = vmatpush1.bf16.msra.mxu0 %v826
          %873 = vmatprep.subr.bf16.mxu0 %v830
          %874 = vmatpush1.bf16.msra.mxu0 %v829
          %875 = vmatprep.subr.bf16.mxu0 %v833
          %876 = vmatpush1.bf16.msra.mxu0 %v832
          %877 = vmatprep.subr.bf16.mxu0 %v836
          %878 = vmatpush1.bf16.msra.mxu0 %v835
          %879 = vmatprep.subr.bf16.mxu0 %v839
          %880 = vmatpush1.bf16.msra.mxu0 %v838
          %881 = vmatprep.subr.bf16.mxu0 0
          %882 = vmatpush1.bf16.msra.mxu0 0
          %883 = vmatprep.subr.bf16.mxu0 0
          %884 = vmatpush1.bf16.msra.mxu0 0
          %885 = vmatprep.subr.bf16.mxu0 0
          %886 = vmatpush1.bf16.msra.mxu0 0
          %887 = vmatprep.subr.bf16.mxu0 0
          %888 = vmatpush1.bf16.msra.mxu0 0
          %889 = vmatprep.subr.bf16.mxu0 0
          %890 = vmatpush1.bf16.msra.mxu0 0
          %891 = vmatprep.subr.bf16.mxu0 0
          %892 = vmatpush1.bf16.msra.mxu0 0
          %893 = vmatprep.subr.bf16.mxu0 0
          %894 = vmatpush1.bf16.msra.mxu0 0
          %895 = vmatprep.subr.bf16.mxu0 0
          %896 = vmatpush1.bf16.msra.mxu0 0
          %897 = vmatprep.mubr.bf16.mxu0 0
          %898 = vmatmul.mubr.bf16.gmra.mrb[0].mxu0 %v687
          %v899 = vpop.f32.mrb[0].mxu0
          %v900 = vadd.f32 %v725, %v899
          %v901 = vpop.f32.mrb[0].mxu0
          %v902 = vadd.f32 %v729, %v901
          %v903 = vpop.f32.mrb[0].mxu0
          %v904 = vpop.f32.mrb[0].mxu0
          %905 = vdwg.mxu0
          %906 = vmatprep.subr.bf16.mxu0 0
          %907 = vmatpush1.bf16.msra.mxu0 %v819
          %908 = vmatprep.subr.bf16.mxu0 0
          %909 = vmatpush1.bf16.msra.mxu0 %v822
          %910 = vmatprep.subr.bf16.mxu0 0
          %911 = vmatpush1.bf16.msra.mxu0 %v825
          %912 = vmatprep.subr.bf16.mxu0 0
          %913 = vmatpush1.bf16.msra.mxu0 %v828
          %914 = vmatprep.subr.bf16.mxu0 0
          %915 = vmatpush1.bf16.msra.mxu0 %v831
          %916 = vmatprep.subr.bf16.mxu0 0
          %917 = vmatpush1.bf16.msra.mxu0 %v834
          %918 = vmatprep.subr.bf16.mxu0 0
          %919 = vmatpush1.bf16.msra.mxu0 %v837
          %920 = vmatprep.subr.bf16.mxu0 0
          %921 = vmatpush1.bf16.msra.mxu0 %v840
          %922 = vmatprep.subr.bf16.mxu0 0
          %923 = vmatpush1.bf16.msra.mxu0 0
          %924 = vmatprep.subr.bf16.mxu0 0
          %925 = vmatpush1.bf16.msra.mxu0 0
          %926 = vmatprep.subr.bf16.mxu0 0
          %927 = vmatpush1.bf16.msra.mxu0 0
          %928 = vmatprep.subr.bf16.mxu0 0
          %929 = vmatpush1.bf16.msra.mxu0 0
          %930 = vmatprep.subr.bf16.mxu0 0
          %931 = vmatpush1.bf16.msra.mxu0 0
          %932 = vmatprep.subr.bf16.mxu0 0
          %933 = vmatpush1.bf16.msra.mxu0 0
          %934 = vmatprep.subr.bf16.mxu0 0
          %935 = vmatpush1.bf16.msra.mxu0 0
          %936 = vmatprep.subr.bf16.mxu0 0
          %937 = vmatpush1.bf16.msra.mxu0 0
          %938 = vmatprep.mubr.bf16.mxu0 0
          %939 = vmatmul.mubr.bf16.gmra.mrb[0].mxu0 %v687
          %v940 = vpop.f32.mrb[0].mxu0
          %v941 = vadd.f32 %v733, %v940
          %v942 = vpop.f32.mrb[0].mxu0
          %v943 = vpop.f32.mrb[0].mxu0
          %v944 = vpop.f32.mrb[0].mxu0
          %945 = vdwg.mxu0
          %v946 = vpack.c.bf16 %v686, %v686
          %v947 = vld [vmem:[#allocation14] sm:$0xff]
          %v948 = vld [vmem:[#allocation14 + $0x8] sm:$0xf]
          %v949 = vld [vmem:[#allocation14 + $0xc] sm:$0xff]
          %v950 = vld [vmem:[#allocation14 + $0x14] sm:$0xf]
          %v951 = vld [vmem:[#allocation14 + $0x18] sm:$0xff]
          %v952 = vld [vmem:[#allocation14 + $0x20] sm:$0xf]
          %v953 = vld [vmem:[#allocation14 + $0x24] sm:$0xff]
          %v954 = vld [vmem:[#allocation14 + $0x2c] sm:$0xf]
          %v955 = vld [vmem:[#allocation14 + $0x30] sm:$0xff]
          %v956 = vld [vmem:[#allocation14 + $0x38] sm:$0xf]
          %v957 = vld [vmem:[#allocation14 + $0x3c] sm:$0xff]
          %v958 = vld [vmem:[#allocation14 + $0x44] sm:$0xf]
          %v959 = vld [vmem:[#allocation14 + $0x48] sm:$0xff]
          %v960 = vld [vmem:[#allocation14 + $0x50] sm:$0xf]
          %v961 = vld [vmem:[#allocation14 + $0x54] sm:$0xff]
          %v962 = vld [vmem:[#allocation14 + $0x5c] sm:$0xf]
          %v963 = vld [vmem:[#allocation14 + $0x60] sm:$0xff]
          %v964 = vld [vmem:[#allocation14 + $0x68] sm:$0xf]
          %v965 = vld [vmem:[#allocation14 + $0x6c] sm:$0xff]
          %v966 = vld [vmem:[#allocation14 + $0x74] sm:$0xf]
          %v967 = vld [vmem:[#allocation14 + $0x78] sm:$0xff]
          %v968 = vld [vmem:[#allocation14 + $0x80] sm:$0xf]
          %v969 = vld [vmem:[#allocation14 + $0x84] sm:$0xff]
          %v970 = vld [vmem:[#allocation14 + $0x8c] sm:$0xf]
          %v971 = vld [vmem:[#allocation14 + $0x90] sm:$0xff]
          %v972 = vld [vmem:[#allocation14 + $0x98] sm:$0xf]
          %v973 = vld [vmem:[#allocation14 + $0x9c] sm:$0xff]
          %v974 = vld [vmem:[#allocation14 + $0xa4] sm:$0xf]
          %v975 = vld [vmem:[#allocation14 + $0xa8] sm:$0xff]
          %v976 = vld [vmem:[#allocation14 + $0xb0] sm:$0xf]
          %v977 = vld [vmem:[#allocation14 + $0xb4] sm:$0xff]
          %v978 = vld [vmem:[#allocation14 + $0xbc] sm:$0xf]
          %v979 = vld [vmem:[%s7] sm:$0x7]
          %v981 = vlaneseq
          %v982 = vshrl.u32 %v981, 7
          %v983 = vsub.s32 0, %v982
          %v984 = vrot.slane %v979, %v983
          %v985 = vlaneseq
          %v986 = vshrl.u32 %v985, 7
          %v987 = vsub.s32 1, %v986
          %v988 = vrot.slane %v979, %v987
          %v989 = vlaneseq
          %v990 = vshrl.u32 %v989, 7
          %v991 = vsub.s32 2, %v990
          %v992 = vrot.slane %v979, %v991
          %v1028 = vunpack.c.l.b16 %v947
          %v1029 = vunpack.c.h.b16 %v947
          %v1030 = vunpack.c.l.b16 %v948
          %v1031 = vunpack.c.l.b16 %v949
          %v1032 = vunpack.c.h.b16 %v949
          %v1033 = vunpack.c.l.b16 %v950
          %v1034 = vunpack.c.l.b16 %v951
          %v1035 = vunpack.c.h.b16 %v951
          %v1036 = vunpack.c.l.b16 %v952
          %v1037 = vunpack.c.l.b16 %v953
          %v1038 = vunpack.c.h.b16 %v953
          %v1039 = vunpack.c.l.b16 %v954
          %v1040 = vunpack.c.l.b16 %v955
          %v1041 = vunpack.c.h.b16 %v955
          %v1042 = vunpack.c.l.b16 %v956
          %v1043 = vunpack.c.l.b16 %v957
          %v1044 = vunpack.c.h.b16 %v957
          %v1045 = vunpack.c.l.b16 %v958
          %v1046 = vunpack.c.l.b16 %v959
          %v1047 = vunpack.c.h.b16 %v959
          %v1048 = vunpack.c.l.b16 %v960
          %v1049 = vunpack.c.l.b16 %v961
          %v1050 = vunpack.c.h.b16 %v961
          %v1051 = vunpack.c.l.b16 %v962
          %v1052 = vunpack.c.l.b16 %v963
          %v1053 = vunpack.c.h.b16 %v963
          %v1054 = vunpack.c.l.b16 %v964
          %v1055 = vunpack.c.l.b16 %v965
          %v1056 = vunpack.c.h.b16 %v965
          %v1057 = vunpack.c.l.b16 %v966
          %v1058 = vunpack.c.l.b16 %v967
          %v1059 = vunpack.c.h.b16 %v967
          %v1060 = vunpack.c.l.b16 %v968
          %v1061 = vunpack.c.l.b16 %v969
          %v1062 = vunpack.c.h.b16 %v969
          %v1063 = vunpack.c.l.b16 %v970
          %v1064 = vunpack.c.l.b16 %v971
          %v1065 = vunpack.c.h.b16 %v971
          %v1066 = vunpack.c.l.b16 %v972
          %v1067 = vunpack.c.l.b16 %v973
          %v1068 = vunpack.c.h.b16 %v973
          %v1069 = vunpack.c.l.b16 %v974
          %v1070 = vunpack.c.l.b16 %v975
          %v1071 = vunpack.c.h.b16 %v975
          %v1072 = vunpack.c.l.b16 %v976
          %v1073 = vunpack.c.l.b16 %v977
          %v1074 = vunpack.c.h.b16 %v977
          %v1075 = vunpack.c.l.b16 %v978
          %v1076 = vpack.c.b16 %v1031, %v1028
          %v1077 = vpack.c.b16 %v1032, %v1029
          %v1078 = vpack.c.b16 %v1033, %v1030
          %v1079 = vpack.c.b16 %v1037, %v1034
          %v1080 = vpack.c.b16 %v1038, %v1035
          %v1081 = vpack.c.b16 %v1039, %v1036
          %v1082 = vpack.c.b16 %v1043, %v1040
          %v1083 = vpack.c.b16 %v1044, %v1041
          %v1084 = vpack.c.b16 %v1045, %v1042
          %v1085 = vpack.c.b16 %v1049, %v1046
          %v1086 = vpack.c.b16 %v1050, %v1047
          %v1087 = vpack.c.b16 %v1051, %v1048
          %v1088 = vpack.c.b16 %v1055, %v1052
          %v1089 = vpack.c.b16 %v1056, %v1053
          %v1090 = vpack.c.b16 %v1057, %v1054
          %v1091 = vpack.c.b16 %v1061, %v1058
          %v1092 = vpack.c.b16 %v1062, %v1059
          %v1093 = vpack.c.b16 %v1063, %v1060
          %v1094 = vpack.c.b16 %v1067, %v1064
          %v1095 = vpack.c.b16 %v1068, %v1065
          %v1096 = vpack.c.b16 %v1069, %v1066
          %v1097 = vpack.c.b16 %v1073, %v1070
          %v1098 = vpack.c.b16 %v1074, %v1071
          %v1099 = vpack.c.b16 %v1075, %v1072
          %1124 = vmatprep.subr.bf16.mxu0 %v1077
          %1125 = vmatpush1.bf16.msra.mxu0 %v1076
          %1126 = vmatprep.subr.bf16.mxu0 %v1080
          %1127 = vmatpush1.bf16.msra.mxu0 %v1079
          %1128 = vmatprep.subr.bf16.mxu0 %v1083
          %1129 = vmatpush1.bf16.msra.mxu0 %v1082
          %1130 = vmatprep.subr.bf16.mxu0 %v1086
          %1131 = vmatpush1.bf16.msra.mxu0 %v1085
          %1132 = vmatprep.subr.bf16.mxu0 %v1089
          %1133 = vmatpush1.bf16.msra.mxu0 %v1088
          %1134 = vmatprep.subr.bf16.mxu0 %v1092
          %1135 = vmatpush1.bf16.msra.mxu0 %v1091
          %1136 = vmatprep.subr.bf16.mxu0 %v1095
          %1137 = vmatpush1.bf16.msra.mxu0 %v1094
          %1138 = vmatprep.subr.bf16.mxu0 %v1098
          %1139 = vmatpush1.bf16.msra.mxu0 %v1097
          %1140 = vmatprep.subr.bf16.mxu0 0
          %1141 = vmatpush1.bf16.msra.mxu0 0
          %1142 = vmatprep.subr.bf16.mxu0 0
          %1143 = vmatpush1.bf16.msra.mxu0 0
          %1144 = vmatprep.subr.bf16.mxu0 0
          %1145 = vmatpush1.bf16.msra.mxu0 0
          %1146 = vmatprep.subr.bf16.mxu0 0
          %1147 = vmatpush1.bf16.msra.mxu0 0
          %1148 = vmatprep.subr.bf16.mxu0 0
          %1149 = vmatpush1.bf16.msra.mxu0 0
          %1150 = vmatprep.subr.bf16.mxu0 0
          %1151 = vmatpush1.bf16.msra.mxu0 0
          %1152 = vmatprep.subr.bf16.mxu0 0
          %1153 = vmatpush1.bf16.msra.mxu0 0
          %1154 = vmatprep.subr.bf16.mxu0 0
          %1155 = vmatpush1.bf16.msra.mxu0 0
          %1156 = vmatprep.mubr.bf16.mxu0 0
          %1157 = vmatmul.mubr.bf16.gmra.mrb[0].mxu0 %v946
          %v1158 = vpop.f32.mrb[0].mxu0
          %v1159 = vadd.f32 %v984, %v1158
          %v1160 = vpop.f32.mrb[0].mxu0
          %v1161 = vadd.f32 %v988, %v1160
          %v1162 = vpop.f32.mrb[0].mxu0
          %v1163 = vpop.f32.mrb[0].mxu0
          %1164 = vdwg.mxu0
          %1165 = vmatprep.subr.bf16.mxu0 0
          %1166 = vmatpush1.bf16.msra.mxu0 %v1078
          %1167 = vmatprep.subr.bf16.mxu0 0
          %1168 = vmatpush1.bf16.msra.mxu0 %v1081
          %1169 = vmatprep.subr.bf16.mxu0 0
          %1170 = vmatpush1.bf16.msra.mxu0 %v1084
          %1171 = vmatprep.subr.bf16.mxu0 0
          %1172 = vmatpush1.bf16.msra.mxu0 %v1087
          %1173 = vmatprep.subr.bf16.mxu0 0
          %1174 = vmatpush1.bf16.msra.mxu0 %v1090
          %1175 = vmatprep.subr.bf16.mxu0 0
          %1176 = vmatpush1.bf16.msra.mxu0 %v1093
          %1177 = vmatprep.subr.bf16.mxu0 0
          %1178 = vmatpush1.bf16.msra.mxu0 %v1096
          %1179 = vmatprep.subr.bf16.mxu0 0
          %1180 = vmatpush1.bf16.msra.mxu0 %v1099
          %1181 = vmatprep.subr.bf16.mxu0 0
          %1182 = vmatpush1.bf16.msra.mxu0 0
          %1183 = vmatprep.subr.bf16.mxu0 0
          %1184 = vmatpush1.bf16.msra.mxu0 0
          %1185 = vmatprep.subr.bf16.mxu0 0
          %1186 = vmatpush1.bf16.msra.mxu0 0
          %1187 = vmatprep.subr.bf16.mxu0 0
          %1188 = vmatpush1.bf16.msra.mxu0 0
          %1189 = vmatprep.subr.bf16.mxu0 0
          %1190 = vmatpush1.bf16.msra.mxu0 0
          %1191 = vmatprep.subr.bf16.mxu0 0
          %1192 = vmatpush1.bf16.msra.mxu0 0
          %1193 = vmatprep.subr.bf16.mxu0 0
          %1194 = vmatpush1.bf16.msra.mxu0 0
          %1195 = vmatprep.subr.bf16.mxu0 0
          %1196 = vmatpush1.bf16.msra.mxu0 0
          %1197 = vmatprep.mubr.bf16.mxu0 0
          %1198 = vmatmul.mubr.bf16.gmra.mrb[0].mxu0 %v946
          %v1199 = vpop.f32.mrb[0].mxu0
          %v1200 = vadd.f32 %v992, %v1199
          %v1201 = vpop.f32.mrb[0].mxu0
          %v1202 = vpop.f32.mrb[0].mxu0
          %v1203 = vpop.f32.mrb[0].mxu0
          %1204 = vdwg.mxu0
          %v1205 = vadd.f32 %v900, %v1159
          %v1206 = vxor.u32 %v1205, 2147483648
          %v1207 = vmul.f32 %v1206, 1.442695
          %v1208 = vpow.pop %v1207
          %v1209 = vadd.f32 %v1208, 1.0
          %v1210 = vrcp.pop %v1209
          %v1211 = vmul.f32 1.0, %v1210
          %v1212 = vadd.f32 %v902, %v1161
          %v1213 = vxor.u32 %v1212, 2147483648
          %v1214 = vmul.f32 %v1213, 1.442695
          %v1215 = vpow.pop %v1214
          %v1216 = vadd.f32 %v1215, 1.0
          %v1217 = vrcp.pop %v1216
          %v1218 = vmul.f32 1.0, %v1217
          %v1219 = vmul.f32 %v1211, %v1200
          %v1220 = vadd.f32 %v941, %v1219
          %v1221 = vtanh.pop %v1220
          %v1222 = vsub.f32 1.0, %v1218
          %v1223 = vmul.f32 %v1222, %v1221
          %v1224 = vmul.f32 %v1218, %v686
          %v1225 = vadd.f32 %v1223, %v1224
          %1226 = vst [vmem:[%s669] sm:$0xff] %v1225
          %v1228 = vcombine.high %v1225, %v1225
          %v1230 = vunpack.c.l.s4 1966171168
          %v1231 = vunpack.c.0.s8 %v1230
          %v1232 = vlaneseq
          %v1233 = vshrl.u32 %v1232, 7
          %v1234 = vsub.s32 %v1231, %v1233
          %v1235 = vrot.slane %v1225, %v1234
          %v1237 = vunpack.c.l.s4 1966171168
          %v1238 = vunpack.c.0.s8 %v1237
          %v1239 = vlaneseq
          %v1240 = vshrl.u32 %v1239, 7
          %v1241 = vsub.s32 %v1238, %v1240
          %v1242 = vrot.slane %v1228, %v1241
          %v1243 = vcombine.high %v1235, %v1235
          %v1244 = vcombine.high %v1242, %v1242
          %v1246 = vunpack.c.l.s4 1966171168
          %v1247 = vunpack.c.0.s8 %v1246
          %v1248 = vlaneseq
          %v1249 = vshrl.u32 %v1248, 7
          %v1250 = vsub.s32 %v1247, %v1249
          %v1251 = vrot.slane %v1235, %v1250
          %v1253 = vunpack.c.l.s4 1966171168
          %v1254 = vunpack.c.0.s8 %v1253
          %v1255 = vlaneseq
          %v1256 = vshrl.u32 %v1255, 7
          %v1257 = vsub.s32 %v1254, %v1256
          %v1258 = vrot.slane %v1242, %v1257
          %v1260 = vunpack.c.l.s4 1966171168
          %v1261 = vunpack.c.0.s8 %v1260
          %v1262 = vlaneseq
          %v1263 = vshrl.u32 %v1262, 7
          %v1264 = vsub.s32 %v1261, %v1263
          %v1265 = vrot.slane %v1243, %v1264
          %v1267 = vunpack.c.l.s4 1966171168
          %v1268 = vunpack.c.0.s8 %v1267
          %v1269 = vlaneseq
          %v1270 = vshrl.u32 %v1269, 7
          %v1271 = vsub.s32 %v1268, %v1270
          %v1272 = vrot.slane %v1244, %v1271
          %v1273 = vcombine.high %v1251, %v1251
          %v1274 = vcombine.high %v1258, %v1258
          %v1275 = vcombine.high %v1265, %v1265
          %v1276 = vcombine.high %v1272, %v1272
          %v1285 = vpack.c.bf16 %v1251, %v1251
          %v1286 = vpack.c.bf16 %v1265, %v1265
          %v1287 = vpack.c.bf16 %v1273, %v1273
          %v1288 = vpack.c.bf16 %v1275, %v1275
          %v1289 = vpack.c.bf16 %v1258, %v1258
          %v1290 = vpack.c.bf16 %v1272, %v1272
          %v1291 = vpack.c.bf16 %v1274, %v1274
          %v1292 = vpack.c.bf16 %v1276, %v1276
          %v1293 = vld [vmem:[#allocation11] sm:$0xf]
          %v1294 = vld [vmem:[#allocation11 + $0x4] sm:$0xf]
          %v1295 = vld [vmem:[#allocation11 + $0x8] sm:$0xf]
          %v1296 = vld [vmem:[#allocation11 + $0xc] sm:$0xf]
          %v1297 = vld [vmem:[#allocation11 + $0x10] sm:$0xf]
          %v1298 = vld [vmem:[#allocation11 + $0x14] sm:$0xf]
          %v1299 = vld [vmem:[#allocation11 + $0x18] sm:$0xf]
          %v1300 = vld [vmem:[#allocation11 + $0x1c] sm:$0xf]
          %v1301 = vld [vmem:[#allocation11 + $0x20] sm:$0xf]
          %v1302 = vld [vmem:[#allocation11 + $0x24] sm:$0xf]
          %v1303 = vld [vmem:[#allocation11 + $0x28] sm:$0xf]
          %v1304 = vld [vmem:[#allocation11 + $0x2c] sm:$0xf]
          %v1305 = vld [vmem:[#allocation11 + $0x30] sm:$0xf]
          %v1306 = vld [vmem:[#allocation11 + $0x34] sm:$0xf]
          %v1307 = vld [vmem:[#allocation11 + $0x38] sm:$0xf]
          %v1308 = vld [vmem:[#allocation11 + $0x3c] sm:$0xf]
          %v1309 = vld [vmem:[#allocation11 + $0x40] sm:$0xf]
          %v1310 = vld [vmem:[#allocation11 + $0x44] sm:$0xf]
          %v1311 = vld [vmem:[#allocation11 + $0x48] sm:$0xf]
          %v1312 = vld [vmem:[#allocation11 + $0x4c] sm:$0xf]
          %v1313 = vld [vmem:[#allocation11 + $0x50] sm:$0xf]
          %v1314 = vld [vmem:[#allocation11 + $0x54] sm:$0xf]
          %v1315 = vld [vmem:[#allocation11 + $0x58] sm:$0xf]
          %v1316 = vld [vmem:[#allocation11 + $0x5c] sm:$0xf]
          %v1317 = vld [vmem:[#allocation11 + $0x60] sm:$0xf]
          %v1318 = vld [vmem:[#allocation11 + $0x64] sm:$0xf]
          %v1319 = vld [vmem:[#allocation11 + $0x68] sm:$0xf]
          %v1320 = vld [vmem:[#allocation11 + $0x6c] sm:$0xf]
          %v1321 = vld [vmem:[#allocation11 + $0x70] sm:$0xf]
          %v1322 = vld [vmem:[#allocation11 + $0x74] sm:$0xf]
          %v1323 = vld [vmem:[#allocation11 + $0x78] sm:$0xf]
          %v1324 = vld [vmem:[#allocation11 + $0x7c] sm:$0xf]
          %v1325 = vld [vmem:[#allocation11 + $0x80] sm:$0xf]
          %v1326 = vld [vmem:[#allocation11 + $0x84] sm:$0xf]
          %v1327 = vld [vmem:[#allocation11 + $0x88] sm:$0xf]
          %v1328 = vld [vmem:[#allocation11 + $0x8c] sm:$0xf]
          %v1329 = vld [vmem:[#allocation11 + $0x90] sm:$0xf]
          %v1330 = vld [vmem:[#allocation11 + $0x94] sm:$0xf]
          %v1331 = vld [vmem:[#allocation11 + $0x98] sm:$0xf]
          %v1332 = vld [vmem:[#allocation11 + $0x9c] sm:$0xf]
          %v1333 = vld [vmem:[#allocation11 + $0xa0] sm:$0xf]
          %v1334 = vld [vmem:[#allocation11 + $0xa4] sm:$0xf]
          %v1335 = vld [vmem:[#allocation11 + $0xa8] sm:$0xf]
          %v1336 = vld [vmem:[#allocation11 + $0xac] sm:$0xf]
          %v1337 = vld [vmem:[#allocation11 + $0xb0] sm:$0xf]
          %v1338 = vld [vmem:[#allocation11 + $0xb4] sm:$0xf]
          %v1339 = vld [vmem:[#allocation11 + $0xb8] sm:$0xf]
          %v1340 = vld [vmem:[#allocation11 + $0xbc] sm:$0xf]
          %v1341 = vld [vmem:[#allocation11 + $0xc0] sm:$0xf]
          %v1342 = vld [vmem:[#allocation11 + $0xc4] sm:$0xf]
          %v1343 = vld [vmem:[#allocation11 + $0xc8] sm:$0xf]
          %v1344 = vld [vmem:[#allocation11 + $0xcc] sm:$0xf]
          %v1345 = vld [vmem:[#allocation11 + $0xd0] sm:$0xf]
          %v1346 = vld [vmem:[#allocation11 + $0xd4] sm:$0xf]
          %v1347 = vld [vmem:[#allocation11 + $0xd8] sm:$0xf]
          %v1348 = vld [vmem:[#allocation11 + $0xdc] sm:$0xf]
          %v1349 = vld [vmem:[#allocation11 + $0xe0] sm:$0xf]
          %v1350 = vld [vmem:[#allocation11 + $0xe4] sm:$0xf]
          %v1351 = vld [vmem:[#allocation11 + $0xe8] sm:$0xf]
          %v1352 = vld [vmem:[#allocation11 + $0xec] sm:$0xf]
          %v1353 = vld [vmem:[#allocation11 + $0xf0] sm:$0xf]
          %v1354 = vld [vmem:[#allocation11 + $0xf4] sm:$0xf]
          %v1355 = vld [vmem:[#allocation11 + $0xf8] sm:$0xf]
          %v1356 = vld [vmem:[#allocation11 + $0xfc] sm:$0xf]
          %v1357 = vld [vmem:[#allocation11 + $0x100] sm:$0xf]
          %v1358 = vld [vmem:[#allocation11 + $0x104] sm:$0xf]
          %v1359 = vld [vmem:[#allocation11 + $0x108] sm:$0xf]
          %v1360 = vld [vmem:[#allocation11 + $0x10c] sm:$0xf]
          %v1361 = vld [vmem:[#allocation11 + $0x110] sm:$0xf]
          %v1362 = vld [vmem:[#allocation11 + $0x114] sm:$0xf]
          %v1363 = vld [vmem:[#allocation11 + $0x118] sm:$0xf]
          %v1364 = vld [vmem:[#allocation11 + $0x11c] sm:$0xf]
          %v1365 = vld [vmem:[#allocation11 + $0x120] sm:$0xf]
          %v1366 = vld [vmem:[#allocation11 + $0x124] sm:$0xf]
          %v1367 = vld [vmem:[#allocation11 + $0x128] sm:$0xf]
          %v1368 = vld [vmem:[#allocation11 + $0x12c] sm:$0xf]
          %v1369 = vld [vmem:[#allocation11 + $0x130] sm:$0xf]
          %v1370 = vld [vmem:[#allocation11 + $0x134] sm:$0xf]
          %v1371 = vld [vmem:[#allocation11 + $0x138] sm:$0xf]
          %v1372 = vld [vmem:[#allocation11 + $0x13c] sm:$0xf]
          %v1373 = vld [vmem:[#allocation11 + $0x140] sm:$0xf]
          %v1374 = vld [vmem:[#allocation11 + $0x144] sm:$0xf]
          %v1375 = vld [vmem:[#allocation11 + $0x148] sm:$0xf]
          %v1376 = vld [vmem:[#allocation11 + $0x14c] sm:$0xf]
          %v1377 = vld [vmem:[#allocation11 + $0x150] sm:$0xf]
          %v1378 = vld [vmem:[#allocation11 + $0x154] sm:$0xf]
          %v1379 = vld [vmem:[#allocation11 + $0x158] sm:$0xf]
          %v1380 = vld [vmem:[#allocation11 + $0x15c] sm:$0xf]
          %v1381 = vld [vmem:[#allocation11 + $0x160] sm:$0xf]
          %v1382 = vld [vmem:[#allocation11 + $0x164] sm:$0xf]
          %v1383 = vld [vmem:[#allocation11 + $0x168] sm:$0xf]
          %v1384 = vld [vmem:[#allocation11 + $0x16c] sm:$0xf]
          %v1385 = vld [vmem:[#allocation11 + $0x170] sm:$0xf]
          %v1386 = vld [vmem:[#allocation11 + $0x174] sm:$0xf]
          %v1387 = vld [vmem:[#allocation11 + $0x178] sm:$0xf]
          %v1388 = vld [vmem:[#allocation11 + $0x17c] sm:$0xf]
          %v1389 = vld [vmem:[#allocation11 + $0x180] sm:$0xf]
          %v1390 = vld [vmem:[#allocation11 + $0x184] sm:$0xf]
          %v1391 = vld [vmem:[#allocation11 + $0x188] sm:$0xf]
          %v1392 = vld [vmem:[#allocation11 + $0x18c] sm:$0xf]
          %v1393 = vld [vmem:[#allocation11 + $0x190] sm:$0xf]
          %v1394 = vld [vmem:[#allocation11 + $0x194] sm:$0xf]
          %v1395 = vld [vmem:[#allocation11 + $0x198] sm:$0xf]
          %v1396 = vld [vmem:[#allocation11 + $0x19c] sm:$0xf]
          %v1397 = vld [vmem:[#allocation11 + $0x1a0] sm:$0xf]
          %v1398 = vld [vmem:[#allocation11 + $0x1a4] sm:$0xf]
          %v1399 = vld [vmem:[#allocation11 + $0x1a8] sm:$0xf]
          %v1400 = vld [vmem:[#allocation11 + $0x1ac] sm:$0xf]
          %v1401 = vld [vmem:[#allocation11 + $0x1b0] sm:$0xf]
          %v1402 = vld [vmem:[#allocation11 + $0x1b4] sm:$0xf]
          %v1403 = vld [vmem:[#allocation11 + $0x1b8] sm:$0xf]
          %v1404 = vld [vmem:[#allocation11 + $0x1bc] sm:$0xf]
          %v1405 = vld [vmem:[#allocation11 + $0x1c0] sm:$0xf]
          %v1406 = vld [vmem:[#allocation11 + $0x1c4] sm:$0xf]
          %v1407 = vld [vmem:[#allocation11 + $0x1c8] sm:$0xf]
          %v1408 = vld [vmem:[#allocation11 + $0x1cc] sm:$0xf]
          %v1409 = vld [vmem:[#allocation11 + $0x1d0] sm:$0xf]
          %v1410 = vld [vmem:[#allocation11 + $0x1d4] sm:$0xf]
          %v1411 = vld [vmem:[#allocation11 + $0x1d8] sm:$0xf]
          %v1412 = vld [vmem:[#allocation11 + $0x1dc] sm:$0xf]
          %v1413 = vld [vmem:[#allocation11 + $0x1e0] sm:$0xf]
          %v1414 = vld [vmem:[#allocation11 + $0x1e4] sm:$0xf]
          %v1415 = vld [vmem:[#allocation11 + $0x1e8] sm:$0xf]
          %v1416 = vld [vmem:[#allocation11 + $0x1ec] sm:$0xf]
          %v1417 = vld [vmem:[#allocation11 + $0x1f0] sm:$0xf]
          %v1418 = vld [vmem:[#allocation11 + $0x1f4] sm:$0xf]
          %v1419 = vld [vmem:[#allocation11 + $0x1f8] sm:$0xf]
          %v1420 = vld [vmem:[#allocation11 + $0x1fc] sm:$0xf]
          %v1437 = vunpack.c.l.b16 %v1293
          %v1438 = vunpack.c.l.b16 %v1294
          %v1439 = vunpack.c.l.b16 %v1295
          %v1440 = vunpack.c.l.b16 %v1296
          %v1441 = vunpack.c.l.b16 %v1297
          %v1442 = vunpack.c.l.b16 %v1298
          %v1443 = vunpack.c.l.b16 %v1299
          %v1444 = vunpack.c.l.b16 %v1300
          %v1445 = vunpack.c.l.b16 %v1301
          %v1446 = vunpack.c.l.b16 %v1302
          %v1447 = vunpack.c.l.b16 %v1303
          %v1448 = vunpack.c.l.b16 %v1304
          %v1449 = vunpack.c.l.b16 %v1305
          %v1450 = vunpack.c.l.b16 %v1306
          %v1451 = vunpack.c.l.b16 %v1307
          %v1452 = vunpack.c.l.b16 %v1308
          %v1453 = vpack.c.b16 %v1438, %v1437
          %v1454 = vpack.c.b16 %v1440, %v1439
          %v1455 = vpack.c.b16 %v1442, %v1441
          %v1456 = vpack.c.b16 %v1444, %v1443
          %v1457 = vpack.c.b16 %v1446, %v1445
          %v1458 = vpack.c.b16 %v1448, %v1447
          %v1459 = vpack.c.b16 %v1450, %v1449
          %v1460 = vpack.c.b16 %v1452, %v1451
          %1469 = vmatprep.subr.bf16.mxu0 0
          %1470 = vmatpush1.bf16.msra.mxu0 %v1453
          %1471 = vmatprep.subr.bf16.mxu0 0
          %1472 = vmatpush1.bf16.msra.mxu0 %v1454
          %1473 = vmatprep.subr.bf16.mxu0 0
          %1474 = vmatpush1.bf16.msra.mxu0 %v1455
          %1475 = vmatprep.subr.bf16.mxu0 0
          %1476 = vmatpush1.bf16.msra.mxu0 %v1456
          %1477 = vmatprep.subr.bf16.mxu0 0
          %1478 = vmatpush1.bf16.msra.mxu0 %v1457
          %1479 = vmatprep.subr.bf16.mxu0 0
          %1480 = vmatpush1.bf16.msra.mxu0 %v1458
          %1481 = vmatprep.subr.bf16.mxu0 0
          %1482 = vmatpush1.bf16.msra.mxu0 %v1459
          %1483 = vmatprep.subr.bf16.mxu0 0
          %1484 = vmatpush1.bf16.msra.mxu0 %v1460
          %1485 = vmatprep.subr.bf16.mxu0 0
          %1486 = vmatpush1.bf16.msra.mxu0 0
          %1487 = vmatprep.subr.bf16.mxu0 0
          %1488 = vmatpush1.bf16.msra.mxu0 0
          %1489 = vmatprep.subr.bf16.mxu0 0
          %1490 = vmatpush1.bf16.msra.mxu0 0
          %1491 = vmatprep.subr.bf16.mxu0 0
          %1492 = vmatpush1.bf16.msra.mxu0 0
          %1493 = vmatprep.subr.bf16.mxu0 0
          %1494 = vmatpush1.bf16.msra.mxu0 0
          %1495 = vmatprep.subr.bf16.mxu0 0
          %1496 = vmatpush1.bf16.msra.mxu0 0
          %1497 = vmatprep.subr.bf16.mxu0 0
          %1498 = vmatpush1.bf16.msra.mxu0 0
          %1499 = vmatprep.subr.bf16.mxu0 0
          %1500 = vmatpush1.bf16.msra.mxu0 0
          %1501 = vmatprep.mubr.bf16.mxu0 0
          %1502 = vmatmul.mubr.bf16.gmra.mrb[0].mxu0 %v1285
          %v1503 = vpop.f32.mrb[0].mxu0
          %v1504 = vadd.f32 0.0, %v1503
          %v1505 = vpop.f32.mrb[0].mxu0
          %v1506 = vpop.f32.mrb[0].mxu0
          %v1507 = vpop.f32.mrb[0].mxu0
          %1508 = vdwg.mxu0
          %v1525 = vunpack.c.l.b16 %v1309
          %v1526 = vunpack.c.l.b16 %v1310
          %v1527 = vunpack.c.l.b16 %v1311
          %v1528 = vunpack.c.l.b16 %v1312
          %v1529 = vunpack.c.l.b16 %v1313
          %v1530 = vunpack.c.l.b16 %v1314
          %v1531 = vunpack.c.l.b16 %v1315
          %v1532 = vunpack.c.l.b16 %v1316
          %v1533 = vunpack.c.l.b16 %v1317
          %v1534 = vunpack.c.l.b16 %v1318
          %v1535 = vunpack.c.l.b16 %v1319
          %v1536 = vunpack.c.l.b16 %v1320
          %v1537 = vunpack.c.l.b16 %v1321
          %v1538 = vunpack.c.l.b16 %v1322
          %v1539 = vunpack.c.l.b16 %v1323
          %v1540 = vunpack.c.l.b16 %v1324
          %v1541 = vpack.c.b16 %v1526, %v1525
          %v1542 = vpack.c.b16 %v1528, %v1527
          %v1543 = vpack.c.b16 %v1530, %v1529
          %v1544 = vpack.c.b16 %v1532, %v1531
          %v1545 = vpack.c.b16 %v1534, %v1533
          %v1546 = vpack.c.b16 %v1536, %v1535
          %v1547 = vpack.c.b16 %v1538, %v1537
          %v1548 = vpack.c.b16 %v1540, %v1539
          %1557 = vmatprep.subr.bf16.mxu0 0
          %1558 = vmatpush1.bf16.msra.mxu0 %v1541
          %1559 = vmatprep.subr.bf16.mxu0 0
          %1560 = vmatpush1.bf16.msra.mxu0 %v1542
          %1561 = vmatprep.subr.bf16.mxu0 0
          %1562 = vmatpush1.bf16.msra.mxu0 %v1543
          %1563 = vmatprep.subr.bf16.mxu0 0
          %1564 = vmatpush1.bf16.msra.mxu0 %v1544
          %1565 = vmatprep.subr.bf16.mxu0 0
          %1566 = vmatpush1.bf16.msra.mxu0 %v1545
          %1567 = vmatprep.subr.bf16.mxu0 0
          %1568 = vmatpush1.bf16.msra.mxu0 %v1546
          %1569 = vmatprep.subr.bf16.mxu0 0
          %1570 = vmatpush1.bf16.msra.mxu0 %v1547
          %1571 = vmatprep.subr.bf16.mxu0 0
          %1572 = vmatpush1.bf16.msra.mxu0 %v1548
          %1573 = vmatprep.subr.bf16.mxu0 0
          %1574 = vmatpush1.bf16.msra.mxu0 0
          %1575 = vmatprep.subr.bf16.mxu0 0
          %1576 = vmatpush1.bf16.msra.mxu0 0
          %1577 = vmatprep.subr.bf16.mxu0 0
          %1578 = vmatpush1.bf16.msra.mxu0 0
          %1579 = vmatprep.subr.bf16.mxu0 0
          %1580 = vmatpush1.bf16.msra.mxu0 0
          %1581 = vmatprep.subr.bf16.mxu0 0
          %1582 = vmatpush1.bf16.msra.mxu0 0
          %1583 = vmatprep.subr.bf16.mxu0 0
          %1584 = vmatpush1.bf16.msra.mxu0 0
          %1585 = vmatprep.subr.bf16.mxu0 0
          %1586 = vmatpush1.bf16.msra.mxu0 0
          %1587 = vmatprep.subr.bf16.mxu0 0
          %1588 = vmatpush1.bf16.msra.mxu0 0
          %1589 = vmatprep.mubr.bf16.mxu0 0
          %1590 = vmatmul.mubr.bf16.gmra.mrb[0].mxu0 %v1286
          %v1591 = vpop.f32.mrb[0].mxu0
          %v1592 = vadd.f32 0.0, %v1591
          %v1593 = vpop.f32.mrb[0].mxu0
          %v1594 = vpop.f32.mrb[0].mxu0
          %v1595 = vpop.f32.mrb[0].mxu0
          %1596 = vdwg.mxu0
          %v1613 = vunpack.c.l.b16 %v1325
          %v1614 = vunpack.c.l.b16 %v1326
          %v1615 = vunpack.c.l.b16 %v1327
          %v1616 = vunpack.c.l.b16 %v1328
          %v1617 = vunpack.c.l.b16 %v1329
          %v1618 = vunpack.c.l.b16 %v1330
          %v1619 = vunpack.c.l.b16 %v1331
          %v1620 = vunpack.c.l.b16 %v1332
          %v1621 = vunpack.c.l.b16 %v1333
          %v1622 = vunpack.c.l.b16 %v1334
          %v1623 = vunpack.c.l.b16 %v1335
          %v1624 = vunpack.c.l.b16 %v1336
          %v1625 = vunpack.c.l.b16 %v1337
          %v1626 = vunpack.c.l.b16 %v1338
          %v1627 = vunpack.c.l.b16 %v1339
          %v1628 = vunpack.c.l.b16 %v1340
          %v1629 = vpack.c.b16 %v1614, %v1613
          %v1630 = vpack.c.b16 %v1616, %v1615
          %v1631 = vpack.c.b16 %v1618, %v1617
          %v1632 = vpack.c.b16 %v1620, %v1619
          %v1633 = vpack.c.b16 %v1622, %v1621
          %v1634 = vpack.c.b16 %v1624, %v1623
          %v1635 = vpack.c.b16 %v1626, %v1625
          %v1636 = vpack.c.b16 %v1628, %v1627
          %1645 = vmatprep.subr.bf16.mxu0 0
          %1646 = vmatpush1.bf16.msra.mxu0 %v1629
          %1647 = vmatprep.subr.bf16.mxu0 0
          %1648 = vmatpush1.bf16.msra.mxu0 %v1630
          %1649 = vmatprep.subr.bf16.mxu0 0
          %1650 = vmatpush1.bf16.msra.mxu0 %v1631
          %1651 = vmatprep.subr.bf16.mxu0 0
          %1652 = vmatpush1.bf16.msra.mxu0 %v1632
          %1653 = vmatprep.subr.bf16.mxu0 0
          %1654 = vmatpush1.bf16.msra.mxu0 %v1633
          %1655 = vmatprep.subr.bf16.mxu0 0
          %1656 = vmatpush1.bf16.msra.mxu0 %v1634
          %1657 = vmatprep.subr.bf16.mxu0 0
          %1658 = vmatpush1.bf16.msra.mxu0 %v1635
          %1659 = vmatprep.subr.bf16.mxu0 0
          %1660 = vmatpush1.bf16.msra.mxu0 %v1636
          %1661 = vmatprep.subr.bf16.mxu0 0
          %1662 = vmatpush1.bf16.msra.mxu0 0
          %1663 = vmatprep.subr.bf16.mxu0 0
          %1664 = vmatpush1.bf16.msra.mxu0 0
          %1665 = vmatprep.subr.bf16.mxu0 0
          %1666 = vmatpush1.bf16.msra.mxu0 0
          %1667 = vmatprep.subr.bf16.mxu0 0
          %1668 = vmatpush1.bf16.msra.mxu0 0
          %1669 = vmatprep.subr.bf16.mxu0 0
          %1670 = vmatpush1.bf16.msra.mxu0 0
          %1671 = vmatprep.subr.bf16.mxu0 0
          %1672 = vmatpush1.bf16.msra.mxu0 0
          %1673 = vmatprep.subr.bf16.mxu0 0
          %1674 = vmatpush1.bf16.msra.mxu0 0
          %1675 = vmatprep.subr.bf16.mxu0 0
          %1676 = vmatpush1.bf16.msra.mxu0 0
          %1677 = vmatprep.mubr.bf16.mxu0 0
          %1678 = vmatmul.mubr.bf16.gmra.mrb[0].mxu0 %v1287
          %v1679 = vpop.f32.mrb[0].mxu0
          %v1680 = vadd.f32 0.0, %v1679
          %v1681 = vpop.f32.mrb[0].mxu0
          %v1682 = vpop.f32.mrb[0].mxu0
          %v1683 = vpop.f32.mrb[0].mxu0
          %1684 = vdwg.mxu0
          %v1701 = vunpack.c.l.b16 %v1341
          %v1702 = vunpack.c.l.b16 %v1342
          %v1703 = vunpack.c.l.b16 %v1343
          %v1704 = vunpack.c.l.b16 %v1344
          %v1705 = vunpack.c.l.b16 %v1345
          %v1706 = vunpack.c.l.b16 %v1346
          %v1707 = vunpack.c.l.b16 %v1347
          %v1708 = vunpack.c.l.b16 %v1348
          %v1709 = vunpack.c.l.b16 %v1349
          %v1710 = vunpack.c.l.b16 %v1350
          %v1711 = vunpack.c.l.b16 %v1351
          %v1712 = vunpack.c.l.b16 %v1352
          %v1713 = vunpack.c.l.b16 %v1353
          %v1714 = vunpack.c.l.b16 %v1354
          %v1715 = vunpack.c.l.b16 %v1355
          %v1716 = vunpack.c.l.b16 %v1356
          %v1717 = vpack.c.b16 %v1702, %v1701
          %v1718 = vpack.c.b16 %v1704, %v1703
          %v1719 = vpack.c.b16 %v1706, %v1705
          %v1720 = vpack.c.b16 %v1708, %v1707
          %v1721 = vpack.c.b16 %v1710, %v1709
          %v1722 = vpack.c.b16 %v1712, %v1711
          %v1723 = vpack.c.b16 %v1714, %v1713
          %v1724 = vpack.c.b16 %v1716, %v1715
          %1733 = vmatprep.subr.bf16.mxu0 0
          %1734 = vmatpush1.bf16.msra.mxu0 %v1717
          %1735 = vmatprep.subr.bf16.mxu0 0
          %1736 = vmatpush1.bf16.msra.mxu0 %v1718
          %1737 = vmatprep.subr.bf16.mxu0 0
          %1738 = vmatpush1.bf16.msra.mxu0 %v1719
          %1739 = vmatprep.subr.bf16.mxu0 0
          %1740 = vmatpush1.bf16.msra.mxu0 %v1720
          %1741 = vmatprep.subr.bf16.mxu0 0
          %1742 = vmatpush1.bf16.msra.mxu0 %v1721
          %1743 = vmatprep.subr.bf16.mxu0 0
          %1744 = vmatpush1.bf16.msra.mxu0 %v1722
          %1745 = vmatprep.subr.bf16.mxu0 0
          %1746 = vmatpush1.bf16.msra.mxu0 %v1723
          %1747 = vmatprep.subr.bf16.mxu0 0
          %1748 = vmatpush1.bf16.msra.mxu0 %v1724
          %1749 = vmatprep.subr.bf16.mxu0 0
          %1750 = vmatpush1.bf16.msra.mxu0 0
          %1751 = vmatprep.subr.bf16.mxu0 0
          %1752 = vmatpush1.bf16.msra.mxu0 0
          %1753 = vmatprep.subr.bf16.mxu0 0
          %1754 = vmatpush1.bf16.msra.mxu0 0
          %1755 = vmatprep.subr.bf16.mxu0 0
          %1756 = vmatpush1.bf16.msra.mxu0 0
          %1757 = vmatprep.subr.bf16.mxu0 0
          %1758 = vmatpush1.bf16.msra.mxu0 0
          %1759 = vmatprep.subr.bf16.mxu0 0
          %1760 = vmatpush1.bf16.msra.mxu0 0
          %1761 = vmatprep.subr.bf16.mxu0 0
          %1762 = vmatpush1.bf16.msra.mxu0 0
          %1763 = vmatprep.subr.bf16.mxu0 0
          %1764 = vmatpush1.bf16.msra.mxu0 0
          %1765 = vmatprep.mubr.bf16.mxu0 0
          %1766 = vmatmul.mubr.bf16.gmra.mrb[0].mxu0 %v1288
          %v1767 = vpop.f32.mrb[0].mxu0
          %v1768 = vadd.f32 0.0, %v1767
          %v1769 = vpop.f32.mrb[0].mxu0
          %v1770 = vpop.f32.mrb[0].mxu0
          %v1771 = vpop.f32.mrb[0].mxu0
          %1772 = vdwg.mxu0
          %v1789 = vunpack.c.l.b16 %v1357
          %v1790 = vunpack.c.l.b16 %v1358
          %v1791 = vunpack.c.l.b16 %v1359
          %v1792 = vunpack.c.l.b16 %v1360
          %v1793 = vunpack.c.l.b16 %v1361
          %v1794 = vunpack.c.l.b16 %v1362
          %v1795 = vunpack.c.l.b16 %v1363
          %v1796 = vunpack.c.l.b16 %v1364
          %v1797 = vunpack.c.l.b16 %v1365
          %v1798 = vunpack.c.l.b16 %v1366
          %v1799 = vunpack.c.l.b16 %v1367
          %v1800 = vunpack.c.l.b16 %v1368
          %v1801 = vunpack.c.l.b16 %v1369
          %v1802 = vunpack.c.l.b16 %v1370
          %v1803 = vunpack.c.l.b16 %v1371
          %v1804 = vunpack.c.l.b16 %v1372
          %v1805 = vpack.c.b16 %v1790, %v1789
          %v1806 = vpack.c.b16 %v1792, %v1791
          %v1807 = vpack.c.b16 %v1794, %v1793
          %v1808 = vpack.c.b16 %v1796, %v1795
          %v1809 = vpack.c.b16 %v1798, %v1797
          %v1810 = vpack.c.b16 %v1800, %v1799
          %v1811 = vpack.c.b16 %v1802, %v1801
          %v1812 = vpack.c.b16 %v1804, %v1803
          %1821 = vmatprep.subr.bf16.mxu0 0
          %1822 = vmatpush1.bf16.msra.mxu0 %v1805
          %1823 = vmatprep.subr.bf16.mxu0 0
          %1824 = vmatpush1.bf16.msra.mxu0 %v1806
          %1825 = vmatprep.subr.bf16.mxu0 0
          %1826 = vmatpush1.bf16.msra.mxu0 %v1807
          %1827 = vmatprep.subr.bf16.mxu0 0
          %1828 = vmatpush1.bf16.msra.mxu0 %v1808
          %1829 = vmatprep.subr.bf16.mxu0 0
          %1830 = vmatpush1.bf16.msra.mxu0 %v1809
          %1831 = vmatprep.subr.bf16.mxu0 0
          %1832 = vmatpush1.bf16.msra.mxu0 %v1810
          %1833 = vmatprep.subr.bf16.mxu0 0
          %1834 = vmatpush1.bf16.msra.mxu0 %v1811
          %1835 = vmatprep.subr.bf16.mxu0 0
          %1836 = vmatpush1.bf16.msra.mxu0 %v1812
          %1837 = vmatprep.subr.bf16.mxu0 0
          %1838 = vmatpush1.bf16.msra.mxu0 0
          %1839 = vmatprep.subr.bf16.mxu0 0
          %1840 = vmatpush1.bf16.msra.mxu0 0
          %1841 = vmatprep.subr.bf16.mxu0 0
          %1842 = vmatpush1.bf16.msra.mxu0 0
          %1843 = vmatprep.subr.bf16.mxu0 0
          %1844 = vmatpush1.bf16.msra.mxu0 0
          %1845 = vmatprep.subr.bf16.mxu0 0
          %1846 = vmatpush1.bf16.msra.mxu0 0
          %1847 = vmatprep.subr.bf16.mxu0 0
          %1848 = vmatpush1.bf16.msra.mxu0 0
          %1849 = vmatprep.subr.bf16.mxu0 0
          %1850 = vmatpush1.bf16.msra.mxu0 0
          %1851 = vmatprep.subr.bf16.mxu0 0
          %1852 = vmatpush1.bf16.msra.mxu0 0
          %1853 = vmatprep.mubr.bf16.mxu0 0
          %1854 = vmatmul.mubr.bf16.gmra.mrb[0].mxu0 %v1289
          %v1855 = vpop.f32.mrb[0].mxu0
          %v1856 = vadd.f32 0.0, %v1855
          %v1857 = vpop.f32.mrb[0].mxu0
          %v1858 = vpop.f32.mrb[0].mxu0
          %v1859 = vpop.f32.mrb[0].mxu0
          %1860 = vdwg.mxu0
          %v1877 = vunpack.c.l.b16 %v1373
          %v1878 = vunpack.c.l.b16 %v1374
          %v1879 = vunpack.c.l.b16 %v1375
          %v1880 = vunpack.c.l.b16 %v1376
          %v1881 = vunpack.c.l.b16 %v1377
          %v1882 = vunpack.c.l.b16 %v1378
          %v1883 = vunpack.c.l.b16 %v1379
          %v1884 = vunpack.c.l.b16 %v1380
          %v1885 = vunpack.c.l.b16 %v1381
          %v1886 = vunpack.c.l.b16 %v1382
          %v1887 = vunpack.c.l.b16 %v1383
          %v1888 = vunpack.c.l.b16 %v1384
          %v1889 = vunpack.c.l.b16 %v1385
          %v1890 = vunpack.c.l.b16 %v1386
          %v1891 = vunpack.c.l.b16 %v1387
          %v1892 = vunpack.c.l.b16 %v1388
          %v1893 = vpack.c.b16 %v1878, %v1877
          %v1894 = vpack.c.b16 %v1880, %v1879
          %v1895 = vpack.c.b16 %v1882, %v1881
          %v1896 = vpack.c.b16 %v1884, %v1883
          %v1897 = vpack.c.b16 %v1886, %v1885
          %v1898 = vpack.c.b16 %v1888, %v1887
          %v1899 = vpack.c.b16 %v1890, %v1889
          %v1900 = vpack.c.b16 %v1892, %v1891
          %1909 = vmatprep.subr.bf16.mxu0 0
          %1910 = vmatpush1.bf16.msra.mxu0 %v1893
          %1911 = vmatprep.subr.bf16.mxu0 0
          %1912 = vmatpush1.bf16.msra.mxu0 %v1894
          %1913 = vmatprep.subr.bf16.mxu0 0
          %1914 = vmatpush1.bf16.msra.mxu0 %v1895
          %1915 = vmatprep.subr.bf16.mxu0 0
          %1916 = vmatpush1.bf16.msra.mxu0 %v1896
          %1917 = vmatprep.subr.bf16.mxu0 0
          %1918 = vmatpush1.bf16.msra.mxu0 %v1897
          %1919 = vmatprep.subr.bf16.mxu0 0
          %1920 = vmatpush1.bf16.msra.mxu0 %v1898
          %1921 = vmatprep.subr.bf16.mxu0 0
          %1922 = vmatpush1.bf16.msra.mxu0 %v1899
          %1923 = vmatprep.subr.bf16.mxu0 0
          %1924 = vmatpush1.bf16.msra.mxu0 %v1900
          %1925 = vmatprep.subr.bf16.mxu0 0
          %1926 = vmatpush1.bf16.msra.mxu0 0
          %1927 = vmatprep.subr.bf16.mxu0 0
          %1928 = vmatpush1.bf16.msra.mxu0 0
          %1929 = vmatprep.subr.bf16.mxu0 0
          %1930 = vmatpush1.bf16.msra.mxu0 0
          %1931 = vmatprep.subr.bf16.mxu0 0
          %1932 = vmatpush1.bf16.msra.mxu0 0
          %1933 = vmatprep.subr.bf16.mxu0 0
          %1934 = vmatpush1.bf16.msra.mxu0 0
          %1935 = vmatprep.subr.bf16.mxu0 0
          %1936 = vmatpush1.bf16.msra.mxu0 0
          %1937 = vmatprep.subr.bf16.mxu0 0
          %1938 = vmatpush1.bf16.msra.mxu0 0
          %1939 = vmatprep.subr.bf16.mxu0 0
          %1940 = vmatpush1.bf16.msra.mxu0 0
          %1941 = vmatprep.mubr.bf16.mxu0 0
          %1942 = vmatmul.mubr.bf16.gmra.mrb[0].mxu0 %v1290
          %v1943 = vpop.f32.mrb[0].mxu0
          %v1944 = vadd.f32 0.0, %v1943
          %v1945 = vpop.f32.mrb[0].mxu0
          %v1946 = vpop.f32.mrb[0].mxu0
          %v1947 = vpop.f32.mrb[0].mxu0
          %1948 = vdwg.mxu0
          %v1965 = vunpack.c.l.b16 %v1389
          %v1966 = vunpack.c.l.b16 %v1390
          %v1967 = vunpack.c.l.b16 %v1391
          %v1968 = vunpack.c.l.b16 %v1392
          %v1969 = vunpack.c.l.b16 %v1393
          %v1970 = vunpack.c.l.b16 %v1394
          %v1971 = vunpack.c.l.b16 %v1395
          %v1972 = vunpack.c.l.b16 %v1396
          %v1973 = vunpack.c.l.b16 %v1397
          %v1974 = vunpack.c.l.b16 %v1398
          %v1975 = vunpack.c.l.b16 %v1399
          %v1976 = vunpack.c.l.b16 %v1400
          %v1977 = vunpack.c.l.b16 %v1401
          %v1978 = vunpack.c.l.b16 %v1402
          %v1979 = vunpack.c.l.b16 %v1403
          %v1980 = vunpack.c.l.b16 %v1404
          %v1981 = vpack.c.b16 %v1966, %v1965
          %v1982 = vpack.c.b16 %v1968, %v1967
          %v1983 = vpack.c.b16 %v1970, %v1969
          %v1984 = vpack.c.b16 %v1972, %v1971
          %v1985 = vpack.c.b16 %v1974, %v1973
          %v1986 = vpack.c.b16 %v1976, %v1975
          %v1987 = vpack.c.b16 %v1978, %v1977
          %v1988 = vpack.c.b16 %v1980, %v1979
          %1997 = vmatprep.subr.bf16.mxu0 0
          %1998 = vmatpush1.bf16.msra.mxu0 %v1981
          %1999 = vmatprep.subr.bf16.mxu0 0
          %2000 = vmatpush1.bf16.msra.mxu0 %v1982
          %2001 = vmatprep.subr.bf16.mxu0 0
          %2002 = vmatpush1.bf16.msra.mxu0 %v1983
          %2003 = vmatprep.subr.bf16.mxu0 0
          %2004 = vmatpush1.bf16.msra.mxu0 %v1984
          %2005 = vmatprep.subr.bf16.mxu0 0
          %2006 = vmatpush1.bf16.msra.mxu0 %v1985
          %2007 = vmatprep.subr.bf16.mxu0 0
          %2008 = vmatpush1.bf16.msra.mxu0 %v1986
          %2009 = vmatprep.subr.bf16.mxu0 0
          %2010 = vmatpush1.bf16.msra.mxu0 %v1987
          %2011 = vmatprep.subr.bf16.mxu0 0
          %2012 = vmatpush1.bf16.msra.mxu0 %v1988
          %2013 = vmatprep.subr.bf16.mxu0 0
          %2014 = vmatpush1.bf16.msra.mxu0 0
          %2015 = vmatprep.subr.bf16.mxu0 0
          %2016 = vmatpush1.bf16.msra.mxu0 0
          %2017 = vmatprep.subr.bf16.mxu0 0
          %2018 = vmatpush1.bf16.msra.mxu0 0
          %2019 = vmatprep.subr.bf16.mxu0 0
          %2020 = vmatpush1.bf16.msra.mxu0 0
          %2021 = vmatprep.subr.bf16.mxu0 0
          %2022 = vmatpush1.bf16.msra.mxu0 0
          %2023 = vmatprep.subr.bf16.mxu0 0
          %2024 = vmatpush1.bf16.msra.mxu0 0
          %2025 = vmatprep.subr.bf16.mxu0 0
          %2026 = vmatpush1.bf16.msra.mxu0 0
          %2027 = vmatprep.subr.bf16.mxu0 0
          %2028 = vmatpush1.bf16.msra.mxu0 0
          %2029 = vmatprep.mubr.bf16.mxu0 0
          %2030 = vmatmul.mubr.bf16.gmra.mrb[0].mxu0 %v1291
          %v2031 = vpop.f32.mrb[0].mxu0
          %v2032 = vadd.f32 0.0, %v2031
          %v2033 = vpop.f32.mrb[0].mxu0
          %v2034 = vpop.f32.mrb[0].mxu0
          %v2035 = vpop.f32.mrb[0].mxu0
          %2036 = vdwg.mxu0
          %v2053 = vunpack.c.l.b16 %v1405
          %v2054 = vunpack.c.l.b16 %v1406
          %v2055 = vunpack.c.l.b16 %v1407
          %v2056 = vunpack.c.l.b16 %v1408
          %v2057 = vunpack.c.l.b16 %v1409
          %v2058 = vunpack.c.l.b16 %v1410
          %v2059 = vunpack.c.l.b16 %v1411
          %v2060 = vunpack.c.l.b16 %v1412
          %v2061 = vunpack.c.l.b16 %v1413
          %v2062 = vunpack.c.l.b16 %v1414
          %v2063 = vunpack.c.l.b16 %v1415
          %v2064 = vunpack.c.l.b16 %v1416
          %v2065 = vunpack.c.l.b16 %v1417
          %v2066 = vunpack.c.l.b16 %v1418
          %v2067 = vunpack.c.l.b16 %v1419
          %v2068 = vunpack.c.l.b16 %v1420
          %v2069 = vpack.c.b16 %v2054, %v2053
          %v2070 = vpack.c.b16 %v2056, %v2055
          %v2071 = vpack.c.b16 %v2058, %v2057
          %v2072 = vpack.c.b16 %v2060, %v2059
          %v2073 = vpack.c.b16 %v2062, %v2061
          %v2074 = vpack.c.b16 %v2064, %v2063
          %v2075 = vpack.c.b16 %v2066, %v2065
          %v2076 = vpack.c.b16 %v2068, %v2067
          %2085 = vmatprep.subr.bf16.mxu0 0
          %2086 = vmatpush1.bf16.msra.mxu0 %v2069
          %2087 = vmatprep.subr.bf16.mxu0 0
          %2088 = vmatpush1.bf16.msra.mxu0 %v2070
          %2089 = vmatprep.subr.bf16.mxu0 0
          %2090 = vmatpush1.bf16.msra.mxu0 %v2071
          %2091 = vmatprep.subr.bf16.mxu0 0
          %2092 = vmatpush1.bf16.msra.mxu0 %v2072
          %2093 = vmatprep.subr.bf16.mxu0 0
          %2094 = vmatpush1.bf16.msra.mxu0 %v2073
          %2095 = vmatprep.subr.bf16.mxu0 0
          %2096 = vmatpush1.bf16.msra.mxu0 %v2074
          %2097 = vmatprep.subr.bf16.mxu0 0
          %2098 = vmatpush1.bf16.msra.mxu0 %v2075
          %2099 = vmatprep.subr.bf16.mxu0 0
          %2100 = vmatpush1.bf16.msra.mxu0 %v2076
          %2101 = vmatprep.subr.bf16.mxu0 0
          %2102 = vmatpush1.bf16.msra.mxu0 0
          %2103 = vmatprep.subr.bf16.mxu0 0
          %2104 = vmatpush1.bf16.msra.mxu0 0
          %2105 = vmatprep.subr.bf16.mxu0 0
          %2106 = vmatpush1.bf16.msra.mxu0 0
          %2107 = vmatprep.subr.bf16.mxu0 0
          %2108 = vmatpush1.bf16.msra.mxu0 0
          %2109 = vmatprep.subr.bf16.mxu0 0
          %2110 = vmatpush1.bf16.msra.mxu0 0
          %2111 = vmatprep.subr.bf16.mxu0 0
          %2112 = vmatpush1.bf16.msra.mxu0 0
          %2113 = vmatprep.subr.bf16.mxu0 0
          %2114 = vmatpush1.bf16.msra.mxu0 0
          %2115 = vmatprep.subr.bf16.mxu0 0
          %2116 = vmatpush1.bf16.msra.mxu0 0
          %2117 = vmatprep.mubr.bf16.mxu0 0
          %2118 = vmatmul.mubr.bf16.gmra.mrb[0].mxu0 %v1292
          %v2119 = vpop.f32.mrb[0].mxu0
          %v2120 = vadd.f32 0.0, %v2119
          %v2121 = vpop.f32.mrb[0].mxu0
          %v2122 = vpop.f32.mrb[0].mxu0
          %v2123 = vpop.f32.mrb[0].mxu0
          %2124 = vdwg.mxu0
          %v2125 = vlaneseq
          %v2126 = vand.u32 %v2125, 127
          %vm2127 = vcmp.lt.s32.totalorder %v2126, 8
          %v2136 = vrot.slane %v1592, 7
          %vm2137 = vcmask 1041409
          %v2138 = vsel %vm2137, %v2136, %v1504
          %v2139 = vrot.slane %v1680, 6
          %vm2140 = vcmask 1042434
          %v2141 = vsel %vm2140, %v2139, %v2138
          %v2142 = vrot.slane %v1768, 5
          %vm2143 = vcmask 1043459
          %v2144 = vsel %vm2143, %v2142, %v2141
          %v2145 = vrot.slane %v1856, 4
          %vm2146 = vcmask 1044484
          %v2147 = vsel %vm2146, %v2145, %v2144
          %v2148 = vrot.slane %v1944, 3
          %vm2149 = vcmask 1045509
          %v2150 = vsel %vm2149, %v2148, %v2147
          %v2151 = vrot.slane %v2032, 2
          %vm2152 = vcmask 1046534
          %v2153 = vsel %vm2152, %v2151, %v2150
          %v2154 = vrot.slane %v2120, 1
          %vm2155 = vcmask 1047559
          %v2156 = vsel %vm2155, %v2154, %v2153
          %v2158 = vsel %vm2127, %v2156, -1e+30
          %2159 = vmax.xlane.f32.xlu0 %v2158
          %v2160 = vpop.xlane.xlu0 %2159
          %v2161 = vsub.f32 %v2158, %v2160
          %v2162 = vmul.f32 %v2161, 1.442695
          %v2163 = vpow.pop %v2162
          %2164 = vadd.xlane.f32.xlu0 %v2163
          %v2165 = vpop.xlane.xlu0 %2164
          %v2166 = vrcp.pop %v2165
          %v2167 = vmul.f32 %v2163, %v2166
          %v2169 = vcombine.high %v2167, %v2167
          %v2171 = vunpack.c.l.s4 1966171168
          %v2172 = vunpack.c.0.s8 %v2171
          %v2173 = vlaneseq
          %v2174 = vshrl.u32 %v2173, 7
          %v2175 = vsub.s32 %v2172, %v2174
          %v2176 = vrot.slane %v2167, %v2175
          %v2178 = vunpack.c.l.s4 1966171168
          %v2179 = vunpack.c.0.s8 %v2178
          %v2180 = vlaneseq
          %v2181 = vshrl.u32 %v2180, 7
          %v2182 = vsub.s32 %v2179, %v2181
          %v2183 = vrot.slane %v2169, %v2182
          %v2184 = vcombine.high %v2176, %v2176
          %v2185 = vcombine.high %v2183, %v2183
          %v2187 = vunpack.c.l.s4 1966171168
          %v2188 = vunpack.c.0.s8 %v2187
          %v2189 = vlaneseq
          %v2190 = vshrl.u32 %v2189, 7
          %v2191 = vsub.s32 %v2188, %v2190
          %v2192 = vrot.slane %v2176, %v2191
          %v2194 = vunpack.c.l.s4 1966171168
          %v2195 = vunpack.c.0.s8 %v2194
          %v2196 = vlaneseq
          %v2197 = vshrl.u32 %v2196, 7
          %v2198 = vsub.s32 %v2195, %v2197
          %v2199 = vrot.slane %v2183, %v2198
          %v2201 = vunpack.c.l.s4 1966171168
          %v2202 = vunpack.c.0.s8 %v2201
          %v2203 = vlaneseq
          %v2204 = vshrl.u32 %v2203, 7
          %v2205 = vsub.s32 %v2202, %v2204
          %v2206 = vrot.slane %v2184, %v2205
          %v2208 = vunpack.c.l.s4 1966171168
          %v2209 = vunpack.c.0.s8 %v2208
          %v2210 = vlaneseq
          %v2211 = vshrl.u32 %v2210, 7
          %v2212 = vsub.s32 %v2209, %v2211
          %v2213 = vrot.slane %v2185, %v2212
          %v2214 = vcombine.high %v2192, %v2192
          %v2215 = vcombine.high %v2199, %v2199
          %v2216 = vcombine.high %v2206, %v2206
          %v2217 = vcombine.high %v2213, %v2213
          %v2226 = vpack.c.bf16 %v2192, %v2192
          %v2227 = vpack.c.bf16 %v2206, %v2206
          %v2228 = vpack.c.bf16 %v2214, %v2214
          %v2229 = vpack.c.bf16 %v2216, %v2216
          %v2230 = vpack.c.bf16 %v2199, %v2199
          %v2231 = vpack.c.bf16 %v2213, %v2213
          %v2232 = vpack.c.bf16 %v2215, %v2215
          %v2233 = vpack.c.bf16 %v2217, %v2217
          %v2234 = vld [vmem:[#allocation10] sm:$0xf]
          %v2235 = vld [vmem:[#allocation10 + $0x4] sm:$0xf]
          %v2236 = vld [vmem:[#allocation10 + $0x8] sm:$0xf]
          %v2237 = vld [vmem:[#allocation10 + $0xc] sm:$0xf]
          %v2238 = vld [vmem:[#allocation10 + $0x10] sm:$0xf]
          %v2239 = vld [vmem:[#allocation10 + $0x14] sm:$0xf]
          %v2240 = vld [vmem:[#allocation10 + $0x18] sm:$0xf]
          %v2241 = vld [vmem:[#allocation10 + $0x1c] sm:$0xf]
          %v2242 = vld [vmem:[#allocation10 + $0x20] sm:$0xf]
          %v2243 = vld [vmem:[#allocation10 + $0x24] sm:$0xf]
          %v2244 = vld [vmem:[#allocation10 + $0x28] sm:$0xf]
          %v2245 = vld [vmem:[#allocation10 + $0x2c] sm:$0xf]
          %v2246 = vld [vmem:[#allocation10 + $0x30] sm:$0xf]
          %v2247 = vld [vmem:[#allocation10 + $0x34] sm:$0xf]
          %v2248 = vld [vmem:[#allocation10 + $0x38] sm:$0xf]
          %v2249 = vld [vmem:[#allocation10 + $0x3c] sm:$0xf]
          %v2250 = vld [vmem:[#allocation10 + $0x40] sm:$0xf]
          %v2251 = vld [vmem:[#allocation10 + $0x44] sm:$0xf]
          %v2252 = vld [vmem:[#allocation10 + $0x48] sm:$0xf]
          %v2253 = vld [vmem:[#allocation10 + $0x4c] sm:$0xf]
          %v2254 = vld [vmem:[#allocation10 + $0x50] sm:$0xf]
          %v2255 = vld [vmem:[#allocation10 + $0x54] sm:$0xf]
          %v2256 = vld [vmem:[#allocation10 + $0x58] sm:$0xf]
          %v2257 = vld [vmem:[#allocation10 + $0x5c] sm:$0xf]
          %v2258 = vld [vmem:[#allocation10 + $0x60] sm:$0xf]
          %v2259 = vld [vmem:[#allocation10 + $0x64] sm:$0xf]
          %v2260 = vld [vmem:[#allocation10 + $0x68] sm:$0xf]
          %v2261 = vld [vmem:[#allocation10 + $0x6c] sm:$0xf]
          %v2262 = vld [vmem:[#allocation10 + $0x70] sm:$0xf]
          %v2263 = vld [vmem:[#allocation10 + $0x74] sm:$0xf]
          %v2264 = vld [vmem:[#allocation10 + $0x78] sm:$0xf]
          %v2265 = vld [vmem:[#allocation10 + $0x7c] sm:$0xf]
          %v2266 = vld [vmem:[#allocation10 + $0x80] sm:$0xf]
          %v2267 = vld [vmem:[#allocation10 + $0x84] sm:$0xf]
          %v2268 = vld [vmem:[#allocation10 + $0x88] sm:$0xf]
          %v2269 = vld [vmem:[#allocation10 + $0x8c] sm:$0xf]
          %v2270 = vld [vmem:[#allocation10 + $0x90] sm:$0xf]
          %v2271 = vld [vmem:[#allocation10 + $0x94] sm:$0xf]
          %v2272 = vld [vmem:[#allocation10 + $0x98] sm:$0xf]
          %v2273 = vld [vmem:[#allocation10 + $0x9c] sm:$0xf]
          %v2274 = vld [vmem:[#allocation10 + $0xa0] sm:$0xf]
          %v2275 = vld [vmem:[#allocation10 + $0xa4] sm:$0xf]
          %v2276 = vld [vmem:[#allocation10 + $0xa8] sm:$0xf]
          %v2277 = vld [vmem:[#allocation10 + $0xac] sm:$0xf]
          %v2278 = vld [vmem:[#allocation10 + $0xb0] sm:$0xf]
          %v2279 = vld [vmem:[#allocation10 + $0xb4] sm:$0xf]
          %v2280 = vld [vmem:[#allocation10 + $0xb8] sm:$0xf]
          %v2281 = vld [vmem:[#allocation10 + $0xbc] sm:$0xf]
          %v2282 = vld [vmem:[#allocation10 + $0xc0] sm:$0xf]
          %v2283 = vld [vmem:[#allocation10 + $0xc4] sm:$0xf]
          %v2284 = vld [vmem:[#allocation10 + $0xc8] sm:$0xf]
          %v2285 = vld [vmem:[#allocation10 + $0xcc] sm:$0xf]
          %v2286 = vld [vmem:[#allocation10 + $0xd0] sm:$0xf]
          %v2287 = vld [vmem:[#allocation10 + $0xd4] sm:$0xf]
          %v2288 = vld [vmem:[#allocation10 + $0xd8] sm:$0xf]
          %v2289 = vld [vmem:[#allocation10 + $0xdc] sm:$0xf]
          %v2290 = vld [vmem:[#allocation10 + $0xe0] sm:$0xf]
          %v2291 = vld [vmem:[#allocation10 + $0xe4] sm:$0xf]
          %v2292 = vld [vmem:[#allocation10 + $0xe8] sm:$0xf]
          %v2293 = vld [vmem:[#allocation10 + $0xec] sm:$0xf]
          %v2294 = vld [vmem:[#allocation10 + $0xf0] sm:$0xf]
          %v2295 = vld [vmem:[#allocation10 + $0xf4] sm:$0xf]
          %v2296 = vld [vmem:[#allocation10 + $0xf8] sm:$0xf]
          %v2297 = vld [vmem:[#allocation10 + $0xfc] sm:$0xf]
          %v2298 = vld [vmem:[#allocation10 + $0x100] sm:$0xf]
          %v2299 = vld [vmem:[#allocation10 + $0x104] sm:$0xf]
          %v2300 = vld [vmem:[#allocation10 + $0x108] sm:$0xf]
          %v2301 = vld [vmem:[#allocation10 + $0x10c] sm:$0xf]
          %v2302 = vld [vmem:[#allocation10 + $0x110] sm:$0xf]
          %v2303 = vld [vmem:[#allocation10 + $0x114] sm:$0xf]
          %v2304 = vld [vmem:[#allocation10 + $0x118] sm:$0xf]
          %v2305 = vld [vmem:[#allocation10 + $0x11c] sm:$0xf]
          %v2306 = vld [vmem:[#allocation10 + $0x120] sm:$0xf]
          %v2307 = vld [vmem:[#allocation10 + $0x124] sm:$0xf]
          %v2308 = vld [vmem:[#allocation10 + $0x128] sm:$0xf]
          %v2309 = vld [vmem:[#allocation10 + $0x12c] sm:$0xf]
          %v2310 = vld [vmem:[#allocation10 + $0x130] sm:$0xf]
          %v2311 = vld [vmem:[#allocation10 + $0x134] sm:$0xf]
          %v2312 = vld [vmem:[#allocation10 + $0x138] sm:$0xf]
          %v2313 = vld [vmem:[#allocation10 + $0x13c] sm:$0xf]
          %v2314 = vld [vmem:[#allocation10 + $0x140] sm:$0xf]
          %v2315 = vld [vmem:[#allocation10 + $0x144] sm:$0xf]
          %v2316 = vld [vmem:[#allocation10 + $0x148] sm:$0xf]
          %v2317 = vld [vmem:[#allocation10 + $0x14c] sm:$0xf]
          %v2318 = vld [vmem:[#allocation10 + $0x150] sm:$0xf]
          %v2319 = vld [vmem:[#allocation10 + $0x154] sm:$0xf]
          %v2320 = vld [vmem:[#allocation10 + $0x158] sm:$0xf]
          %v2321 = vld [vmem:[#allocation10 + $0x15c] sm:$0xf]
          %v2322 = vld [vmem:[#allocation10 + $0x160] sm:$0xf]
          %v2323 = vld [vmem:[#allocation10 + $0x164] sm:$0xf]
          %v2324 = vld [vmem:[#allocation10 + $0x168] sm:$0xf]
          %v2325 = vld [vmem:[#allocation10 + $0x16c] sm:$0xf]
          %v2326 = vld [vmem:[#allocation10 + $0x170] sm:$0xf]
          %v2327 = vld [vmem:[#allocation10 + $0x174] sm:$0xf]
          %v2328 = vld [vmem:[#allocation10 + $0x178] sm:$0xf]
          %v2329 = vld [vmem:[#allocation10 + $0x17c] sm:$0xf]
          %v2330 = vld [vmem:[#allocation10 + $0x180] sm:$0xf]
          %v2331 = vld [vmem:[#allocation10 + $0x184] sm:$0xf]
          %v2332 = vld [vmem:[#allocation10 + $0x188] sm:$0xf]
          %v2333 = vld [vmem:[#allocation10 + $0x18c] sm:$0xf]
          %v2334 = vld [vmem:[#allocation10 + $0x190] sm:$0xf]
          %v2335 = vld [vmem:[#allocation10 + $0x194] sm:$0xf]
          %v2336 = vld [vmem:[#allocation10 + $0x198] sm:$0xf]
          %v2337 = vld [vmem:[#allocation10 + $0x19c] sm:$0xf]
          %v2338 = vld [vmem:[#allocation10 + $0x1a0] sm:$0xf]
          %v2339 = vld [vmem:[#allocation10 + $0x1a4] sm:$0xf]
          %v2340 = vld [vmem:[#allocation10 + $0x1a8] sm:$0xf]
          %v2341 = vld [vmem:[#allocation10 + $0x1ac] sm:$0xf]
          %v2342 = vld [vmem:[#allocation10 + $0x1b0] sm:$0xf]
          %v2343 = vld [vmem:[#allocation10 + $0x1b4] sm:$0xf]
          %v2344 = vld [vmem:[#allocation10 + $0x1b8] sm:$0xf]
          %v2345 = vld [vmem:[#allocation10 + $0x1bc] sm:$0xf]
          %v2346 = vld [vmem:[#allocation10 + $0x1c0] sm:$0xf]
          %v2347 = vld [vmem:[#allocation10 + $0x1c4] sm:$0xf]
          %v2348 = vld [vmem:[#allocation10 + $0x1c8] sm:$0xf]
          %v2349 = vld [vmem:[#allocation10 + $0x1cc] sm:$0xf]
          %v2350 = vld [vmem:[#allocation10 + $0x1d0] sm:$0xf]
          %v2351 = vld [vmem:[#allocation10 + $0x1d4] sm:$0xf]
          %v2352 = vld [vmem:[#allocation10 + $0x1d8] sm:$0xf]
          %v2353 = vld [vmem:[#allocation10 + $0x1dc] sm:$0xf]
          %v2354 = vld [vmem:[#allocation10 + $0x1e0] sm:$0xf]
          %v2355 = vld [vmem:[#allocation10 + $0x1e4] sm:$0xf]
          %v2356 = vld [vmem:[#allocation10 + $0x1e8] sm:$0xf]
          %v2357 = vld [vmem:[#allocation10 + $0x1ec] sm:$0xf]
          %v2358 = vld [vmem:[#allocation10 + $0x1f0] sm:$0xf]
          %v2359 = vld [vmem:[#allocation10 + $0x1f4] sm:$0xf]
          %v2360 = vld [vmem:[#allocation10 + $0x1f8] sm:$0xf]
          %v2361 = vld [vmem:[#allocation10 + $0x1fc] sm:$0xf]
          %v2378 = vunpack.c.l.b16 %v2234
          %v2379 = vunpack.c.l.b16 %v2235
          %v2380 = vunpack.c.l.b16 %v2236
          %v2381 = vunpack.c.l.b16 %v2237
          %v2382 = vunpack.c.l.b16 %v2238
          %v2383 = vunpack.c.l.b16 %v2239
          %v2384 = vunpack.c.l.b16 %v2240
          %v2385 = vunpack.c.l.b16 %v2241
          %v2386 = vunpack.c.l.b16 %v2242
          %v2387 = vunpack.c.l.b16 %v2243
          %v2388 = vunpack.c.l.b16 %v2244
          %v2389 = vunpack.c.l.b16 %v2245
          %v2390 = vunpack.c.l.b16 %v2246
          %v2391 = vunpack.c.l.b16 %v2247
          %v2392 = vunpack.c.l.b16 %v2248
          %v2393 = vunpack.c.l.b16 %v2249
          %v2394 = vpack.c.b16 %v2379, %v2378
          %v2395 = vpack.c.b16 %v2381, %v2380
          %v2396 = vpack.c.b16 %v2383, %v2382
          %v2397 = vpack.c.b16 %v2385, %v2384
          %v2398 = vpack.c.b16 %v2387, %v2386
          %v2399 = vpack.c.b16 %v2389, %v2388
          %v2400 = vpack.c.b16 %v2391, %v2390
          %v2401 = vpack.c.b16 %v2393, %v2392
          %2410 = vmatprep.subr.bf16.mxu0 0
          %2411 = vmatpush1.bf16.msra.mxu0 %v2394
          %2412 = vmatprep.subr.bf16.mxu0 0
          %2413 = vmatpush1.bf16.msra.mxu0 %v2395
          %2414 = vmatprep.subr.bf16.mxu0 0
          %2415 = vmatpush1.bf16.msra.mxu0 %v2396
          %2416 = vmatprep.subr.bf16.mxu0 0
          %2417 = vmatpush1.bf16.msra.mxu0 %v2397
          %2418 = vmatprep.subr.bf16.mxu0 0
          %2419 = vmatpush1.bf16.msra.mxu0 %v2398
          %2420 = vmatprep.subr.bf16.mxu0 0
          %2421 = vmatpush1.bf16.msra.mxu0 %v2399
          %2422 = vmatprep.subr.bf16.mxu0 0
          %2423 = vmatpush1.bf16.msra.mxu0 %v2400
          %2424 = vmatprep.subr.bf16.mxu0 0
          %2425 = vmatpush1.bf16.msra.mxu0 %v2401
          %2426 = vmatprep.subr.bf16.mxu0 0
          %2427 = vmatpush1.bf16.msra.mxu0 0
          %2428 = vmatprep.subr.bf16.mxu0 0
          %2429 = vmatpush1.bf16.msra.mxu0 0
          %2430 = vmatprep.subr.bf16.mxu0 0
          %2431 = vmatpush1.bf16.msra.mxu0 0
          %2432 = vmatprep.subr.bf16.mxu0 0
          %2433 = vmatpush1.bf16.msra.mxu0 0
          %2434 = vmatprep.subr.bf16.mxu0 0
          %2435 = vmatpush1.bf16.msra.mxu0 0
          %2436 = vmatprep.subr.bf16.mxu0 0
          %2437 = vmatpush1.bf16.msra.mxu0 0
          %2438 = vmatprep.subr.bf16.mxu0 0
          %2439 = vmatpush1.bf16.msra.mxu0 0
          %2440 = vmatprep.subr.bf16.mxu0 0
          %2441 = vmatpush1.bf16.msra.mxu0 0
          %2442 = vmatprep.mubr.bf16.mxu0 0
          %2443 = vmatmul.mubr.bf16.gmra.mrb[0].mxu0 %v2226
          %v2444 = vpop.f32.mrb[0].mxu0
          %v2445 = vadd.f32 0.0, %v2444
          %v2446 = vpop.f32.mrb[0].mxu0
          %v2447 = vpop.f32.mrb[0].mxu0
          %v2448 = vpop.f32.mrb[0].mxu0
          %2449 = vdwg.mxu0
          %v2466 = vunpack.c.l.b16 %v2250
          %v2467 = vunpack.c.l.b16 %v2251
          %v2468 = vunpack.c.l.b16 %v2252
          %v2469 = vunpack.c.l.b16 %v2253
          %v2470 = vunpack.c.l.b16 %v2254
          %v2471 = vunpack.c.l.b16 %v2255
          %v2472 = vunpack.c.l.b16 %v2256
          %v2473 = vunpack.c.l.b16 %v2257
          %v2474 = vunpack.c.l.b16 %v2258
          %v2475 = vunpack.c.l.b16 %v2259
          %v2476 = vunpack.c.l.b16 %v2260
          %v2477 = vunpack.c.l.b16 %v2261
          %v2478 = vunpack.c.l.b16 %v2262
          %v2479 = vunpack.c.l.b16 %v2263
          %v2480 = vunpack.c.l.b16 %v2264
          %v2481 = vunpack.c.l.b16 %v2265
          %v2482 = vpack.c.b16 %v2467, %v2466
          %v2483 = vpack.c.b16 %v2469, %v2468
          %v2484 = vpack.c.b16 %v2471, %v2470
          %v2485 = vpack.c.b16 %v2473, %v2472
          %v2486 = vpack.c.b16 %v2475, %v2474
          %v2487 = vpack.c.b16 %v2477, %v2476
          %v2488 = vpack.c.b16 %v2479, %v2478
          %v2489 = vpack.c.b16 %v2481, %v2480
          %2498 = vmatprep.subr.bf16.mxu0 0
          %2499 = vmatpush1.bf16.msra.mxu0 %v2482
          %2500 = vmatprep.subr.bf16.mxu0 0
          %2501 = vmatpush1.bf16.msra.mxu0 %v2483
          %2502 = vmatprep.subr.bf16.mxu0 0
          %2503 = vmatpush1.bf16.msra.mxu0 %v2484
          %2504 = vmatprep.subr.bf16.mxu0 0
          %2505 = vmatpush1.bf16.msra.mxu0 %v2485
          %2506 = vmatprep.subr.bf16.mxu0 0
          %2507 = vmatpush1.bf16.msra.mxu0 %v2486
          %2508 = vmatprep.subr.bf16.mxu0 0
          %2509 = vmatpush1.bf16.msra.mxu0 %v2487
          %2510 = vmatprep.subr.bf16.mxu0 0
          %2511 = vmatpush1.bf16.msra.mxu0 %v2488
          %2512 = vmatprep.subr.bf16.mxu0 0
          %2513 = vmatpush1.bf16.msra.mxu0 %v2489
          %2514 = vmatprep.subr.bf16.mxu0 0
          %2515 = vmatpush1.bf16.msra.mxu0 0
          %2516 = vmatprep.subr.bf16.mxu0 0
          %2517 = vmatpush1.bf16.msra.mxu0 0
          %2518 = vmatprep.subr.bf16.mxu0 0
          %2519 = vmatpush1.bf16.msra.mxu0 0
          %2520 = vmatprep.subr.bf16.mxu0 0
          %2521 = vmatpush1.bf16.msra.mxu0 0
          %2522 = vmatprep.subr.bf16.mxu0 0
          %2523 = vmatpush1.bf16.msra.mxu0 0
          %2524 = vmatprep.subr.bf16.mxu0 0
          %2525 = vmatpush1.bf16.msra.mxu0 0
          %2526 = vmatprep.subr.bf16.mxu0 0
          %2527 = vmatpush1.bf16.msra.mxu0 0
          %2528 = vmatprep.subr.bf16.mxu0 0
          %2529 = vmatpush1.bf16.msra.mxu0 0
          %2530 = vmatprep.mubr.bf16.mxu0 0
          %2531 = vmatmul.mubr.bf16.gmra.mrb[0].mxu0 %v2227
          %v2532 = vpop.f32.mrb[0].mxu0
          %v2533 = vadd.f32 0.0, %v2532
          %v2534 = vpop.f32.mrb[0].mxu0
          %v2535 = vpop.f32.mrb[0].mxu0
          %v2536 = vpop.f32.mrb[0].mxu0
          %2537 = vdwg.mxu0
          %v2554 = vunpack.c.l.b16 %v2266
          %v2555 = vunpack.c.l.b16 %v2267
          %v2556 = vunpack.c.l.b16 %v2268
          %v2557 = vunpack.c.l.b16 %v2269
          %v2558 = vunpack.c.l.b16 %v2270
          %v2559 = vunpack.c.l.b16 %v2271
          %v2560 = vunpack.c.l.b16 %v2272
          %v2561 = vunpack.c.l.b16 %v2273
          %v2562 = vunpack.c.l.b16 %v2274
          %v2563 = vunpack.c.l.b16 %v2275
          %v2564 = vunpack.c.l.b16 %v2276
          %v2565 = vunpack.c.l.b16 %v2277
          %v2566 = vunpack.c.l.b16 %v2278
          %v2567 = vunpack.c.l.b16 %v2279
          %v2568 = vunpack.c.l.b16 %v2280
          %v2569 = vunpack.c.l.b16 %v2281
          %v2570 = vpack.c.b16 %v2555, %v2554
          %v2571 = vpack.c.b16 %v2557, %v2556
          %v2572 = vpack.c.b16 %v2559, %v2558
          %v2573 = vpack.c.b16 %v2561, %v2560
          %v2574 = vpack.c.b16 %v2563, %v2562
          %v2575 = vpack.c.b16 %v2565, %v2564
          %v2576 = vpack.c.b16 %v2567, %v2566
          %v2577 = vpack.c.b16 %v2569, %v2568
          %2586 = vmatprep.subr.bf16.mxu0 0
          %2587 = vmatpush1.bf16.msra.mxu0 %v2570
          %2588 = vmatprep.subr.bf16.mxu0 0
          %2589 = vmatpush1.bf16.msra.mxu0 %v2571
          %2590 = vmatprep.subr.bf16.mxu0 0
          %2591 = vmatpush1.bf16.msra.mxu0 %v2572
          %2592 = vmatprep.subr.bf16.mxu0 0
          %2593 = vmatpush1.bf16.msra.mxu0 %v2573
          %2594 = vmatprep.subr.bf16.mxu0 0
          %2595 = vmatpush1.bf16.msra.mxu0 %v2574
          %2596 = vmatprep.subr.bf16.mxu0 0
          %2597 = vmatpush1.bf16.msra.mxu0 %v2575
          %2598 = vmatprep.subr.bf16.mxu0 0
          %2599 = vmatpush1.bf16.msra.mxu0 %v2576
          %2600 = vmatprep.subr.bf16.mxu0 0
          %2601 = vmatpush1.bf16.msra.mxu0 %v2577
          %2602 = vmatprep.subr.bf16.mxu0 0
          %2603 = vmatpush1.bf16.msra.mxu0 0
          %2604 = vmatprep.subr.bf16.mxu0 0
          %2605 = vmatpush1.bf16.msra.mxu0 0
          %2606 = vmatprep.subr.bf16.mxu0 0
          %2607 = vmatpush1.bf16.msra.mxu0 0
          %2608 = vmatprep.subr.bf16.mxu0 0
          %2609 = vmatpush1.bf16.msra.mxu0 0
          %2610 = vmatprep.subr.bf16.mxu0 0
          %2611 = vmatpush1.bf16.msra.mxu0 0
          %2612 = vmatprep.subr.bf16.mxu0 0
          %2613 = vmatpush1.bf16.msra.mxu0 0
          %2614 = vmatprep.subr.bf16.mxu0 0
          %2615 = vmatpush1.bf16.msra.mxu0 0
          %2616 = vmatprep.subr.bf16.mxu0 0
          %2617 = vmatpush1.bf16.msra.mxu0 0
          %2618 = vmatprep.mubr.bf16.mxu0 0
          %2619 = vmatmul.mubr.bf16.gmra.mrb[0].mxu0 %v2228
          %v2620 = vpop.f32.mrb[0].mxu0
          %v2621 = vadd.f32 0.0, %v2620
          %v2622 = vpop.f32.mrb[0].mxu0
          %v2623 = vpop.f32.mrb[0].mxu0
          %v2624 = vpop.f32.mrb[0].mxu0
          %2625 = vdwg.mxu0
          %v2642 = vunpack.c.l.b16 %v2282
          %v2643 = vunpack.c.l.b16 %v2283
          %v2644 = vunpack.c.l.b16 %v2284
          %v2645 = vunpack.c.l.b16 %v2285
          %v2646 = vunpack.c.l.b16 %v2286
          %v2647 = vunpack.c.l.b16 %v2287
          %v2648 = vunpack.c.l.b16 %v2288
          %v2649 = vunpack.c.l.b16 %v2289
          %v2650 = vunpack.c.l.b16 %v2290
          %v2651 = vunpack.c.l.b16 %v2291
          %v2652 = vunpack.c.l.b16 %v2292
          %v2653 = vunpack.c.l.b16 %v2293
          %v2654 = vunpack.c.l.b16 %v2294
          %v2655 = vunpack.c.l.b16 %v2295
          %v2656 = vunpack.c.l.b16 %v2296
          %v2657 = vunpack.c.l.b16 %v2297
          %v2658 = vpack.c.b16 %v2643, %v2642
          %v2659 = vpack.c.b16 %v2645, %v2644
          %v2660 = vpack.c.b16 %v2647, %v2646
          %v2661 = vpack.c.b16 %v2649, %v2648
          %v2662 = vpack.c.b16 %v2651, %v2650
          %v2663 = vpack.c.b16 %v2653, %v2652
          %v2664 = vpack.c.b16 %v2655, %v2654
          %v2665 = vpack.c.b16 %v2657, %v2656
          %2674 = vmatprep.subr.bf16.mxu0 0
          %2675 = vmatpush1.bf16.msra.mxu0 %v2658
          %2676 = vmatprep.subr.bf16.mxu0 0
          %2677 = vmatpush1.bf16.msra.mxu0 %v2659
          %2678 = vmatprep.subr.bf16.mxu0 0
          %2679 = vmatpush1.bf16.msra.mxu0 %v2660
          %2680 = vmatprep.subr.bf16.mxu0 0
          %2681 = vmatpush1.bf16.msra.mxu0 %v2661
          %2682 = vmatprep.subr.bf16.mxu0 0
          %2683 = vmatpush1.bf16.msra.mxu0 %v2662
          %2684 = vmatprep.subr.bf16.mxu0 0
          %2685 = vmatpush1.bf16.msra.mxu0 %v2663
          %2686 = vmatprep.subr.bf16.mxu0 0
          %2687 = vmatpush1.bf16.msra.mxu0 %v2664
          %2688 = vmatprep.subr.bf16.mxu0 0
          %2689 = vmatpush1.bf16.msra.mxu0 %v2665
          %2690 = vmatprep.subr.bf16.mxu0 0
          %2691 = vmatpush1.bf16.msra.mxu0 0
          %2692 = vmatprep.subr.bf16.mxu0 0
          %2693 = vmatpush1.bf16.msra.mxu0 0
          %2694 = vmatprep.subr.bf16.mxu0 0
          %2695 = vmatpush1.bf16.msra.mxu0 0
          %2696 = vmatprep.subr.bf16.mxu0 0
          %2697 = vmatpush1.bf16.msra.mxu0 0
          %2698 = vmatprep.subr.bf16.mxu0 0
          %2699 = vmatpush1.bf16.msra.mxu0 0
          %2700 = vmatprep.subr.bf16.mxu0 0
          %2701 = vmatpush1.bf16.msra.mxu0 0
          %2702 = vmatprep.subr.bf16.mxu0 0
          %2703 = vmatpush1.bf16.msra.mxu0 0
          %2704 = vmatprep.subr.bf16.mxu0 0
          %2705 = vmatpush1.bf16.msra.mxu0 0
          %2706 = vmatprep.mubr.bf16.mxu0 0
          %2707 = vmatmul.mubr.bf16.gmra.mrb[0].mxu0 %v2229
          %v2708 = vpop.f32.mrb[0].mxu0
          %v2709 = vadd.f32 0.0, %v2708
          %v2710 = vpop.f32.mrb[0].mxu0
          %v2711 = vpop.f32.mrb[0].mxu0
          %v2712 = vpop.f32.mrb[0].mxu0
          %2713 = vdwg.mxu0
          %v2730 = vunpack.c.l.b16 %v2298
          %v2731 = vunpack.c.l.b16 %v2299
          %v2732 = vunpack.c.l.b16 %v2300
          %v2733 = vunpack.c.l.b16 %v2301
          %v2734 = vunpack.c.l.b16 %v2302
          %v2735 = vunpack.c.l.b16 %v2303
          %v2736 = vunpack.c.l.b16 %v2304
          %v2737 = vunpack.c.l.b16 %v2305
          %v2738 = vunpack.c.l.b16 %v2306
          %v2739 = vunpack.c.l.b16 %v2307
          %v2740 = vunpack.c.l.b16 %v2308
          %v2741 = vunpack.c.l.b16 %v2309
          %v2742 = vunpack.c.l.b16 %v2310
          %v2743 = vunpack.c.l.b16 %v2311
          %v2744 = vunpack.c.l.b16 %v2312
          %v2745 = vunpack.c.l.b16 %v2313
          %v2746 = vpack.c.b16 %v2731, %v2730
          %v2747 = vpack.c.b16 %v2733, %v2732
          %v2748 = vpack.c.b16 %v2735, %v2734
          %v2749 = vpack.c.b16 %v2737, %v2736
          %v2750 = vpack.c.b16 %v2739, %v2738
          %v2751 = vpack.c.b16 %v2741, %v2740
          %v2752 = vpack.c.b16 %v2743, %v2742
          %v2753 = vpack.c.b16 %v2745, %v2744
          %2762 = vmatprep.subr.bf16.mxu0 0
          %2763 = vmatpush1.bf16.msra.mxu0 %v2746
          %2764 = vmatprep.subr.bf16.mxu0 0
          %2765 = vmatpush1.bf16.msra.mxu0 %v2747
          %2766 = vmatprep.subr.bf16.mxu0 0
          %2767 = vmatpush1.bf16.msra.mxu0 %v2748
          %2768 = vmatprep.subr.bf16.mxu0 0
          %2769 = vmatpush1.bf16.msra.mxu0 %v2749
          %2770 = vmatprep.subr.bf16.mxu0 0
          %2771 = vmatpush1.bf16.msra.mxu0 %v2750
          %2772 = vmatprep.subr.bf16.mxu0 0
          %2773 = vmatpush1.bf16.msra.mxu0 %v2751
          %2774 = vmatprep.subr.bf16.mxu0 0
          %2775 = vmatpush1.bf16.msra.mxu0 %v2752
          %2776 = vmatprep.subr.bf16.mxu0 0
          %2777 = vmatpush1.bf16.msra.mxu0 %v2753
          %2778 = vmatprep.subr.bf16.mxu0 0
          %2779 = vmatpush1.bf16.msra.mxu0 0
          %2780 = vmatprep.subr.bf16.mxu0 0
          %2781 = vmatpush1.bf16.msra.mxu0 0
          %2782 = vmatprep.subr.bf16.mxu0 0
          %2783 = vmatpush1.bf16.msra.mxu0 0
          %2784 = vmatprep.subr.bf16.mxu0 0
          %2785 = vmatpush1.bf16.msra.mxu0 0
          %2786 = vmatprep.subr.bf16.mxu0 0
          %2787 = vmatpush1.bf16.msra.mxu0 0
          %2788 = vmatprep.subr.bf16.mxu0 0
          %2789 = vmatpush1.bf16.msra.mxu0 0
          %2790 = vmatprep.subr.bf16.mxu0 0
          %2791 = vmatpush1.bf16.msra.mxu0 0
          %2792 = vmatprep.subr.bf16.mxu0 0
          %2793 = vmatpush1.bf16.msra.mxu0 0
          %2794 = vmatprep.mubr.bf16.mxu0 0
          %2795 = vmatmul.mubr.bf16.gmra.mrb[0].mxu0 %v2230
          %v2796 = vpop.f32.mrb[0].mxu0
          %v2797 = vadd.f32 0.0, %v2796
          %v2798 = vpop.f32.mrb[0].mxu0
          %v2799 = vpop.f32.mrb[0].mxu0
          %v2800 = vpop.f32.mrb[0].mxu0
          %2801 = vdwg.mxu0
          %v2818 = vunpack.c.l.b16 %v2314
          %v2819 = vunpack.c.l.b16 %v2315
          %v2820 = vunpack.c.l.b16 %v2316
          %v2821 = vunpack.c.l.b16 %v2317
          %v2822 = vunpack.c.l.b16 %v2318
          %v2823 = vunpack.c.l.b16 %v2319
          %v2824 = vunpack.c.l.b16 %v2320
          %v2825 = vunpack.c.l.b16 %v2321
          %v2826 = vunpack.c.l.b16 %v2322
          %v2827 = vunpack.c.l.b16 %v2323
          %v2828 = vunpack.c.l.b16 %v2324
          %v2829 = vunpack.c.l.b16 %v2325
          %v2830 = vunpack.c.l.b16 %v2326
          %v2831 = vunpack.c.l.b16 %v2327
          %v2832 = vunpack.c.l.b16 %v2328
          %v2833 = vunpack.c.l.b16 %v2329
          %v2834 = vpack.c.b16 %v2819, %v2818
          %v2835 = vpack.c.b16 %v2821, %v2820
          %v2836 = vpack.c.b16 %v2823, %v2822
          %v2837 = vpack.c.b16 %v2825, %v2824
          %v2838 = vpack.c.b16 %v2827, %v2826
          %v2839 = vpack.c.b16 %v2829, %v2828
          %v2840 = vpack.c.b16 %v2831, %v2830
          %v2841 = vpack.c.b16 %v2833, %v2832
          %2850 = vmatprep.subr.bf16.mxu0 0
          %2851 = vmatpush1.bf16.msra.mxu0 %v2834
          %2852 = vmatprep.subr.bf16.mxu0 0
          %2853 = vmatpush1.bf16.msra.mxu0 %v2835
          %2854 = vmatprep.subr.bf16.mxu0 0
          %2855 = vmatpush1.bf16.msra.mxu0 %v2836
          %2856 = vmatprep.subr.bf16.mxu0 0
          %2857 = vmatpush1.bf16.msra.mxu0 %v2837
          %2858 = vmatprep.subr.bf16.mxu0 0
          %2859 = vmatpush1.bf16.msra.mxu0 %v2838
          %2860 = vmatprep.subr.bf16.mxu0 0
          %2861 = vmatpush1.bf16.msra.mxu0 %v2839
          %2862 = vmatprep.subr.bf16.mxu0 0
          %2863 = vmatpush1.bf16.msra.mxu0 %v2840
          %2864 = vmatprep.subr.bf16.mxu0 0
          %2865 = vmatpush1.bf16.msra.mxu0 %v2841
          %2866 = vmatprep.subr.bf16.mxu0 0
          %2867 = vmatpush1.bf16.msra.mxu0 0
          %2868 = vmatprep.subr.bf16.mxu0 0
          %2869 = vmatpush1.bf16.msra.mxu0 0
          %2870 = vmatprep.subr.bf16.mxu0 0
          %2871 = vmatpush1.bf16.msra.mxu0 0
          %2872 = vmatprep.subr.bf16.mxu0 0
          %2873 = vmatpush1.bf16.msra.mxu0 0
          %2874 = vmatprep.subr.bf16.mxu0 0
          %2875 = vmatpush1.bf16.msra.mxu0 0
          %2876 = vmatprep.subr.bf16.mxu0 0
          %2877 = vmatpush1.bf16.msra.mxu0 0
          %2878 = vmatprep.subr.bf16.mxu0 0
          %2879 = vmatpush1.bf16.msra.mxu0 0
          %2880 = vmatprep.subr.bf16.mxu0 0
          %2881 = vmatpush1.bf16.msra.mxu0 0
          %2882 = vmatprep.mubr.bf16.mxu0 0
          %2883 = vmatmul.mubr.bf16.gmra.mrb[0].mxu0 %v2231
          %v2884 = vpop.f32.mrb[0].mxu0
          %v2885 = vadd.f32 0.0, %v2884
          %v2886 = vpop.f32.mrb[0].mxu0
          %v2887 = vpop.f32.mrb[0].mxu0
          %v2888 = vpop.f32.mrb[0].mxu0
          %2889 = vdwg.mxu0
          %v2906 = vunpack.c.l.b16 %v2330
          %v2907 = vunpack.c.l.b16 %v2331
          %v2908 = vunpack.c.l.b16 %v2332
          %v2909 = vunpack.c.l.b16 %v2333
          %v2910 = vunpack.c.l.b16 %v2334
          %v2911 = vunpack.c.l.b16 %v2335
          %v2912 = vunpack.c.l.b16 %v2336
          %v2913 = vunpack.c.l.b16 %v2337
          %v2914 = vunpack.c.l.b16 %v2338
          %v2915 = vunpack.c.l.b16 %v2339
          %v2916 = vunpack.c.l.b16 %v2340
          %v2917 = vunpack.c.l.b16 %v2341
          %v2918 = vunpack.c.l.b16 %v2342
          %v2919 = vunpack.c.l.b16 %v2343
          %v2920 = vunpack.c.l.b16 %v2344
          %v2921 = vunpack.c.l.b16 %v2345
          %v2922 = vpack.c.b16 %v2907, %v2906
          %v2923 = vpack.c.b16 %v2909, %v2908
          %v2924 = vpack.c.b16 %v2911, %v2910
          %v2925 = vpack.c.b16 %v2913, %v2912
          %v2926 = vpack.c.b16 %v2915, %v2914
          %v2927 = vpack.c.b16 %v2917, %v2916
          %v2928 = vpack.c.b16 %v2919, %v2918
          %v2929 = vpack.c.b16 %v2921, %v2920
          %2938 = vmatprep.subr.bf16.mxu0 0
          %2939 = vmatpush1.bf16.msra.mxu0 %v2922
          %2940 = vmatprep.subr.bf16.mxu0 0
          %2941 = vmatpush1.bf16.msra.mxu0 %v2923
          %2942 = vmatprep.subr.bf16.mxu0 0
          %2943 = vmatpush1.bf16.msra.mxu0 %v2924
          %2944 = vmatprep.subr.bf16.mxu0 0
          %2945 = vmatpush1.bf16.msra.mxu0 %v2925
          %2946 = vmatprep.subr.bf16.mxu0 0
          %2947 = vmatpush1.bf16.msra.mxu0 %v2926
          %2948 = vmatprep.subr.bf16.mxu0 0
          %2949 = vmatpush1.bf16.msra.mxu0 %v2927
          %2950 = vmatprep.subr.bf16.mxu0 0
          %2951 = vmatpush1.bf16.msra.mxu0 %v2928
          %2952 = vmatprep.subr.bf16.mxu0 0
          %2953 = vmatpush1.bf16.msra.mxu0 %v2929
          %2954 = vmatprep.subr.bf16.mxu0 0
          %2955 = vmatpush1.bf16.msra.mxu0 0
          %2956 = vmatprep.subr.bf16.mxu0 0
          %2957 = vmatpush1.bf16.msra.mxu0 0
          %2958 = vmatprep.subr.bf16.mxu0 0
          %2959 = vmatpush1.bf16.msra.mxu0 0
          %2960 = vmatprep.subr.bf16.mxu0 0
          %2961 = vmatpush1.bf16.msra.mxu0 0
          %2962 = vmatprep.subr.bf16.mxu0 0
          %2963 = vmatpush1.bf16.msra.mxu0 0
          %2964 = vmatprep.subr.bf16.mxu0 0
          %2965 = vmatpush1.bf16.msra.mxu0 0
          %2966 = vmatprep.subr.bf16.mxu0 0
          %2967 = vmatpush1.bf16.msra.mxu0 0
          %2968 = vmatprep.subr.bf16.mxu0 0
          %2969 = vmatpush1.bf16.msra.mxu0 0
          %2970 = vmatprep.mubr.bf16.mxu0 0
          %2971 = vmatmul.mubr.bf16.gmra.mrb[0].mxu0 %v2232
          %v2972 = vpop.f32.mrb[0].mxu0
          %v2973 = vadd.f32 0.0, %v2972
          %v2974 = vpop.f32.mrb[0].mxu0
          %v2975 = vpop.f32.mrb[0].mxu0
          %v2976 = vpop.f32.mrb[0].mxu0
          %2977 = vdwg.mxu0
          %v2994 = vunpack.c.l.b16 %v2346
          %v2995 = vunpack.c.l.b16 %v2347
          %v2996 = vunpack.c.l.b16 %v2348
          %v2997 = vunpack.c.l.b16 %v2349
          %v2998 = vunpack.c.l.b16 %v2350
          %v2999 = vunpack.c.l.b16 %v2351
          %v3000 = vunpack.c.l.b16 %v2352
          %v3001 = vunpack.c.l.b16 %v2353
          %v3002 = vunpack.c.l.b16 %v2354
          %v3003 = vunpack.c.l.b16 %v2355
          %v3004 = vunpack.c.l.b16 %v2356
          %v3005 = vunpack.c.l.b16 %v2357
          %v3006 = vunpack.c.l.b16 %v2358
          %v3007 = vunpack.c.l.b16 %v2359
          %v3008 = vunpack.c.l.b16 %v2360
          %v3009 = vunpack.c.l.b16 %v2361
          %v3010 = vpack.c.b16 %v2995, %v2994
          %v3011 = vpack.c.b16 %v2997, %v2996
          %v3012 = vpack.c.b16 %v2999, %v2998
          %v3013 = vpack.c.b16 %v3001, %v3000
          %v3014 = vpack.c.b16 %v3003, %v3002
          %v3015 = vpack.c.b16 %v3005, %v3004
          %v3016 = vpack.c.b16 %v3007, %v3006
          %v3017 = vpack.c.b16 %v3009, %v3008
          %3026 = vmatprep.subr.bf16.mxu0 0
          %3027 = vmatpush1.bf16.msra.mxu0 %v3010
          %3028 = vmatprep.subr.bf16.mxu0 0
          %3029 = vmatpush1.bf16.msra.mxu0 %v3011
          %3030 = vmatprep.subr.bf16.mxu0 0
          %3031 = vmatpush1.bf16.msra.mxu0 %v3012
          %3032 = vmatprep.subr.bf16.mxu0 0
          %3033 = vmatpush1.bf16.msra.mxu0 %v3013
          %3034 = vmatprep.subr.bf16.mxu0 0
          %3035 = vmatpush1.bf16.msra.mxu0 %v3014
          %3036 = vmatprep.subr.bf16.mxu0 0
          %3037 = vmatpush1.bf16.msra.mxu0 %v3015
          %3038 = vmatprep.subr.bf16.mxu0 0
          %3039 = vmatpush1.bf16.msra.mxu0 %v3016
          %3040 = vmatprep.subr.bf16.mxu0 0
          %3041 = vmatpush1.bf16.msra.mxu0 %v3017
          %3042 = vmatprep.subr.bf16.mxu0 0
          %3043 = vmatpush1.bf16.msra.mxu0 0
          %3044 = vmatprep.subr.bf16.mxu0 0
          %3045 = vmatpush1.bf16.msra.mxu0 0
          %3046 = vmatprep.subr.bf16.mxu0 0
          %3047 = vmatpush1.bf16.msra.mxu0 0
          %3048 = vmatprep.subr.bf16.mxu0 0
          %3049 = vmatpush1.bf16.msra.mxu0 0
          %3050 = vmatprep.subr.bf16.mxu0 0
          %3051 = vmatpush1.bf16.msra.mxu0 0
          %3052 = vmatprep.subr.bf16.mxu0 0
          %3053 = vmatpush1.bf16.msra.mxu0 0
          %3054 = vmatprep.subr.bf16.mxu0 0
          %3055 = vmatpush1.bf16.msra.mxu0 0
          %3056 = vmatprep.subr.bf16.mxu0 0
          %3057 = vmatpush1.bf16.msra.mxu0 0
          %3058 = vmatprep.mubr.bf16.mxu0 0
          %3059 = vmatmul.mubr.bf16.gmra.mrb[0].mxu0 %v2233
          %v3060 = vpop.f32.mrb[0].mxu0
          %v3061 = vadd.f32 0.0, %v3060
          %v3062 = vpop.f32.mrb[0].mxu0
          %v3063 = vpop.f32.mrb[0].mxu0
          %v3064 = vpop.f32.mrb[0].mxu0
          %3065 = vdwg.mxu0
          %v3066 = vpack.c.bf16 %v1225, %v1225
          %v3067 = vld [vmem:[#allocation16] sm:$0xf]
          %v3068 = vld [vmem:[#allocation16 + $0x4] sm:$0xf]
          %v3069 = vld [vmem:[#allocation16 + $0x8] sm:$0xf]
          %v3070 = vld [vmem:[#allocation16 + $0xc] sm:$0xf]
          %v3071 = vld [vmem:[#allocation16 + $0x10] sm:$0xf]
          %v3072 = vld [vmem:[#allocation16 + $0x14] sm:$0xf]
          %v3073 = vld [vmem:[#allocation16 + $0x18] sm:$0xf]
          %v3074 = vld [vmem:[#allocation16 + $0x1c] sm:$0xf]
          %v3075 = vld [vmem:[#allocation16 + $0x20] sm:$0xf]
          %v3076 = vld [vmem:[#allocation16 + $0x24] sm:$0xf]
          %v3077 = vld [vmem:[#allocation16 + $0x28] sm:$0xf]
          %v3078 = vld [vmem:[#allocation16 + $0x2c] sm:$0xf]
          %v3079 = vld [vmem:[#allocation16 + $0x30] sm:$0xf]
          %v3080 = vld [vmem:[#allocation16 + $0x34] sm:$0xf]
          %v3081 = vld [vmem:[#allocation16 + $0x38] sm:$0xf]
          %v3082 = vld [vmem:[#allocation16 + $0x3c] sm:$0xf]
          %v3083 = vpack.c.bf16 %v2445, %v2445
          %v3084 = vpack.c.bf16 %v2533, %v2533
          %v3085 = vpack.c.bf16 %v2621, %v2621
          %v3086 = vpack.c.bf16 %v2709, %v2709
          %v3087 = vpack.c.bf16 %v2797, %v2797
          %v3088 = vpack.c.bf16 %v2885, %v2885
          %v3089 = vpack.c.bf16 %v2973, %v2973
          %v3090 = vpack.c.bf16 %v3061, %v3061
          %v3091 = vld [vmem:[#allocation17] sm:$0xf]
          %v3092 = vld [vmem:[#allocation17 + $0x4] sm:$0xf]
          %v3093 = vld [vmem:[#allocation17 + $0x8] sm:$0xf]
          %v3094 = vld [vmem:[#allocation17 + $0xc] sm:$0xf]
          %v3095 = vld [vmem:[#allocation17 + $0x10] sm:$0xf]
          %v3096 = vld [vmem:[#allocation17 + $0x14] sm:$0xf]
          %v3097 = vld [vmem:[#allocation17 + $0x18] sm:$0xf]
          %v3098 = vld [vmem:[#allocation17 + $0x1c] sm:$0xf]
          %v3099 = vld [vmem:[#allocation17 + $0x20] sm:$0xf]
          %v3100 = vld [vmem:[#allocation17 + $0x24] sm:$0xf]
          %v3101 = vld [vmem:[#allocation17 + $0x28] sm:$0xf]
          %v3102 = vld [vmem:[#allocation17 + $0x2c] sm:$0xf]
          %v3103 = vld [vmem:[#allocation17 + $0x30] sm:$0xf]
          %v3104 = vld [vmem:[#allocation17 + $0x34] sm:$0xf]
          %v3105 = vld [vmem:[#allocation17 + $0x38] sm:$0xf]
          %v3106 = vld [vmem:[#allocation17 + $0x3c] sm:$0xf]
          %v3115 = vunpack.c.l.b16 %v3083
          %v3116 = vunpack.c.l.b16 %v3084
          %v3117 = vunpack.c.l.b16 %v3085
          %v3118 = vunpack.c.l.b16 %v3086
          %v3119 = vunpack.c.l.b16 %v3087
          %v3120 = vunpack.c.l.b16 %v3088
          %v3121 = vunpack.c.l.b16 %v3089
          %v3122 = vunpack.c.l.b16 %v3090
          %v3123 = vrot.slane %v3116, 7
          %v3124 = vsel %vm2137, %v3123, %v3115
          %v3125 = vrot.slane %v3117, 6
          %v3126 = vsel %vm2140, %v3125, %v3124
          %v3127 = vrot.slane %v3118, 5
          %v3128 = vsel %vm2143, %v3127, %v3126
          %v3129 = vrot.slane %v3119, 4
          %v3130 = vsel %vm2146, %v3129, %v3128
          %v3131 = vrot.slane %v3120, 3
          %v3132 = vsel %vm2149, %v3131, %v3130
          %v3133 = vrot.slane %v3121, 2
          %v3134 = vsel %vm2152, %v3133, %v3132
          %v3135 = vrot.slane %v3122, 1
          %v3136 = vsel %vm2155, %v3135, %v3134
          %v3137 = vpack.c.b16 %v3136, %v3136
          %v3155 = vunpack.c.l.b16 %v3091
          %v3156 = vunpack.c.l.b16 %v3092
          %v3157 = vunpack.c.l.b16 %v3093
          %v3158 = vunpack.c.l.b16 %v3094
          %v3159 = vunpack.c.l.b16 %v3095
          %v3160 = vunpack.c.l.b16 %v3096
          %v3161 = vunpack.c.l.b16 %v3097
          %v3162 = vunpack.c.l.b16 %v3098
          %v3163 = vunpack.c.l.b16 %v3099
          %v3164 = vunpack.c.l.b16 %v3100
          %v3165 = vunpack.c.l.b16 %v3101
          %v3166 = vunpack.c.l.b16 %v3102
          %v3167 = vunpack.c.l.b16 %v3103
          %v3168 = vunpack.c.l.b16 %v3104
          %v3169 = vunpack.c.l.b16 %v3105
          %v3170 = vunpack.c.l.b16 %v3106
          %v3171 = vpack.c.b16 %v3156, %v3155
          %v3172 = vpack.c.b16 %v3158, %v3157
          %v3173 = vpack.c.b16 %v3160, %v3159
          %v3174 = vpack.c.b16 %v3162, %v3161
          %v3175 = vpack.c.b16 %v3164, %v3163
          %v3176 = vpack.c.b16 %v3166, %v3165
          %v3177 = vpack.c.b16 %v3168, %v3167
          %v3178 = vpack.c.b16 %v3170, %v3169
          %3187 = vmatprep.subr.bf16.mxu0 0
          %3188 = vmatpush1.bf16.msra.mxu0 %v3171
          %3189 = vmatprep.subr.bf16.mxu0 0
          %3190 = vmatpush1.bf16.msra.mxu0 %v3172
          %3191 = vmatprep.subr.bf16.mxu0 0
          %3192 = vmatpush1.bf16.msra.mxu0 %v3173
          %3193 = vmatprep.subr.bf16.mxu0 0
          %3194 = vmatpush1.bf16.msra.mxu0 %v3174
          %3195 = vmatprep.subr.bf16.mxu0 0
          %3196 = vmatpush1.bf16.msra.mxu0 %v3175
          %3197 = vmatprep.subr.bf16.mxu0 0
          %3198 = vmatpush1.bf16.msra.mxu0 %v3176
          %3199 = vmatprep.subr.bf16.mxu0 0
          %3200 = vmatpush1.bf16.msra.mxu0 %v3177
          %3201 = vmatprep.subr.bf16.mxu0 0
          %3202 = vmatpush1.bf16.msra.mxu0 %v3178
          %3203 = vmatprep.subr.bf16.mxu0 0
          %3204 = vmatpush1.bf16.msra.mxu0 0
          %3205 = vmatprep.subr.bf16.mxu0 0
          %3206 = vmatpush1.bf16.msra.mxu0 0
          %3207 = vmatprep.subr.bf16.mxu0 0
          %3208 = vmatpush1.bf16.msra.mxu0 0
          %3209 = vmatprep.subr.bf16.mxu0 0
          %3210 = vmatpush1.bf16.msra.mxu0 0
          %3211 = vmatprep.subr.bf16.mxu0 0
          %3212 = vmatpush1.bf16.msra.mxu0 0
          %3213 = vmatprep.subr.bf16.mxu0 0
          %3214 = vmatpush1.bf16.msra.mxu0 0
          %3215 = vmatprep.subr.bf16.mxu0 0
          %3216 = vmatpush1.bf16.msra.mxu0 0
          %3217 = vmatprep.subr.bf16.mxu0 0
          %3218 = vmatpush1.bf16.msra.mxu0 0
          %3219 = vmatprep.mubr.bf16.mxu0 0
          %3220 = vmatmul.mubr.bf16.gmra.mrb[0].mxu0 %v3137
          %v3221 = vpop.f32.mrb[0].mxu0
          %v3222 = vadd.f32 0.0, %v3221
          %v3223 = vpop.f32.mrb[0].mxu0
          %v3224 = vpop.f32.mrb[0].mxu0
          %v3225 = vpop.f32.mrb[0].mxu0
          %3226 = vdwg.mxu0
          %v3243 = vunpack.c.l.b16 %v3067
          %v3244 = vunpack.c.l.b16 %v3068
          %v3245 = vunpack.c.l.b16 %v3069
          %v3246 = vunpack.c.l.b16 %v3070
          %v3247 = vunpack.c.l.b16 %v3071
          %v3248 = vunpack.c.l.b16 %v3072
          %v3249 = vunpack.c.l.b16 %v3073
          %v3250 = vunpack.c.l.b16 %v3074
          %v3251 = vunpack.c.l.b16 %v3075
          %v3252 = vunpack.c.l.b16 %v3076
          %v3253 = vunpack.c.l.b16 %v3077
          %v3254 = vunpack.c.l.b16 %v3078
          %v3255 = vunpack.c.l.b16 %v3079
          %v3256 = vunpack.c.l.b16 %v3080
          %v3257 = vunpack.c.l.b16 %v3081
          %v3258 = vunpack.c.l.b16 %v3082
          %v3259 = vpack.c.b16 %v3244, %v3243
          %v3260 = vpack.c.b16 %v3246, %v3245
          %v3261 = vpack.c.b16 %v3248, %v3247
          %v3262 = vpack.c.b16 %v3250, %v3249
          %v3263 = vpack.c.b16 %v3252, %v3251
          %v3264 = vpack.c.b16 %v3254, %v3253
          %v3265 = vpack.c.b16 %v3256, %v3255
          %v3266 = vpack.c.b16 %v3258, %v3257
          %3275 = vmatprep.subr.bf16.mxu0 0
          %3276 = vmatpush1.bf16.msra.mxu0 %v3259
          %3277 = vmatprep.subr.bf16.mxu0 0
          %3278 = vmatpush1.bf16.msra.mxu0 %v3260
          %3279 = vmatprep.subr.bf16.mxu0 0
          %3280 = vmatpush1.bf16.msra.mxu0 %v3261
          %3281 = vmatprep.subr.bf16.mxu0 0
          %3282 = vmatpush1.bf16.msra.mxu0 %v3262
          %3283 = vmatprep.subr.bf16.mxu0 0
          %3284 = vmatpush1.bf16.msra.mxu0 %v3263
          %3285 = vmatprep.subr.bf16.mxu0 0
          %3286 = vmatpush1.bf16.msra.mxu0 %v3264
          %3287 = vmatprep.subr.bf16.mxu0 0
          %3288 = vmatpush1.bf16.msra.mxu0 %v3265
          %3289 = vmatprep.subr.bf16.mxu0 0
          %3290 = vmatpush1.bf16.msra.mxu0 %v3266
          %3291 = vmatprep.subr.bf16.mxu0 0
          %3292 = vmatpush1.bf16.msra.mxu0 0
          %3293 = vmatprep.subr.bf16.mxu0 0
          %3294 = vmatpush1.bf16.msra.mxu0 0
          %3295 = vmatprep.subr.bf16.mxu0 0
          %3296 = vmatpush1.bf16.msra.mxu0 0
          %3297 = vmatprep.subr.bf16.mxu0 0
          %3298 = vmatpush1.bf16.msra.mxu0 0
          %3299 = vmatprep.subr.bf16.mxu0 0
          %3300 = vmatpush1.bf16.msra.mxu0 0
          %3301 = vmatprep.subr.bf16.mxu0 0
          %3302 = vmatpush1.bf16.msra.mxu0 0
          %3303 = vmatprep.subr.bf16.mxu0 0
          %3304 = vmatpush1.bf16.msra.mxu0 0
          %3305 = vmatprep.subr.bf16.mxu0 0
          %3306 = vmatpush1.bf16.msra.mxu0 0
          %3307 = vmatprep.mubr.bf16.mxu0 0
          %3308 = vmatmul.mubr.bf16.gmra.mrb[0].mxu0 %v3066
          %v3309 = vpop.f32.mrb[0].mxu0
          %v3310 = vadd.f32 %v3222, %v3309
          %v3311 = vpop.f32.mrb[0].mxu0
          %v3312 = vpop.f32.mrb[0].mxu0
          %v3313 = vpop.f32.mrb[0].mxu0
          %3314 = vdwg.mxu0
          %v3315 = vld [vmem:[%s10] sm:$0x1]
          %v3317 = vlaneseq
          %v3318 = vshrl.u32 %v3317, 7
          %v3319 = vsub.s32 0, %v3318
          %v3320 = vrot.slane %v3315, %v3319
          %v3322 = vadd.f32 %v3310, %v3320
          %v3323 = vtanh.pop %v3322
          %3324 = vst [vmem:[#allocation2] sm:$0xff] %v3323
          %vm3325 = vcmask 7168
          %3326 = vst.msk [vmem:[#allocation3] sm:$0xff] %vm3325, -1e+30
          %3327 = vst.msk [vmem:[#allocation4] sm:$0xff] %vm3325, 0.0
        $region112: #{tpu_custom_call.1} parent=71 // pred_fallthru
          _
        %v3328 = vld [vmem:[#allocation2] sm:$0xff]
        %v3329 = vpack.c.bf16 %v3328, %v3328
        %v3330 = vld [vmem:[%s610] sm:$0xf]
        %v3331 = vld [vmem:[%s610 + $0x4] sm:$0xf]
        %v3332 = vld [vmem:[%s610 + $0x8] sm:$0xf]
        %v3333 = vld [vmem:[%s610 + $0xc] sm:$0xf]
        %v3334 = vld [vmem:[%s610 + $0x10] sm:$0xf]
        %v3335 = vld [vmem:[%s610 + $0x14] sm:$0xf]
        %v3336 = vld [vmem:[%s610 + $0x18] sm:$0xf]
        %v3337 = vld [vmem:[%s610 + $0x1c] sm:$0xf]
        %v3338 = vld [vmem:[%s610 + $0x20] sm:$0xf]
        %v3339 = vld [vmem:[%s610 + $0x24] sm:$0xf]
        %v3340 = vld [vmem:[%s610 + $0x28] sm:$0xf]
        %v3341 = vld [vmem:[%s610 + $0x2c] sm:$0xf]
        %v3342 = vld [vmem:[%s610 + $0x30] sm:$0xf]
        %v3343 = vld [vmem:[%s610 + $0x34] sm:$0xf]
        %v3344 = vld [vmem:[%s610 + $0x38] sm:$0xf]
        %v3345 = vld [vmem:[%s610 + $0x3c] sm:$0xf]
        %v3346 = vld [vmem:[%s674] sm:$0x1]
        %v3348 = vlaneseq
        %v3349 = vshrl.u32 %v3348, 7
        %v3350 = vsub.s32 0, %v3349
        %v3351 = vrot.slane %v3346, %v3350
        %v3369 = vunpack.c.l.b16 %v3330
        %v3370 = vunpack.c.l.b16 %v3331
        %v3371 = vunpack.c.l.b16 %v3332
        %v3372 = vunpack.c.l.b16 %v3333
        %v3373 = vunpack.c.l.b16 %v3334
        %v3374 = vunpack.c.l.b16 %v3335
        %v3375 = vunpack.c.l.b16 %v3336
        %v3376 = vunpack.c.l.b16 %v3337
        %v3377 = vunpack.c.l.b16 %v3338
        %v3378 = vunpack.c.l.b16 %v3339
        %v3379 = vunpack.c.l.b16 %v3340
        %v3380 = vunpack.c.l.b16 %v3341
        %v3381 = vunpack.c.l.b16 %v3342
        %v3382 = vunpack.c.l.b16 %v3343
        %v3383 = vunpack.c.l.b16 %v3344
        %v3384 = vunpack.c.l.b16 %v3345
        %v3385 = vpack.c.b16 %v3370, %v3369
        %v3386 = vpack.c.b16 %v3372, %v3371
        %v3387 = vpack.c.b16 %v3374, %v3373
        %v3388 = vpack.c.b16 %v3376, %v3375
        %v3389 = vpack.c.b16 %v3378, %v3377
        %v3390 = vpack.c.b16 %v3380, %v3379
        %v3391 = vpack.c.b16 %v3382, %v3381
        %v3392 = vpack.c.b16 %v3384, %v3383
        %3401 = vmatprep.subr.bf16.mxu0 0
        %3402 = vmatpush1.bf16.msra.mxu0 %v3385
        %3403 = vmatprep.subr.bf16.mxu0 0
        %3404 = vmatpush1.bf16.msra.mxu0 %v3386
        %3405 = vmatprep.subr.bf16.mxu0 0
        %3406 = vmatpush1.bf16.msra.mxu0 %v3387
        %3407 = vmatprep.subr.bf16.mxu0 0
        %3408 = vmatpush1.bf16.msra.mxu0 %v3388
        %3409 = vmatprep.subr.bf16.mxu0 0
        %3410 = vmatpush1.bf16.msra.mxu0 %v3389
        %3411 = vmatprep.subr.bf16.mxu0 0
        %3412 = vmatpush1.bf16.msra.mxu0 %v3390
        %3413 = vmatprep.subr.bf16.mxu0 0
        %3414 = vmatpush1.bf16.msra.mxu0 %v3391
        %3415 = vmatprep.subr.bf16.mxu0 0
        %3416 = vmatpush1.bf16.msra.mxu0 %v3392
        %3417 = vmatprep.subr.bf16.mxu0 0
        %3418 = vmatpush1.bf16.msra.mxu0 0
        %3419 = vmatprep.subr.bf16.mxu0 0
        %3420 = vmatpush1.bf16.msra.mxu0 0
        %3421 = vmatprep.subr.bf16.mxu0 0
        %3422 = vmatpush1.bf16.msra.mxu0 0
        %3423 = vmatprep.subr.bf16.mxu0 0
        %3424 = vmatpush1.bf16.msra.mxu0 0
        %3425 = vmatprep.subr.bf16.mxu0 0
        %3426 = vmatpush1.bf16.msra.mxu0 0
        %3427 = vmatprep.subr.bf16.mxu0 0
        %3428 = vmatpush1.bf16.msra.mxu0 0
        %3429 = vmatprep.subr.bf16.mxu0 0
        %3430 = vmatpush1.bf16.msra.mxu0 0
        %3431 = vmatprep.subr.bf16.mxu0 0
        %3432 = vmatpush1.bf16.msra.mxu0 0
        %3433 = vmatprep.mubr.bf16.mxu0 0
        %3434 = vmatmul.mubr.bf16.gmra.mrb[0].mxu0 %v3329
        %v3435 = vpop.f32.mrb[0].mxu0
        %v3436 = vadd.f32 %v3351, %v3435
        %v3437 = vpop.f32.mrb[0].mxu0
        %v3438 = vpop.f32.mrb[0].mxu0
        %v3439 = vpop.f32.mrb[0].mxu0
        %3440 = vdwg.mxu0
        %s3441 = sadd.s32 %s42, %s43
        %s3442 = smul.u32 %s3441, 128
        %v3443 = vlaneseq
        %v3444 = vand.u32 %v3443, 127
        %v3445 = vstv %s3442
        %v3446 = vadd.s32 %v3445, %v3444
        %vm3447 = vcmp.lt.s32.totalorder %v3446, 48
        %v3448 = vsel %vm3447, %v3436, -1e+30
        %v3449 = vld [vmem:[#allocation3] sm:$0xff]
        %3450 = vmax.xlane.f32.xlu0 %v3448
        %v3451 = vpop.xlane.xlu0 %3450
        %v3452 = vmax.f32 %v3449, %v3451
        %v3453 = vld [vmem:[#allocation4] sm:$0xff]
        %v3454 = vsub.f32 %v3449, %v3452
        %v3455 = vmul.f32 %v3454, 1.442695
        %v3456 = vpow.pop %v3455
        %v3457 = vmul.f32 %v3453, %v3456
        %3459 = vset.pattern.permute.xlu0 0
        %3460 = vperm.xlu0 %3459, %v3452
        %v3461 = vpop.permute.xlu0 %3460
        %v3463 = vsub.f32 %v3448, %v3461
        %v3464 = vmul.f32 %v3463, 1.442695
        %v3465 = vpow.pop %v3464
        %3466 = vadd.xlane.f32.xlu0 %v3465
        %v3467 = vpop.xlane.xlu0 %3466
        %v3468 = vadd.f32 %v3457, %v3467
        %vm3469 = vcmask 7168
        %3470 = vst.msk [vmem:[#allocation4] sm:$0xff] %vm3469, %v3468
        %3471 = vst.msk [vmem:[#allocation3] sm:$0xff] %vm3469, %v3452
        %s3472 = smul.u32 %s43, 128
        %s3473 = sshra.s32 %s3472, 7
        %s3474 = sand.u32 %s3472, 127
        %s3475 = scalar_lea.vmem %s656, %s3473 [#allocation20]
        %3476 = vst [vmem:[%s3475] sm:$0xff] %v3448
        // Predicated region
        $region113: #{tpu_custom_call.1} parent=71 // pred_check
          %p3477 = pneg %p681
        $region114: #{tpu_custom_call.1} parent=71 // pred_check_branch
          %3479 = sbr.rel (%p3477) target = $region116
        $region115: #{tpu_custom_call.1} parent=71 // pred_region
          %v3480 = vld [vmem:[#allocation3] sm:$0xff]
          %v3481 = vld [vmem:[#allocation4] sm:$0xff]
          %v3482 = vlog2.pop %v3481
          %v3483 = vmul.f32 %v3482, 0.6931472
          %v3484 = vadd.f32 %v3480, %v3483
          %3485 = vst.msk [vmem:[%s679] sm:$0xff] %vm3469, %v3484
        $region116: #{tpu_custom_call.1} parent=71 // pred_fallthru
          _
        %s3486 = sand.u32 %s345, 1
        %s3487 = scalar_lea.sflag [#allocation7], %s3486
        %s3488 = sand.u32 %s345, 1
        %s3489 = smul.addr %s3488, 8
        %s3490 = scalar_lea.vmem [#allocation20], %s3489
        %p3491 = scmp.lt.s32.totalorder %s42, 1
        %s3492 = scalar_select %p3491, %s42, 1
        %s3493 = smul.addr %s3492, 8
        %s3494 = scalar_lea.vmem %s14, %s3493
        %s3495 = sand.u32 %s397, 1
        %s3496 = scalar_lea.sflag [#allocation22], %s3495
        %s3497 = sand.u32 %s397, 1
        %s3498 = smul.addr %s3497, 8
        %s3499 = scalar_lea.vmem [#allocation21], %s3498
        // Predicated region
        $region117: #{tpu_custom_call.1} parent=71 // pred_check
          %p3500 = pneg %p355
        $region118: #{tpu_custom_call.1} parent=71 // pred_check_branch
          %3502 = sbr.rel (%p3500) target = $region120
        $region119: #{tpu_custom_call.1} parent=71 // pred_region
          %s3504 = ssub.s32 128, 128
          %3505 = vsyncadd %s3487, %s3504
          %s3506 = smul.addr %s42, 128
          %s3507 = scalar_lea.hbm %s13, %s3506
          %s3509 = sshll.u32 %s3490, 4
          %s3510 = int_to_ptr.vmem [resolvable:$true] %s3509
          %3512 = dma.vmem_to_hbm [thread:$0]  %s3510, 128, %s3507, %s3487
        $region120: #{tpu_custom_call.1} parent=71 // pred_fallthru
          _
        // Predicated region
        $region121: #{tpu_custom_call.1} parent=71 // pred_check
          %p3513 = pneg %p381
        $region122: #{tpu_custom_call.1} parent=71 // pred_check_branch
          %3515 = sbr.rel (%p3513) target = $region124
        $region123: #{tpu_custom_call.1} parent=71 // pred_region
          _
        $region124: #{tpu_custom_call.1} parent=71 // pred_fallthru
          _
        // Predicated region
        $region125: #{tpu_custom_call.1} parent=71 // pred_check
          %p3516 = pneg %p407
        $region126: #{tpu_custom_call.1} parent=71 // pred_check_branch
          %3518 = sbr.rel (%p3516) target = $region128
        $region127: #{tpu_custom_call.1} parent=71 // pred_region
          %s3520 = ssub.s32 128, 128
          %3521 = vsyncadd %s3496, %s3520
          %s3522 = smul.addr %s42, 128
          %s3523 = scalar_lea.hbm %s15, %s3522
          %s3525 = sshll.u32 %s3499, 4
          %s3526 = int_to_ptr.vmem [resolvable:$true] %s3525
          %3528 = dma.vmem_to_hbm [thread:$0]  %s3526, 128, %s3523, %s3496
        $region128: #{tpu_custom_call.1} parent=71 // pred_fallthru
          _
      $region72: #{tpu_custom_call.1} parent=5 // pred_fallthru
        _
      %p3529 = scmp.le.s32.totalorder 2, %s33
      // Predicated region
      $region129: #{tpu_custom_call.1} parent=5 // pred_check
        %p3530 = pneg %p3529
      $region130: #{tpu_custom_call.1} parent=5 // pred_check_branch
        %3532 = sbr.rel (%p3530) target = $region132
      $region131: #{tpu_custom_call.1} parent=5 // pred_region
        %s3533 = ssub.s32 %s33, 2
        // Predicated region
        $region133: #{tpu_custom_call.1} parent=131 // pred_check
          %p3534 = pneg %p361
        $region134: #{tpu_custom_call.1} parent=131 // pred_check_branch
          %3536 = sbr.rel (%p3534) target = $region136
        $region135: #{tpu_custom_call.1} parent=131 // pred_region
          %s3537 = sand.u32 %s346, 1
          %s3538 = scalar_lea.sflag [#allocation7], %s3537
          %s3539 = sand.u32 %s346, 1
          %s3540 = smul.addr %s3539, 8
          %s3541 = scalar_lea.vmem [#allocation20], %s3540
          %3542 = dma.done %s3538, 128
        $region136: #{tpu_custom_call.1} parent=131 // pred_fallthru
          _
        // Predicated region
        $region137: #{tpu_custom_call.1} parent=131 // pred_check
          %p3543 = pneg %p387
        $region138: #{tpu_custom_call.1} parent=131 // pred_check_branch
          %3545 = sbr.rel (%p3543) target = $region140
        $region139: #{tpu_custom_call.1} parent=131 // pred_region
          %p3546 = scmp.lt.s32.totalorder %s44, 1
          %s3547 = scalar_select %p3546, %s44, 1
          %s3548 = smul.addr %s3547, 8
          %s3549 = scalar_lea.vmem %s14, %s3548
        $region140: #{tpu_custom_call.1} parent=131 // pred_fallthru
          _
        // Predicated region
        $region141: #{tpu_custom_call.1} parent=131 // pred_check
          %p3550 = pneg %p413
        $region142: #{tpu_custom_call.1} parent=131 // pred_check_branch
          %3552 = sbr.rel (%p3550) target = $region144
        $region143: #{tpu_custom_call.1} parent=131 // pred_region
          %s3553 = sand.u32 %s398, 1
          %s3554 = scalar_lea.sflag [#allocation22], %s3553
          %s3555 = sand.u32 %s398, 1
          %s3556 = smul.addr %s3555, 8
          %s3557 = scalar_lea.vmem [#allocation21], %s3556
          %3558 = dma.done %s3554, 128
        $region144: #{tpu_custom_call.1} parent=131 // pred_fallthru
          _
      $region132: #{tpu_custom_call.1} parent=5 // pred_fallthru
        _
    $region6: #{tpu_custom_call.1} parent=1 // loop_footer
      %s37 = sadd.s32 1, %s33
    $region7: #{tpu_custom_call.1} parent=1 // loop_footer_branch
      %32 = sbr.rel target = $region3
    $region8: #{tpu_custom_call.1} parent=1 // loop_exit
      _
    %3559 = vsyncpa [#allocation6], 1
    %s3560 = scalar_lea.sflag [#allocation6], 1
    %3561 = vsyncpa %s3560, 1
    %3562 = vsyncpa [#allocation9], 1
    %3563 = vsyncpa [#allocation12], 1
    %3564 = vsyncpa [#allocation15], 1
    %3565 = vsyncpa [#allocation18], 1
    %3566 = vsyncpa [#allocation7], 1
    %s3567 = scalar_lea.sflag [#allocation7], 1
    %3568 = vsyncpa %s3567, 1
    %3569 = vsyncpa [#allocation22], 1
    %s3570 = scalar_lea.sflag [#allocation22], 1
    %3571 = vsyncpa %s3570, 1

</llo_original>
